<compile_context>
chip_gen: v7x
topology: tpu7x:2x2x1
jax: 0.10.0
libtpu: 0.0.40
codegen_flags: <defaults>
</compile_context>

<pallas_src>
import jax
import jax.numpy as jnp
from jax.experimental import pallas as pl
from jax.experimental.pallas import tpu as pltpu

NUM_CHANNELS = 8      # matches `num_channels` in the PyTorch file
EPS = 1e-5            # BatchNorm eps
LANES = 128           # lane-dense channel padding inside the kernel


def _round_up(x, m):
    return (x + m - 1) // m * m


def init_params(key, cf=4, kernel_size=10):
    """Parameters of DecoderLayer(kernel_size, cf): conv3, bn3, conv4, bn4."""
    ccat = NUM_CHANNELS * cf
    c3 = NUM_CHANNELS * (cf // 2)
    c4 = NUM_CHANNELS * (cf // 4)
    ks = kernel_size
    k = jax.random.split(key, 8)
    return {
        "w3":  0.1 * jax.random.normal(k[0], (c3, ccat, ks), jnp.float32),
        "b3":  0.1 * jax.random.normal(k[1], (c3,), jnp.float32),
        "g3":  1.0 + 0.1 * jax.random.normal(k[2], (c3,), jnp.float32),
        "be3": 0.1 * jax.random.normal(k[3], (c3,), jnp.float32),
        "w4":  0.1 * jax.random.normal(k[4], (c4, c3, ks), jnp.float32),
        "b4":  0.1 * jax.random.normal(k[5], (c4,), jnp.float32),
        "g4":  1.0 + 0.1 * jax.random.normal(k[6], (c4,), jnp.float32),
        "be4": 0.1 * jax.random.normal(k[7], (c4,), jnp.float32),
    }


def decoder_layer_forward(x_in, enc, params, kernel_size=10):
    """x_in: (N, C_up, L_in), enc: (N, C_enc, L_enc) float32 in PyTorch NCL.

    Returns relu(bn4(conv4(relu(bn3(conv3(cat(upsample(x_in), enc))))))) in NCL.
    """
    ks = kernel_size
    pad3 = (ks - 1) // 2
    pad4 = (ks + 1) // 2
    N, c_up, l_in = x_in.shape
    _, c_enc, L = enc.shape
    Ccat = c_up + c_enc
    C3 = params["w3"].shape[0]
    C4 = params["w4"].shape[0]
    assert params["w3"].shape[1] == Ccat, "channel concat must match conv3 in_channels"
    L3 = L + 2 * pad3 - ks + 1
    L4 = L3 + 2 * pad4 - ks + 1
    CP = max(LANES, _round_up(max(C3, C4), LANES))

    # ---- glue: upsample(nearest) + pad + channel concat, channels-last -------
    x_up = jnp.repeat(x_in.astype(jnp.float32), ks, axis=2)        # (N, c_up, l_in*ks)
    diff = L - x_up.shape[2]
    assert diff >= 0 and diff % 2 == 0, "encoder/decoder length mismatch"
    x_up = jnp.pad(x_up, ((0, 0), (0, 0), (diff // 2, diff // 2)))
    cat = jnp.concatenate([x_up, enc.astype(jnp.float32)], axis=1)  # (N, Ccat, L)
    cat = jnp.transpose(cat, (0, 2, 1))                             # (N, L, Ccat)

    # ---- global row layout: 8-aligned per-sample slabs, front/tail zero rows --
    S = _round_up(L + 2 * max(pad3, pad4), 8)   # per-sample slab height (rows)
    G = N * S                                   # rows that carry conv outputs
    front = _round_up(max(pad3, pad4), 8)       # zero rows before sample 0
    tail = _round_up(ks, 8)                     # zero rows after the last slab
    R = front + G + tail

    slabs = jnp.pad(cat, ((0, 0), (0, S - L), (0, 0))).reshape(G, Ccat)
    x_full = jnp.pad(slabs, ((front, tail), (0, 0)))                # (R, Ccat)

    # conv3 as a single im2col matmul: row g gathers the ks taps of its window.
    x_im2col = jnp.concatenate(
        [x_full[front - pad3 + k: front - pad3 + k + G, :] for k in range(ks)],
        axis=1)                                                     # (G, ks*Ccat)

    # Row-validity masks for the training-mode BatchNorm reductions.
    pos = jnp.arange(G, dtype=jnp.int32) % S
    m3 = (pos < L3).astype(jnp.float32).reshape(G, 1)
    m4 = (pos < L4).astype(jnp.float32).reshape(G, 1)

    # Weights: (Cout, Cin, ks) -> stacked per-tap matmul weights, lane-padded.
    w3f = jnp.concatenate([params["w3"][:, :, k].T for k in range(ks)], axis=0)
    w3f = jnp.pad(w3f, ((0, 0), (0, CP - C3)))                      # (ks*Ccat, CP)
    w4f = jnp.concatenate(
        [jnp.pad(params["w4"][:, :, k].T, ((0, CP - C3), (0, CP - C4)))
         for k in range(ks)], axis=0)                               # (ks*CP, CP)

    def vec(v):
        return jnp.pad(v, (0, CP - v.shape[0])).reshape(1, CP)

    b3, g3, be3 = vec(params["b3"]), vec(params["g3"]), vec(params["be3"])
    b4, g4, be4 = vec(params["b4"]), vec(params["g4"]), vec(params["be4"])

    cnt3 = float(N * L3)
    cnt4 = float(N * L4)

    # ---- the Pallas kernel ----------------------------------------------------
    def kernel(xim_ref, m3_ref, m4_ref,
               w3_ref, b3_ref, g3_ref, be3_ref,
               w4_ref, b4_ref, g4_ref, be4_ref,
               out_ref, h3_ref):
        # conv3: one MXU matmul, contraction = ks*Ccat (im2col); bias added once.
        acc3 = jnp.dot(xim_ref[...], w3_ref[...],
                       preferred_element_type=jnp.float32) + b3_ref[...]

        # batchnorm3 (biased batch stats over the N*L3 valid rows) + relu.
        msk3 = m3_ref[...]
        mean3 = jnp.sum(acc3 * msk3, axis=0, keepdims=True) * (1.0 / cnt3)
        d3 = (acc3 - mean3) * msk3
        var3 = jnp.sum(d3 * d3, axis=0, keepdims=True) * (1.0 / cnt3)
        h3 = jnp.maximum(
            (acc3 - mean3) * jax.lax.rsqrt(var3 + EPS) * g3_ref[...] + be3_ref[...],
            0.0) * msk3        # masked pad rows double as conv4's zero padding

        # conv4 source buffer: only the front/tail pad slabs get zeroed.
        h3_ref[0:front, :] = jnp.zeros((front, CP), jnp.float32)
        h3_ref[front:front + G, :] = h3
        h3_ref[front + G:R, :] = jnp.zeros((tail, CP), jnp.float32)

        # conv4: ks shifted matmuls over the WHOLE batch buffer; bias hoisted.
        acc4 = jnp.dot(h3_ref[front - pad4:front - pad4 + G, :],
                       w4_ref[0:CP, :], preferred_element_type=jnp.float32)
        for k in range(1, ks):
            off = front - pad4 + k
            acc4 = acc4 + jnp.dot(h3_ref[off:off + G, :],
                                  w4_ref[k * CP:(k + 1) * CP, :],
                                  preferred_element_type=jnp.float32)
        acc4 = acc4 + b4_ref[...]

        # batchnorm4 + relu -> lane-dense (G, 128) output store.
        msk4 = m4_ref[...]
        mean4 = jnp.sum(acc4 * msk4, axis=0, keepdims=True) * (1.0 / cnt4)
        d4 = (acc4 - mean4) * msk4
        var4 = jnp.sum(d4 * d4, axis=0, keepdims=True) * (1.0 / cnt4)
        out_ref[...] = jnp.maximum(
            (acc4 - mean4) * jax.lax.rsqrt(var4 + EPS) * g4_ref[...] + be4_ref[...],
            0.0) * msk4

    vmem = pl.BlockSpec(memory_space=pltpu.MemorySpace.VMEM)
    out_flat = pl.pallas_call(
        kernel,
        out_shape=jax.ShapeDtypeStruct((G, CP), jnp.float32),
        in_specs=[vmem] * 11,
        out_specs=vmem,
        scratch_shapes=[pltpu.VMEM((R, CP), jnp.float32)],
        compiler_params=pltpu.CompilerParams(vmem_limit_bytes=64 * 1024 * 1024),
    )(x_im2col, m3, m4, w3f, b3, g3, be3, w4f, b4, g4, be4)

    # ---- glue: back to PyTorch NCL layout -------------------------------------
    out = out_flat.reshape(N, S, CP)[:, :L4, :C4]
    return jnp.transpose(out, (0, 2, 1))                            # (N, C4, L4)


# Pure-JAX reference (mirrors the PyTorch forward) used only for verification.
def reference_forward(x_in, enc, p, kernel_size=10):
    ks = kernel_size
    pad3 = (ks - 1) // 2
    pad4 = (ks + 1) // 2

    def conv(h, w, b, pad):
        y = jax.lax.conv_general_dilated(h, w, (1,), [(pad, pad)],
                                         dimension_numbers=("NCH", "OIH", "NCH"))
        return y + b[None, :, None]

    def bn(h, g, be):
        m = jnp.mean(h, axis=(0, 2), keepdims=True)
        v = jnp.mean((h - m) ** 2, axis=(0, 2), keepdims=True)
        return (h - m) / jnp.sqrt(v + EPS) * g[None, :, None] + be[None, :, None]

    x_up = jnp.repeat(x_in, ks, axis=2)
    diff = enc.shape[2] - x_up.shape[2]
    x_up = jnp.pad(x_up, ((0, 0), (0, 0), (diff // 2, diff // 2)))
    h = jnp.concatenate([x_up, enc], axis=1)
    h = jax.nn.relu(bn(conv(h, p["w3"], p["b3"], pad3), p["g3"], p["be3"]))
    h = jax.nn.relu(bn(conv(h, p["w4"], p["b4"], pad4), p["g4"], p["be4"]))
    return h


if __name__ == "__main__":
    key = jax.random.PRNGKey(0)
    k_x, k_e, k_p = jax.random.split(key, 3)

    cf, ks = 4, 10
    N = 2
    C_up = NUM_CHANNELS * (cf // 2)              # 16 (previous decoder stage)
    C_enc = NUM_CHANNELS * cf - C_up             # 16 (encoder skip connection)
    L_in = 4                                     # upsampled length = 40
    L_enc = 44                                   # diff = 4 -> pad 2 each side

    x_in = jax.random.normal(k_x, (N, C_up, L_in), jnp.float32)
    enc = jax.random.normal(k_e, (N, C_enc, L_enc), jnp.float32)
    params = init_params(k_p, cf=cf, kernel_size=ks)

    out = decoder_layer_forward(x_in, enc, params, kernel_size=ks)
    out = jax.block_until_ready(out)

    out_ref = reference_forward(x_in, enc, params, kernel_size=ks)
    assert out.shape == (N, NUM_CHANNELS * (cf // 4), L_enc), out.shape
    assert out.shape == out_ref.shape
    assert jnp.allclose(out, out_ref, atol=3e-4, rtol=3e-4), \
        float(jnp.max(jnp.abs(out - out_ref)))

    print("KERNEL_OK")
</pallas_src>

<mosaic_0001>
module attributes {stable_mosaic.version = 11 : i64} {
  func.func @kernel(%arg0: memref<112x320xf32, #tpu.memory_space<vmem>>, %arg1: memref<112x1xf32, #tpu.memory_space<vmem>>, %arg2: memref<112x1xf32, #tpu.memory_space<vmem>>, %arg3: memref<320x128xf32, #tpu.memory_space<vmem>>, %arg4: memref<1x128xf32, #tpu.memory_space<vmem>>, %arg5: memref<1x128xf32, #tpu.memory_space<vmem>>, %arg6: memref<1x128xf32, #tpu.memory_space<vmem>>, %arg7: memref<1280x128xf32, #tpu.memory_space<vmem>>, %arg8: memref<1x128xf32, #tpu.memory_space<vmem>>, %arg9: memref<1x128xf32, #tpu.memory_space<vmem>>, %arg10: memref<1x128xf32, #tpu.memory_space<vmem>>, %arg11: memref<112x128xf32, #tpu.memory_space<vmem>>, %arg12: memref<136x128xf32, #tpu.memory_space<vmem>>) attributes {dimension_semantics = [], scalar_prefetch = 0 : i64, scratch_operands = 1 : i64, tpu.core_type = #tpu.core_type<tc>} {
    %c0 = arith.constant 0 : index
    %c0_0 = arith.constant 0 : index
    %0 = vector.load %arg0[%c0, %c0_0] : memref<112x320xf32, #tpu.memory_space<vmem>>, vector<112x320xf32>
    %c0_1 = arith.constant 0 : index
    %c0_2 = arith.constant 0 : index
    %1 = vector.load %arg3[%c0_1, %c0_2] : memref<320x128xf32, #tpu.memory_space<vmem>>, vector<320x128xf32>
    %cst = arith.constant dense<0.000000e+00> : vector<112x128xf32>
    %2 = tpu.matmul %0, %1, %cst {dimension_numbers = #tpu.dot_dimension_numbers<[1], [0], [0], [1], [0, 0, 1, 1], [], []>} : vector<112x320xf32>, vector<320x128xf32>, vector<112x128xf32> -> vector<112x128xf32>
    %c0_3 = arith.constant 0 : index
    %c0_4 = arith.constant 0 : index
    %3 = vector.load %arg4[%c0_3, %c0_4] : memref<1x128xf32, #tpu.memory_space<vmem>>, vector<1x128xf32>
    %4 = vector.broadcast %3 : vector<1x128xf32> to vector<112x128xf32>
    %5 = arith.addf %2, %4 : vector<112x128xf32>
    %c0_5 = arith.constant 0 : index
    %c0_6 = arith.constant 0 : index
    %6 = vector.load %arg1[%c0_5, %c0_6] : memref<112x1xf32, #tpu.memory_space<vmem>>, vector<112x1xf32>
    %7 = vector.broadcast %6 : vector<112x1xf32> to vector<112x128xf32>
    %8 = arith.mulf %5, %7 : vector<112x128xf32>
    %cst_7 = arith.constant dense<0.000000e+00> : vector<128xf32>
    %9 = vector.multi_reduction <add>, %8, %cst_7 [0] : vector<112x128xf32> to vector<128xf32>
    %10 = vector.shape_cast %9 : vector<128xf32> to vector<1x128xf32>
    %cst_8 = arith.constant 0.0116279069 : f32
    %11 = vector.broadcast %cst_8 : f32 to vector<1x128xf32>
    %12 = arith.mulf %10, %11 : vector<1x128xf32>
    %13 = vector.broadcast %12 : vector<1x128xf32> to vector<112x128xf32>
    %14 = arith.subf %5, %13 : vector<112x128xf32>
    %15 = vector.broadcast %6 : vector<112x1xf32> to vector<112x128xf32>
    %16 = arith.mulf %14, %15 : vector<112x128xf32>
    %17 = arith.mulf %16, %16 : vector<112x128xf32>
    %cst_9 = arith.constant dense<0.000000e+00> : vector<128xf32>
    %18 = vector.multi_reduction <add>, %17, %cst_9 [0] : vector<112x128xf32> to vector<128xf32>
    %19 = vector.shape_cast %18 : vector<128xf32> to vector<1x128xf32>
    %cst_10 = arith.constant 0.0116279069 : f32
    %20 = vector.broadcast %cst_10 : f32 to vector<1x128xf32>
    %21 = arith.mulf %19, %20 : vector<1x128xf32>
    %22 = vector.broadcast %12 : vector<1x128xf32> to vector<112x128xf32>
    %23 = arith.subf %5, %22 : vector<112x128xf32>
    %cst_11 = arith.constant 9.99999974E-6 : f32
    %24 = vector.broadcast %cst_11 : f32 to vector<1x128xf32>
    %25 = arith.addf %21, %24 : vector<1x128xf32>
    %26 = math.rsqrt %25 : vector<1x128xf32>
    %27 = vector.broadcast %26 : vector<1x128xf32> to vector<112x128xf32>
    %28 = arith.mulf %23, %27 : vector<112x128xf32>
    %c0_12 = arith.constant 0 : index
    %c0_13 = arith.constant 0 : index
    %29 = vector.load %arg5[%c0_12, %c0_13] : memref<1x128xf32, #tpu.memory_space<vmem>>, vector<1x128xf32>
    %30 = vector.broadcast %29 : vector<1x128xf32> to vector<112x128xf32>
    %31 = arith.mulf %28, %30 : vector<112x128xf32>
    %c0_14 = arith.constant 0 : index
    %c0_15 = arith.constant 0 : index
    %32 = vector.load %arg6[%c0_14, %c0_15] : memref<1x128xf32, #tpu.memory_space<vmem>>, vector<1x128xf32>
    %33 = vector.broadcast %32 : vector<1x128xf32> to vector<112x128xf32>
    %34 = arith.addf %31, %33 : vector<112x128xf32>
    %cst_16 = arith.constant 0.000000e+00 : f32
    %35 = vector.broadcast %cst_16 : f32 to vector<112x128xf32>
    %36 = arith.maximumf %34, %35 : vector<112x128xf32>
    %37 = vector.broadcast %6 : vector<112x1xf32> to vector<112x128xf32>
    %38 = arith.mulf %36, %37 : vector<112x128xf32>
    %cst_17 = arith.constant 0.000000e+00 : f32
    %39 = vector.broadcast %cst_17 : f32 to vector<8x128xf32>
    %c0_18 = arith.constant 0 : index
    %c0_19 = arith.constant 0 : index
    %40 = vector.load %arg12[%c0_18, %c0_19] : memref<136x128xf32, #tpu.memory_space<vmem>>, vector<8x128xf32>
    tpu.vector_store %arg12[%c0_18, %c0_19], %39 {strides = array<i32>} : memref<136x128xf32, #tpu.memory_space<vmem>>, vector<8x128xf32>,
    %c8 = arith.constant 8 : index
    %c0_20 = arith.constant 0 : index
    %41 = vector.load %arg12[%c8, %c0_20] : memref<136x128xf32, #tpu.memory_space<vmem>>, vector<112x128xf32>
    tpu.vector_store %arg12[%c8, %c0_20], %38 {strides = array<i32>} : memref<136x128xf32, #tpu.memory_space<vmem>>, vector<112x128xf32>,
    %cst_21 = arith.constant 0.000000e+00 : f32
    %42 = vector.broadcast %cst_21 : f32 to vector<16x128xf32>
    %c120 = arith.constant 120 : index
    %c0_22 = arith.constant 0 : index
    %43 = vector.load %arg12[%c120, %c0_22] : memref<136x128xf32, #tpu.memory_space<vmem>>, vector<16x128xf32>
    tpu.vector_store %arg12[%c120, %c0_22], %42 {strides = array<i32>} : memref<136x128xf32, #tpu.memory_space<vmem>>, vector<16x128xf32>,
    %c3 = arith.constant 3 : index
    %c0_23 = arith.constant 0 : index
    %44 = vector.load %arg12[%c3, %c0_23] : memref<136x128xf32, #tpu.memory_space<vmem>>, vector<112x128xf32>
    %c0_24 = arith.constant 0 : index
    %c0_25 = arith.constant 0 : index
    %45 = vector.load %arg7[%c0_24, %c0_25] : memref<1280x128xf32, #tpu.memory_space<vmem>>, vector<128x128xf32>
    %cst_26 = arith.constant dense<0.000000e+00> : vector<112x128xf32>
    %46 = tpu.matmul %44, %45, %cst_26 {dimension_numbers = #tpu.dot_dimension_numbers<[1], [0], [0], [1], [0, 0, 1, 1], [], []>} : vector<112x128xf32>, vector<128x128xf32>, vector<112x128xf32> -> vector<112x128xf32>
    %c4 = arith.constant 4 : index
    %c0_27 = arith.constant 0 : index
    %47 = vector.load %arg12[%c4, %c0_27] : memref<136x128xf32, #tpu.memory_space<vmem>>, vector<112x128xf32>
    %c128 = arith.constant 128 : index
    %c0_28 = arith.constant 0 : index
    %48 = vector.load %arg7[%c128, %c0_28] : memref<1280x128xf32, #tpu.memory_space<vmem>>, vector<128x128xf32>
    %cst_29 = arith.constant dense<0.000000e+00> : vector<112x128xf32>
    %49 = tpu.matmul %47, %48, %cst_29 {dimension_numbers = #tpu.dot_dimension_numbers<[1], [0], [0], [1], [0, 0, 1, 1], [], []>} : vector<112x128xf32>, vector<128x128xf32>, vector<112x128xf32> -> vector<112x128xf32>
    %50 = arith.addf %46, %49 : vector<112x128xf32>
    %c5 = arith.constant 5 : index
    %c0_30 = arith.constant 0 : index
    %51 = vector.load %arg12[%c5, %c0_30] : memref<136x128xf32, #tpu.memory_space<vmem>>, vector<112x128xf32>
    %c256 = arith.constant 256 : index
    %c0_31 = arith.constant 0 : index
    %52 = vector.load %arg7[%c256, %c0_31] : memref<1280x128xf32, #tpu.memory_space<vmem>>, vector<128x128xf32>
    %cst_32 = arith.constant dense<0.000000e+00> : vector<112x128xf32>
    %53 = tpu.matmul %51, %52, %cst_32 {dimension_numbers = #tpu.dot_dimension_numbers<[1], [0], [0], [1], [0, 0, 1, 1], [], []>} : vector<112x128xf32>, vector<128x128xf32>, vector<112x128xf32> -> vector<112x128xf32>
    %54 = arith.addf %50, %53 : vector<112x128xf32>
    %c6 = arith.constant 6 : index
    %c0_33 = arith.constant 0 : index
    %55 = vector.load %arg12[%c6, %c0_33] : memref<136x128xf32, #tpu.memory_space<vmem>>, vector<112x128xf32>
    %c384 = arith.constant 384 : index
    %c0_34 = arith.constant 0 : index
    %56 = vector.load %arg7[%c384, %c0_34] : memref<1280x128xf32, #tpu.memory_space<vmem>>, vector<128x128xf32>
    %cst_35 = arith.constant dense<0.000000e+00> : vector<112x128xf32>
    %57 = tpu.matmul %55, %56, %cst_35 {dimension_numbers = #tpu.dot_dimension_numbers<[1], [0], [0], [1], [0, 0, 1, 1], [], []>} : vector<112x128xf32>, vector<128x128xf32>, vector<112x128xf32> -> vector<112x128xf32>
    %58 = arith.addf %54, %57 : vector<112x128xf32>
    %c7 = arith.constant 7 : index
    %c0_36 = arith.constant 0 : index
    %59 = vector.load %arg12[%c7, %c0_36] : memref<136x128xf32, #tpu.memory_space<vmem>>, vector<112x128xf32>
    %c512 = arith.constant 512 : index
    %c0_37 = arith.constant 0 : index
    %60 = vector.load %arg7[%c512, %c0_37] : memref<1280x128xf32, #tpu.memory_space<vmem>>, vector<128x128xf32>
    %cst_38 = arith.constant dense<0.000000e+00> : vector<112x128xf32>
    %61 = tpu.matmul %59, %60, %cst_38 {dimension_numbers = #tpu.dot_dimension_numbers<[1], [0], [0], [1], [0, 0, 1, 1], [], []>} : vector<112x128xf32>, vector<128x128xf32>, vector<112x128xf32> -> vector<112x128xf32>
    %62 = arith.addf %58, %61 : vector<112x128xf32>
    %c8_39 = arith.constant 8 : index
    %c0_40 = arith.constant 0 : index
    %63 = vector.load %arg12[%c8_39, %c0_40] : memref<136x128xf32, #tpu.memory_space<vmem>>, vector<112x128xf32>
    %c640 = arith.constant 640 : index
    %c0_41 = arith.constant 0 : index
    %64 = vector.load %arg7[%c640, %c0_41] : memref<1280x128xf32, #tpu.memory_space<vmem>>, vector<128x128xf32>
    %cst_42 = arith.constant dense<0.000000e+00> : vector<112x128xf32>
    %65 = tpu.matmul %63, %64, %cst_42 {dimension_numbers = #tpu.dot_dimension_numbers<[1], [0], [0], [1], [0, 0, 1, 1], [], []>} : vector<112x128xf32>, vector<128x128xf32>, vector<112x128xf32> -> vector<112x128xf32>
    %66 = arith.addf %62, %65 : vector<112x128xf32>
    %c9 = arith.constant 9 : index
    %c0_43 = arith.constant 0 : index
    %67 = vector.load %arg12[%c9, %c0_43] : memref<136x128xf32, #tpu.memory_space<vmem>>, vector<112x128xf32>
    %c768 = arith.constant 768 : index
    %c0_44 = arith.constant 0 : index
    %68 = vector.load %arg7[%c768, %c0_44] : memref<1280x128xf32, #tpu.memory_space<vmem>>, vector<128x128xf32>
    %cst_45 = arith.constant dense<0.000000e+00> : vector<112x128xf32>
    %69 = tpu.matmul %67, %68, %cst_45 {dimension_numbers = #tpu.dot_dimension_numbers<[1], [0], [0], [1], [0, 0, 1, 1], [], []>} : vector<112x128xf32>, vector<128x128xf32>, vector<112x128xf32> -> vector<112x128xf32>
    %70 = arith.addf %66, %69 : vector<112x128xf32>
    %c10 = arith.constant 10 : index
    %c0_46 = arith.constant 0 : index
    %71 = vector.load %arg12[%c10, %c0_46] : memref<136x128xf32, #tpu.memory_space<vmem>>, vector<112x128xf32>
    %c896 = arith.constant 896 : index
    %c0_47 = arith.constant 0 : index
    %72 = vector.load %arg7[%c896, %c0_47] : memref<1280x128xf32, #tpu.memory_space<vmem>>, vector<128x128xf32>
    %cst_48 = arith.constant dense<0.000000e+00> : vector<112x128xf32>
    %73 = tpu.matmul %71, %72, %cst_48 {dimension_numbers = #tpu.dot_dimension_numbers<[1], [0], [0], [1], [0, 0, 1, 1], [], []>} : vector<112x128xf32>, vector<128x128xf32>, vector<112x128xf32> -> vector<112x128xf32>
    %74 = arith.addf %70, %73 : vector<112x128xf32>
    %c11 = arith.constant 11 : index
    %c0_49 = arith.constant 0 : index
    %75 = vector.load %arg12[%c11, %c0_49] : memref<136x128xf32, #tpu.memory_space<vmem>>, vector<112x128xf32>
    %c1024 = arith.constant 1024 : index
    %c0_50 = arith.constant 0 : index
    %76 = vector.load %arg7[%c1024, %c0_50] : memref<1280x128xf32, #tpu.memory_space<vmem>>, vector<128x128xf32>
    %cst_51 = arith.constant dense<0.000000e+00> : vector<112x128xf32>
    %77 = tpu.matmul %75, %76, %cst_51 {dimension_numbers = #tpu.dot_dimension_numbers<[1], [0], [0], [1], [0, 0, 1, 1], [], []>} : vector<112x128xf32>, vector<128x128xf32>, vector<112x128xf32> -> vector<112x128xf32>
    %78 = arith.addf %74, %77 : vector<112x128xf32>
    %c12 = arith.constant 12 : index
    %c0_52 = arith.constant 0 : index
    %79 = vector.load %arg12[%c12, %c0_52] : memref<136x128xf32, #tpu.memory_space<vmem>>, vector<112x128xf32>
    %c1152 = arith.constant 1152 : index
    %c0_53 = arith.constant 0 : index
    %80 = vector.load %arg7[%c1152, %c0_53] : memref<1280x128xf32, #tpu.memory_space<vmem>>, vector<128x128xf32>
    %cst_54 = arith.constant dense<0.000000e+00> : vector<112x128xf32>
    %81 = tpu.matmul %79, %80, %cst_54 {dimension_numbers = #tpu.dot_dimension_numbers<[1], [0], [0], [1], [0, 0, 1, 1], [], []>} : vector<112x128xf32>, vector<128x128xf32>, vector<112x128xf32> -> vector<112x128xf32>
    %82 = arith.addf %78, %81 : vector<112x128xf32>
    %c0_55 = arith.constant 0 : index
    %c0_56 = arith.constant 0 : index
    %83 = vector.load %arg8[%c0_55, %c0_56] : memref<1x128xf32, #tpu.memory_space<vmem>>, vector<1x128xf32>
    %84 = vector.broadcast %83 : vector<1x128xf32> to vector<112x128xf32>
    %85 = arith.addf %82, %84 : vector<112x128xf32>
    %c0_57 = arith.constant 0 : index
    %c0_58 = arith.constant 0 : index
    %86 = vector.load %arg2[%c0_57, %c0_58] : memref<112x1xf32, #tpu.memory_space<vmem>>, vector<112x1xf32>
    %87 = vector.broadcast %86 : vector<112x1xf32> to vector<112x128xf32>
    %88 = arith.mulf %85, %87 : vector<112x128xf32>
    %cst_59 = arith.constant dense<0.000000e+00> : vector<128xf32>
    %89 = vector.multi_reduction <add>, %88, %cst_59 [0] : vector<112x128xf32> to vector<128xf32>
    %90 = vector.shape_cast %89 : vector<128xf32> to vector<1x128xf32>
    %cst_60 = arith.constant 0.0113636367 : f32
    %91 = vector.broadcast %cst_60 : f32 to vector<1x128xf32>
    %92 = arith.mulf %90, %91 : vector<1x128xf32>
    %93 = vector.broadcast %92 : vector<1x128xf32> to vector<112x128xf32>
    %94 = arith.subf %85, %93 : vector<112x128xf32>
    %95 = vector.broadcast %86 : vector<112x1xf32> to vector<112x128xf32>
    %96 = arith.mulf %94, %95 : vector<112x128xf32>
    %97 = arith.mulf %96, %96 : vector<112x128xf32>
    %cst_61 = arith.constant dense<0.000000e+00> : vector<128xf32>
    %98 = vector.multi_reduction <add>, %97, %cst_61 [0] : vector<112x128xf32> to vector<128xf32>
    %99 = vector.shape_cast %98 : vector<128xf32> to vector<1x128xf32>
    %cst_62 = arith.constant 0.0113636367 : f32
    %100 = vector.broadcast %cst_62 : f32 to vector<1x128xf32>
    %101 = arith.mulf %99, %100 : vector<1x128xf32>
    %102 = vector.broadcast %92 : vector<1x128xf32> to vector<112x128xf32>
    %103 = arith.subf %85, %102 : vector<112x128xf32>
    %cst_63 = arith.constant 9.99999974E-6 : f32
    %104 = vector.broadcast %cst_63 : f32 to vector<1x128xf32>
    %105 = arith.addf %101, %104 : vector<1x128xf32>
    %106 = math.rsqrt %105 : vector<1x128xf32>
    %107 = vector.broadcast %106 : vector<1x128xf32> to vector<112x128xf32>
    %108 = arith.mulf %103, %107 : vector<112x128xf32>
    %c0_64 = arith.constant 0 : index
    %c0_65 = arith.constant 0 : index
    %109 = vector.load %arg9[%c0_64, %c0_65] : memref<1x128xf32, #tpu.memory_space<vmem>>, vector<1x128xf32>
    %110 = vector.broadcast %109 : vector<1x128xf32> to vector<112x128xf32>
    %111 = arith.mulf %108, %110 : vector<112x128xf32>
    %c0_66 = arith.constant 0 : index
    %c0_67 = arith.constant 0 : index
    %112 = vector.load %arg10[%c0_66, %c0_67] : memref<1x128xf32, #tpu.memory_space<vmem>>, vector<1x128xf32>
    %113 = vector.broadcast %112 : vector<1x128xf32> to vector<112x128xf32>
    %114 = arith.addf %111, %113 : vector<112x128xf32>
    %cst_68 = arith.constant 0.000000e+00 : f32
    %115 = vector.broadcast %cst_68 : f32 to vector<112x128xf32>
    %116 = arith.maximumf %114, %115 : vector<112x128xf32>
    %117 = vector.broadcast %86 : vector<112x1xf32> to vector<112x128xf32>
    %118 = arith.mulf %116, %117 : vector<112x128xf32>
    %c0_69 = arith.constant 0 : index
    %c0_70 = arith.constant 0 : index
    %119 = vector.load %arg11[%c0_69, %c0_70] : memref<112x128xf32, #tpu.memory_space<vmem>>, vector<112x128xf32>
    tpu.vector_store %arg11[%c0_69, %c0_70], %118 {strides = array<i32>} : memref<112x128xf32, #tpu.memory_space<vmem>>, vector<112x128xf32>,
    return
  }
}

</mosaic_0001>

<llo_original>
// kernel: tpu_custom_call.1
$region0: #{tpu_custom_call.1}
  #allocation0 [shape = 'u32[]', space=smem, size = 0x4, offset = 0x4, fixed_abs, tag = 'smem constant byte address 0x4 - core index']
  #allocation1 [shape = 'u32[144,128]{1,0:T(1,128)}', space=vmem, size = 0x12000, scoped, tag = 'internal scratch']
  #allocation2 [shape = 'f32[136,128]{1,0:T(8,128)}', space=vmem, size = 0x11000, scoped, tag = 'scratch operand']
  %s0 = inlined_call_operand.hbm [shape: f32[112,320], index: 0, kind: input, shape index: {}]
  %s1 = inlined_call_operand.hbm [shape: f32[112,1], index: 1, kind: input, shape index: {}]
  %s2 = inlined_call_operand.hbm [shape: f32[112,1], index: 2, kind: input, shape index: {}]
  %s3 = inlined_call_operand.hbm [shape: f32[320,128], index: 3, kind: input, shape index: {}]
  %s4 = inlined_call_operand.hbm [shape: f32[1,128], index: 4, kind: input, shape index: {}]
  %s5 = inlined_call_operand.hbm [shape: f32[1,128], index: 5, kind: input, shape index: {}]
  %s6 = inlined_call_operand.hbm [shape: f32[1,128], index: 6, kind: input, shape index: {}]
  %s7 = inlined_call_operand.hbm [shape: f32[1280,128], index: 7, kind: input, shape index: {}]
  %s8 = inlined_call_operand.hbm [shape: f32[1,128], index: 8, kind: input, shape index: {}]
  %s9 = inlined_call_operand.hbm [shape: f32[1,128], index: 9, kind: input, shape index: {}]
  %s10 = inlined_call_operand.hbm [shape: f32[1,128], index: 10, kind: input, shape index: {}]
  %s11 = inlined_call_operand.hbm [shape: f32[112,128], index: 11, kind: output, shape index: {}]
  %s12 = sld [smem:[#allocation0]]
  $region98: #{tpu_custom_call.1} parent=0
    _
  %s14 = ssub.s32 1, %s12
  %s15 = scalar_select 0, %s14, %s12
  $region1: #{tpu_custom_call.1} parent=0
    #allocation3 [shape = 'u8[172032]{0}', space=vmem, size = 0x2a000, scoped, tag = 'input window, operand 0, single buffered']
    #allocation4 [shape = 's32[1]{0}', space=sflag, size = 0x4, scoped, tag = 'scoped memory for tpu_custom_call.1']
    #allocation5 [shape = 's32[1]{0}', space=sflag, size = 0x4, scoped, tag = 'scoped memory for tpu_custom_call.1']
    #allocation6 [shape = 'u8[57344]{0}', space=vmem, size = 0xe000, scoped, tag = 'input window, operand 1, single buffered']
    #allocation7 [shape = 's32[1]{0}', space=sflag, size = 0x4, scoped, tag = 'scoped memory for tpu_custom_call.1']
    #allocation8 [shape = 'u8[57344]{0}', space=vmem, size = 0xe000, scoped, tag = 'input window, operand 2, single buffered']
    #allocation9 [shape = 'u8[163840]{0}', space=vmem, size = 0x28000, scoped, tag = 'input window, operand 3, single buffered']
    #allocation10 [shape = 's32[1]{0}', space=sflag, size = 0x4, scoped, tag = 'scoped memory for tpu_custom_call.1']
    #allocation11 [shape = 'u8[512]{0}', space=vmem, size = 0x400, scoped, tag = 'input window, operand 4, single buffered']
    #allocation12 [shape = 'u8[512]{0}', space=vmem, size = 0x400, scoped, tag = 'input window, operand 5, single buffered']
    #allocation13 [shape = 's32[1]{0}', space=sflag, size = 0x4, scoped, tag = 'scoped memory for tpu_custom_call.1']
    #allocation14 [shape = 'u8[512]{0}', space=vmem, size = 0x400, scoped, tag = 'input window, operand 6, single buffered']
    #allocation15 [shape = 'u8[655360]{0}', space=vmem, size = 0xa0000, scoped, tag = 'input window, operand 7, single buffered']
    #allocation16 [shape = 's32[1]{0}', space=sflag, size = 0x4, scoped, tag = 'scoped memory for tpu_custom_call.1']
    #allocation17 [shape = 'u8[512]{0}', space=vmem, size = 0x400, scoped, tag = 'input window, operand 8, single buffered']
    #allocation18 [shape = 'u8[512]{0}', space=vmem, size = 0x400, scoped, tag = 'input window, operand 9, single buffered']
    #allocation19 [shape = 's32[1]{0}', space=sflag, size = 0x4, scoped, tag = 'scoped memory for tpu_custom_call.1']
    #allocation20 [shape = 'u8[512]{0}', space=vmem, size = 0x400, scoped, tag = 'input window, operand 10, single buffered']
    #allocation21 [shape = 'u8[57344]{0}', space=vmem, size = 0xe000, scoped, tag = 'output window, operand 0, single buffered']
    %16 = vsyncpa [#allocation4], 0
    %17 = vsyncpa [#allocation7], 0
    %18 = vsyncpa [#allocation10], 0
    %19 = vsyncpa [#allocation13], 0
    %20 = vsyncpa [#allocation16], 0
    %21 = vsyncpa [#allocation19], 0
    %22 = vsyncpa [#allocation5], 0
    // Predicated region
    $region2: #{tpu_custom_call.1} parent=1 // pred_check
      _
    $region3: #{tpu_custom_call.1} parent=1 // pred_check_branch
      %24 = sbr.rel (0) target = $region5
    $region4: #{tpu_custom_call.1} parent=1 // pred_region
      %s26 = ssub.s32 5376, 5376
      %27 = vsyncadd [#allocation4], %s26
      %s28 = sshll.u32 [#allocation3], 4
      %s29 = int_to_ptr.vmem [resolvable:$true] %s28
      %34 = dma.hbm_to_vmem [thread:$0]  %s0, 5376, %s29, [#allocation4], 384, 384, 24
    $region5: #{tpu_custom_call.1} parent=1 // pred_fallthru
      _
    // Predicated region
    $region6: #{tpu_custom_call.1} parent=1 // pred_check
      _
    $region7: #{tpu_custom_call.1} parent=1 // pred_check_branch
      %36 = sbr.rel (0) target = $region9
    $region8: #{tpu_custom_call.1} parent=1 // pred_region
      %s38 = ssub.s32 1792, 1792
      %39 = vsyncadd [#allocation7], %s38
      %s40 = sshll.u32 [#allocation6], 4
      %s41 = int_to_ptr.vmem [resolvable:$true] %s40
      %46 = dma.hbm_to_vmem [thread:$0]  %s1, 1792, %s41, [#allocation7], 128, 128, 8
    $region9: #{tpu_custom_call.1} parent=1 // pred_fallthru
      _
    // Predicated region
    $region10: #{tpu_custom_call.1} parent=1 // pred_check
      _
    $region11: #{tpu_custom_call.1} parent=1 // pred_check_branch
      %48 = sbr.rel (0) target = $region13
    $region12: #{tpu_custom_call.1} parent=1 // pred_region
      %s50 = ssub.s32 1792, 1792
      %51 = vsyncadd [#allocation7], %s50
      %s52 = sshll.u32 [#allocation8], 4
      %s53 = int_to_ptr.vmem [resolvable:$true] %s52
      %58 = dma.hbm_to_vmem [thread:$0]  %s2, 1792, %s53, [#allocation7], 128, 128, 8
    $region13: #{tpu_custom_call.1} parent=1 // pred_fallthru
      _
    // Predicated region
    $region14: #{tpu_custom_call.1} parent=1 // pred_check
      _
    $region15: #{tpu_custom_call.1} parent=1 // pred_check_branch
      %60 = sbr.rel (0) target = $region17
    $region16: #{tpu_custom_call.1} parent=1 // pred_region
      %s62 = ssub.s32 5120, 5120
      %63 = vsyncadd [#allocation10], %s62
      %s64 = sshll.u32 [#allocation9], 4
      %s65 = int_to_ptr.vmem [resolvable:$true] %s64
      %70 = dma.hbm_to_vmem [thread:$0]  %s3, 5120, %s65, [#allocation10], 128, 128, 8
    $region17: #{tpu_custom_call.1} parent=1 // pred_fallthru
      _
    // Predicated region
    $region18: #{tpu_custom_call.1} parent=1 // pred_check
      _
    $region19: #{tpu_custom_call.1} parent=1 // pred_check_branch
      %72 = sbr.rel (0) target = $region21
    $region20: #{tpu_custom_call.1} parent=1 // pred_region
      %s74 = ssub.s32 16, 16
      %75 = vsyncadd [#allocation10], %s74
      %s77 = sshll.u32 [#allocation11], 4
      %s78 = int_to_ptr.vmem [resolvable:$true] %s77
      %80 = dma.hbm_to_vmem [thread:$0]  %s4, 16, %s78, [#allocation10]
    $region21: #{tpu_custom_call.1} parent=1 // pred_fallthru
      _
    // Predicated region
    $region22: #{tpu_custom_call.1} parent=1 // pred_check
      _
    $region23: #{tpu_custom_call.1} parent=1 // pred_check_branch
      %82 = sbr.rel (0) target = $region25
    $region24: #{tpu_custom_call.1} parent=1 // pred_region
      %s84 = ssub.s32 16, 16
      %85 = vsyncadd [#allocation13], %s84
      %s87 = sshll.u32 [#allocation12], 4
      %s88 = int_to_ptr.vmem [resolvable:$true] %s87
      %90 = dma.hbm_to_vmem [thread:$0]  %s5, 16, %s88, [#allocation13]
    $region25: #{tpu_custom_call.1} parent=1 // pred_fallthru
      _
    // Predicated region
    $region26: #{tpu_custom_call.1} parent=1 // pred_check
      _
    $region27: #{tpu_custom_call.1} parent=1 // pred_check_branch
      %92 = sbr.rel (0) target = $region29
    $region28: #{tpu_custom_call.1} parent=1 // pred_region
      %s94 = ssub.s32 16, 16
      %95 = vsyncadd [#allocation13], %s94
      %s97 = sshll.u32 [#allocation14], 4
      %s98 = int_to_ptr.vmem [resolvable:$true] %s97
      %100 = dma.hbm_to_vmem [thread:$0]  %s6, 16, %s98, [#allocation13]
    $region29: #{tpu_custom_call.1} parent=1 // pred_fallthru
      _
    // Predicated region
    $region30: #{tpu_custom_call.1} parent=1 // pred_check
      _
    $region31: #{tpu_custom_call.1} parent=1 // pred_check_branch
      %102 = sbr.rel (0) target = $region33
    $region32: #{tpu_custom_call.1} parent=1 // pred_region
      %s104 = ssub.s32 20480, 20480
      %105 = vsyncadd [#allocation16], %s104
      %s106 = sshll.u32 [#allocation15], 4
      %s107 = int_to_ptr.vmem [resolvable:$true] %s106
      %112 = dma.hbm_to_vmem [thread:$0]  %s7, 20480, %s107, [#allocation16], 128, 128, 8
    $region33: #{tpu_custom_call.1} parent=1 // pred_fallthru
      _
    // Predicated region
    $region34: #{tpu_custom_call.1} parent=1 // pred_check
      _
    $region35: #{tpu_custom_call.1} parent=1 // pred_check_branch
      %114 = sbr.rel (0) target = $region37
    $region36: #{tpu_custom_call.1} parent=1 // pred_region
      %s116 = ssub.s32 16, 16
      %117 = vsyncadd [#allocation16], %s116
      %s119 = sshll.u32 [#allocation17], 4
      %s120 = int_to_ptr.vmem [resolvable:$true] %s119
      %122 = dma.hbm_to_vmem [thread:$0]  %s8, 16, %s120, [#allocation16]
    $region37: #{tpu_custom_call.1} parent=1 // pred_fallthru
      _
    // Predicated region
    $region38: #{tpu_custom_call.1} parent=1 // pred_check
      _
    $region39: #{tpu_custom_call.1} parent=1 // pred_check_branch
      %124 = sbr.rel (0) target = $region41
    $region40: #{tpu_custom_call.1} parent=1 // pred_region
      %s126 = ssub.s32 16, 16
      %127 = vsyncadd [#allocation19], %s126
      %s129 = sshll.u32 [#allocation18], 4
      %s130 = int_to_ptr.vmem [resolvable:$true] %s129
      %132 = dma.hbm_to_vmem [thread:$0]  %s9, 16, %s130, [#allocation19]
    $region41: #{tpu_custom_call.1} parent=1 // pred_fallthru
      _
    // Predicated region
    $region42: #{tpu_custom_call.1} parent=1 // pred_check
      _
    $region43: #{tpu_custom_call.1} parent=1 // pred_check_branch
      %134 = sbr.rel (0) target = $region45
    $region44: #{tpu_custom_call.1} parent=1 // pred_region
      %s136 = ssub.s32 16, 16
      %137 = vsyncadd [#allocation19], %s136
      %s139 = sshll.u32 [#allocation20], 4
      %s140 = int_to_ptr.vmem [resolvable:$true] %s139
      %142 = dma.hbm_to_vmem [thread:$0]  %s10, 16, %s140, [#allocation19]
    $region45: #{tpu_custom_call.1} parent=1 // pred_fallthru
      _
    // Predicated region
    $region46: #{tpu_custom_call.1} parent=1 // pred_check
      _
    $region47: #{tpu_custom_call.1} parent=1 // pred_check_branch
      %144 = sbr.rel (0) target = $region49
    $region48: #{tpu_custom_call.1} parent=1 // pred_region
      %145 = dma.done [#allocation4], 5376
    $region49: #{tpu_custom_call.1} parent=1 // pred_fallthru
      _
    // Predicated region
    $region50: #{tpu_custom_call.1} parent=1 // pred_check
      _
    $region51: #{tpu_custom_call.1} parent=1 // pred_check_branch
      %147 = sbr.rel (0) target = $region53
    $region52: #{tpu_custom_call.1} parent=1 // pred_region
      %148 = dma.done [#allocation7], 1792
    $region53: #{tpu_custom_call.1} parent=1 // pred_fallthru
      _
    // Predicated region
    $region54: #{tpu_custom_call.1} parent=1 // pred_check
      _
    $region55: #{tpu_custom_call.1} parent=1 // pred_check_branch
      %150 = sbr.rel (0) target = $region57
    $region56: #{tpu_custom_call.1} parent=1 // pred_region
      %151 = dma.done [#allocation7], 1792
    $region57: #{tpu_custom_call.1} parent=1 // pred_fallthru
      _
    // Predicated region
    $region58: #{tpu_custom_call.1} parent=1 // pred_check
      _
    $region59: #{tpu_custom_call.1} parent=1 // pred_check_branch
      %153 = sbr.rel (0) target = $region61
    $region60: #{tpu_custom_call.1} parent=1 // pred_region
      %154 = dma.done [#allocation10], 5120
    $region61: #{tpu_custom_call.1} parent=1 // pred_fallthru
      _
    // Predicated region
    $region62: #{tpu_custom_call.1} parent=1 // pred_check
      _
    $region63: #{tpu_custom_call.1} parent=1 // pred_check_branch
      %156 = sbr.rel (0) target = $region65
    $region64: #{tpu_custom_call.1} parent=1 // pred_region
      %157 = dma.done [#allocation10], 16
    $region65: #{tpu_custom_call.1} parent=1 // pred_fallthru
      _
    // Predicated region
    $region66: #{tpu_custom_call.1} parent=1 // pred_check
      _
    $region67: #{tpu_custom_call.1} parent=1 // pred_check_branch
      %159 = sbr.rel (0) target = $region69
    $region68: #{tpu_custom_call.1} parent=1 // pred_region
      %160 = dma.done [#allocation13], 16
    $region69: #{tpu_custom_call.1} parent=1 // pred_fallthru
      _
    // Predicated region
    $region70: #{tpu_custom_call.1} parent=1 // pred_check
      _
    $region71: #{tpu_custom_call.1} parent=1 // pred_check_branch
      %162 = sbr.rel (0) target = $region73
    $region72: #{tpu_custom_call.1} parent=1 // pred_region
      %163 = dma.done [#allocation13], 16
    $region73: #{tpu_custom_call.1} parent=1 // pred_fallthru
      _
    // Predicated region
    $region74: #{tpu_custom_call.1} parent=1 // pred_check
      _
    $region75: #{tpu_custom_call.1} parent=1 // pred_check_branch
      %165 = sbr.rel (0) target = $region77
    $region76: #{tpu_custom_call.1} parent=1 // pred_region
      %166 = dma.done [#allocation16], 20480
    $region77: #{tpu_custom_call.1} parent=1 // pred_fallthru
      _
    // Predicated region
    $region78: #{tpu_custom_call.1} parent=1 // pred_check
      _
    $region79: #{tpu_custom_call.1} parent=1 // pred_check_branch
      %168 = sbr.rel (0) target = $region81
    $region80: #{tpu_custom_call.1} parent=1 // pred_region
      %169 = dma.done [#allocation16], 16
    $region81: #{tpu_custom_call.1} parent=1 // pred_fallthru
      _
    // Predicated region
    $region82: #{tpu_custom_call.1} parent=1 // pred_check
      _
    $region83: #{tpu_custom_call.1} parent=1 // pred_check_branch
      %171 = sbr.rel (0) target = $region85
    $region84: #{tpu_custom_call.1} parent=1 // pred_region
      %172 = dma.done [#allocation19], 16
    $region85: #{tpu_custom_call.1} parent=1 // pred_fallthru
      _
    // Predicated region
    $region86: #{tpu_custom_call.1} parent=1 // pred_check
      _
    $region87: #{tpu_custom_call.1} parent=1 // pred_check_branch
      %174 = sbr.rel (0) target = $region89
    $region88: #{tpu_custom_call.1} parent=1 // pred_region
      %175 = dma.done [#allocation19], 16
    $region89: #{tpu_custom_call.1} parent=1 // pred_fallthru
      _
    %v176 = vld [vmem:[#allocation3] sm:$0xff]
    %v177 = vld [vmem:[#allocation3 + $0x8] sm:$0xff]
    %v178 = vld [vmem:[#allocation3 + $0x10] sm:$0xff]
    %v179 = vld [vmem:[#allocation3 + $0x18] sm:$0xff]
    %v180 = vld [vmem:[#allocation3 + $0x20] sm:$0xff]
    %v181 = vld [vmem:[#allocation3 + $0x28] sm:$0xff]
    %v182 = vld [vmem:[#allocation3 + $0x30] sm:$0xff]
    %v183 = vld [vmem:[#allocation3 + $0x38] sm:$0xff]
    %v184 = vld [vmem:[#allocation3 + $0x40] sm:$0xff]
    %v185 = vld [vmem:[#allocation3 + $0x48] sm:$0xff]
    %v186 = vld [vmem:[#allocation3 + $0x50] sm:$0xff]
    %v187 = vld [vmem:[#allocation3 + $0x58] sm:$0xff]
    %v188 = vld [vmem:[#allocation3 + $0x60] sm:$0xff]
    %v189 = vld [vmem:[#allocation3 + $0x68] sm:$0xff]
    %v190 = vld [vmem:[#allocation3 + $0x70] sm:$0xff]
    %v191 = vld [vmem:[#allocation3 + $0x78] sm:$0xff]
    %v192 = vld [vmem:[#allocation3 + $0x80] sm:$0xff]
    %v193 = vld [vmem:[#allocation3 + $0x88] sm:$0xff]
    %v194 = vld [vmem:[#allocation3 + $0x90] sm:$0xff]
    %v195 = vld [vmem:[#allocation3 + $0x98] sm:$0xff]
    %v196 = vld [vmem:[#allocation3 + $0xa0] sm:$0xff]
    %v197 = vld [vmem:[#allocation3 + $0xa8] sm:$0xff]
    %v198 = vld [vmem:[#allocation3 + $0xb0] sm:$0xff]
    %v199 = vld [vmem:[#allocation3 + $0xb8] sm:$0xff]
    %v200 = vld [vmem:[#allocation3 + $0xc0] sm:$0xff]
    %v201 = vld [vmem:[#allocation3 + $0xc8] sm:$0xff]
    %v202 = vld [vmem:[#allocation3 + $0xd0] sm:$0xff]
    %v203 = vld [vmem:[#allocation3 + $0xd8] sm:$0xff]
    %v204 = vld [vmem:[#allocation3 + $0xe0] sm:$0xff]
    %v205 = vld [vmem:[#allocation3 + $0xe8] sm:$0xff]
    %v206 = vld [vmem:[#allocation3 + $0xf0] sm:$0xff]
    %v207 = vld [vmem:[#allocation3 + $0xf8] sm:$0xff]
    %v208 = vld [vmem:[#allocation3 + $0x100] sm:$0xff]
    %v209 = vld [vmem:[#allocation3 + $0x108] sm:$0xff]
    %v210 = vld [vmem:[#allocation3 + $0x110] sm:$0xff]
    %v211 = vld [vmem:[#allocation3 + $0x118] sm:$0xff]
    %v212 = vld [vmem:[#allocation3 + $0x120] sm:$0xff]
    %v213 = vld [vmem:[#allocation3 + $0x128] sm:$0xff]
    %v214 = vld [vmem:[#allocation3 + $0x130] sm:$0xff]
    %v215 = vld [vmem:[#allocation3 + $0x138] sm:$0xff]
    %v216 = vld [vmem:[#allocation3 + $0x140] sm:$0xff]
    %v217 = vld [vmem:[#allocation3 + $0x148] sm:$0xff]
    %v218 = vld [vmem:[#allocation9] sm:$0xff]
    %v219 = vld [vmem:[#allocation9 + $0x8] sm:$0xff]
    %v220 = vld [vmem:[#allocation9 + $0x10] sm:$0xff]
    %v221 = vld [vmem:[#allocation9 + $0x18] sm:$0xff]
    %v222 = vld [vmem:[#allocation9 + $0x20] sm:$0xff]
    %v223 = vld [vmem:[#allocation9 + $0x28] sm:$0xff]
    %v224 = vld [vmem:[#allocation9 + $0x30] sm:$0xff]
    %v225 = vld [vmem:[#allocation9 + $0x38] sm:$0xff]
    %v226 = vld [vmem:[#allocation9 + $0x40] sm:$0xff]
    %v227 = vld [vmem:[#allocation9 + $0x48] sm:$0xff]
    %v228 = vld [vmem:[#allocation9 + $0x50] sm:$0xff]
    %v229 = vld [vmem:[#allocation9 + $0x58] sm:$0xff]
    %v230 = vld [vmem:[#allocation9 + $0x60] sm:$0xff]
    %v231 = vld [vmem:[#allocation9 + $0x68] sm:$0xff]
    %v232 = vld [vmem:[#allocation9 + $0x70] sm:$0xff]
    %v233 = vld [vmem:[#allocation9 + $0x78] sm:$0xff]
    %v234 = vld [vmem:[#allocation9 + $0x80] sm:$0xff]
    %v235 = vld [vmem:[#allocation9 + $0x88] sm:$0xff]
    %v236 = vld [vmem:[#allocation9 + $0x90] sm:$0xff]
    %v237 = vld [vmem:[#allocation9 + $0x98] sm:$0xff]
    %v238 = vld [vmem:[#allocation9 + $0xa0] sm:$0xff]
    %v239 = vld [vmem:[#allocation9 + $0xa8] sm:$0xff]
    %v240 = vld [vmem:[#allocation9 + $0xb0] sm:$0xff]
    %v241 = vld [vmem:[#allocation9 + $0xb8] sm:$0xff]
    %v242 = vld [vmem:[#allocation9 + $0xc0] sm:$0xff]
    %v243 = vld [vmem:[#allocation9 + $0xc8] sm:$0xff]
    %v244 = vld [vmem:[#allocation9 + $0xd0] sm:$0xff]
    %v245 = vld [vmem:[#allocation9 + $0xd8] sm:$0xff]
    %v246 = vld [vmem:[#allocation9 + $0xe0] sm:$0xff]
    %v247 = vld [vmem:[#allocation9 + $0xe8] sm:$0xff]
    %v248 = vld [vmem:[#allocation9 + $0xf0] sm:$0xff]
    %v249 = vld [vmem:[#allocation9 + $0xf8] sm:$0xff]
    %v250 = vld [vmem:[#allocation9 + $0x100] sm:$0xff]
    %v251 = vld [vmem:[#allocation9 + $0x108] sm:$0xff]
    %v252 = vld [vmem:[#allocation9 + $0x110] sm:$0xff]
    %v253 = vld [vmem:[#allocation9 + $0x118] sm:$0xff]
    %v254 = vld [vmem:[#allocation9 + $0x120] sm:$0xff]
    %v255 = vld [vmem:[#allocation9 + $0x128] sm:$0xff]
    %v256 = vld [vmem:[#allocation9 + $0x130] sm:$0xff]
    %v257 = vld [vmem:[#allocation9 + $0x138] sm:$0xff]
    %v258 = vld [vmem:[#allocation11] sm:$0x1]
    %v260 = vlaneseq
    %v261 = vshrl.u32 %v260, 7
    %v262 = vsub.s32 0, %v261
    %v263 = vrot.slane %v258, %v262
    %vm265 = vcmask 523264
    %v267 = vsel %vm265, %v178, 0
    %v270 = vsel %vm265, %v181, 0
    %v273 = vsel %vm265, %v184, 0
    %v276 = vsel %vm265, %v187, 0
    %v279 = vsel %vm265, %v190, 0
    %v282 = vsel %vm265, %v193, 0
    %v285 = vsel %vm265, %v196, 0
    %v288 = vsel %vm265, %v199, 0
    %v291 = vsel %vm265, %v202, 0
    %v294 = vsel %vm265, %v205, 0
    %v297 = vsel %vm265, %v208, 0
    %v300 = vsel %vm265, %v211, 0
    %v303 = vsel %vm265, %v214, 0
    %v306 = vsel %vm265, %v217, 0
    %308 = vmatprep.subr.mxu0 0.0
    %309 = vmatpush1.msra.mxu0 %v218
    %310 = vmatprep.subr.mxu0 0.0
    %311 = vmatpush1.msra.mxu0 %v219
    %312 = vmatprep.subr.mxu0 0.0
    %313 = vmatpush1.msra.mxu0 %v220
    %314 = vmatprep.subr.mxu0 0.0
    %315 = vmatpush1.msra.mxu0 %v221
    %316 = vmatprep.subr.mxu0 0.0
    %317 = vmatpush1.msra.mxu0 %v222
    %318 = vmatprep.subr.mxu0 0.0
    %319 = vmatpush1.msra.mxu0 %v223
    %320 = vmatprep.subr.mxu0 0.0
    %321 = vmatpush1.msra.mxu0 %v224
    %322 = vmatprep.subr.mxu0 0.0
    %323 = vmatpush1.msra.mxu0 %v225
    %324 = vmatprep.subr.mxu0 0.0
    %325 = vmatpush1.msra.mxu0 %v226
    %326 = vmatprep.subr.mxu0 0.0
    %327 = vmatpush1.msra.mxu0 %v227
    %328 = vmatprep.subr.mxu0 0.0
    %329 = vmatpush1.msra.mxu0 %v228
    %330 = vmatprep.subr.mxu0 0.0
    %331 = vmatpush1.msra.mxu0 %v229
    %332 = vmatprep.subr.mxu0 0.0
    %333 = vmatpush1.msra.mxu0 %v230
    %334 = vmatprep.subr.mxu0 0.0
    %335 = vmatpush1.msra.mxu0 %v231
    %336 = vmatprep.subr.mxu0 0.0
    %337 = vmatpush1.msra.mxu0 %v232
    %338 = vmatprep.subr.mxu0 0.0
    %339 = vmatpush1.msra.mxu0 %v233
    %340 = vmatprep.subr.mxu0 0.0
    %341 = vmatpush1.msra.mxu0 %v234
    %342 = vmatprep.subr.mxu0 0.0
    %343 = vmatpush1.msra.mxu0 %v235
    %344 = vmatprep.subr.mxu0 0.0
    %345 = vmatpush1.msra.mxu0 %v236
    %346 = vmatprep.subr.mxu0 0.0
    %347 = vmatpush1.msra.mxu0 %v237
    %348 = vmatprep.subr.mxu0 0.0
    %349 = vmatpush1.msra.mxu0 %v238
    %350 = vmatprep.subr.mxu0 0.0
    %351 = vmatpush1.msra.mxu0 %v239
    %352 = vmatprep.subr.mxu0 0.0
    %353 = vmatpush1.msra.mxu0 %v240
    %354 = vmatprep.subr.mxu0 0.0
    %355 = vmatpush1.msra.mxu0 %v241
    %356 = vmatprep.subr.mxu0 0.0
    %357 = vmatpush1.msra.mxu0 %v242
    %358 = vmatprep.subr.mxu0 0.0
    %359 = vmatpush1.msra.mxu0 %v243
    %360 = vmatprep.subr.mxu0 0.0
    %361 = vmatpush1.msra.mxu0 %v244
    %362 = vmatprep.subr.mxu0 0.0
    %363 = vmatpush1.msra.mxu0 %v245
    %364 = vmatprep.subr.mxu0 0.0
    %365 = vmatpush1.msra.mxu0 %v246
    %366 = vmatprep.subr.mxu0 0.0
    %367 = vmatpush1.msra.mxu0 %v247
    %368 = vmatprep.subr.mxu0 0.0
    %369 = vmatpush1.msra.mxu0 %v248
    %370 = vmatprep.subr.mxu0 0.0
    %371 = vmatpush1.msra.mxu0 %v249
    %372 = vmatprep.mubr.f32.mxu0 %v177
    %373 = vmatmul.mubr.f32.gmra.mrb[0].mxu0 %v176
    %v374 = vpop.f32.mrb[0].mxu0
    %v375 = vadd.f32 %v263, %v374
    %v376 = vpop.f32.mrb[0].mxu0
    %377 = vmatprep.mubr.f32.mxu0 %v180
    %378 = vmatmul.mubr.f32.gmra.mrb[0].mxu0 %v179
    %v379 = vpop.f32.mrb[0].mxu0
    %v380 = vadd.f32 %v263, %v379
    %v381 = vpop.f32.mrb[0].mxu0
    %382 = vmatprep.mubr.f32.mxu0 %v183
    %383 = vmatmul.mubr.f32.gmra.mrb[0].mxu0 %v182
    %v384 = vpop.f32.mrb[0].mxu0
    %v385 = vadd.f32 %v263, %v384
    %v386 = vpop.f32.mrb[0].mxu0
    %387 = vmatprep.mubr.f32.mxu0 %v186
    %388 = vmatmul.mubr.f32.gmra.mrb[0].mxu0 %v185
    %v389 = vpop.f32.mrb[0].mxu0
    %v390 = vadd.f32 %v263, %v389
    %v391 = vpop.f32.mrb[0].mxu0
    %392 = vmatprep.mubr.f32.mxu0 %v189
    %393 = vmatmul.mubr.f32.gmra.mrb[0].mxu0 %v188
    %v394 = vpop.f32.mrb[0].mxu0
    %v395 = vadd.f32 %v263, %v394
    %v396 = vpop.f32.mrb[0].mxu0
    %397 = vmatprep.mubr.f32.mxu0 %v192
    %398 = vmatmul.mubr.f32.gmra.mrb[0].mxu0 %v191
    %v399 = vpop.f32.mrb[0].mxu0
    %v400 = vadd.f32 %v263, %v399
    %v401 = vpop.f32.mrb[0].mxu0
    %402 = vmatprep.mubr.f32.mxu0 %v195
    %403 = vmatmul.mubr.f32.gmra.mrb[0].mxu0 %v194
    %v404 = vpop.f32.mrb[0].mxu0
    %v405 = vadd.f32 %v263, %v404
    %v406 = vpop.f32.mrb[0].mxu0
    %407 = vmatprep.mubr.f32.mxu0 %v198
    %408 = vmatmul.mubr.f32.gmra.mrb[0].mxu0 %v197
    %v409 = vpop.f32.mrb[0].mxu0
    %v410 = vadd.f32 %v263, %v409
    %v411 = vpop.f32.mrb[0].mxu0
    %412 = vmatprep.mubr.f32.mxu0 %v201
    %413 = vmatmul.mubr.f32.gmra.mrb[0].mxu0 %v200
    %v414 = vpop.f32.mrb[0].mxu0
    %v415 = vadd.f32 %v263, %v414
    %v416 = vpop.f32.mrb[0].mxu0
    %417 = vmatprep.mubr.f32.mxu0 %v204
    %418 = vmatmul.mubr.f32.gmra.mrb[0].mxu0 %v203
    %v419 = vpop.f32.mrb[0].mxu0
    %v420 = vadd.f32 %v263, %v419
    %v421 = vpop.f32.mrb[0].mxu0
    %422 = vmatprep.mubr.f32.mxu0 %v207
    %423 = vmatmul.mubr.f32.gmra.mrb[0].mxu0 %v206
    %v424 = vpop.f32.mrb[0].mxu0
    %v425 = vadd.f32 %v263, %v424
    %v426 = vpop.f32.mrb[0].mxu0
    %427 = vmatprep.mubr.f32.mxu0 %v210
    %428 = vmatmul.mubr.f32.gmra.mrb[0].mxu0 %v209
    %v429 = vpop.f32.mrb[0].mxu0
    %v430 = vadd.f32 %v263, %v429
    %v431 = vpop.f32.mrb[0].mxu0
    %432 = vmatprep.mubr.f32.mxu0 %v213
    %433 = vmatmul.mubr.f32.gmra.mrb[0].mxu0 %v212
    %v434 = vpop.f32.mrb[0].mxu0
    %v435 = vadd.f32 %v263, %v434
    %v436 = vpop.f32.mrb[0].mxu0
    %437 = vmatprep.mubr.f32.mxu0 %v216
    %438 = vmatmul.mubr.f32.gmra.mrb[0].mxu0 %v215
    %v439 = vpop.f32.mrb[0].mxu0
    %v440 = vadd.f32 %v263, %v439
    %v441 = vpop.f32.mrb[0].mxu0
    %442 = vdwg.mxu0
    %443 = vmatprep.subr.mxu0 0.0
    %444 = vmatpush1.msra.mxu0 %v250
    %445 = vmatprep.subr.mxu0 0.0
    %446 = vmatpush1.msra.mxu0 %v251
    %447 = vmatprep.subr.mxu0 0.0
    %448 = vmatpush1.msra.mxu0 %v252
    %449 = vmatprep.subr.mxu0 0.0
    %450 = vmatpush1.msra.mxu0 %v253
    %451 = vmatprep.subr.mxu0 0.0
    %452 = vmatpush1.msra.mxu0 %v254
    %453 = vmatprep.subr.mxu0 0.0
    %454 = vmatpush1.msra.mxu0 %v255
    %455 = vmatprep.subr.mxu0 0.0
    %456 = vmatpush1.msra.mxu0 %v256
    %457 = vmatprep.subr.mxu0 0.0
    %458 = vmatpush1.msra.mxu0 %v257
    %459 = vmatprep.subr.mxu0 0.0
    %460 = vmatpush1.msra.mxu0 0.0
    %461 = vmatprep.subr.mxu0 0.0
    %462 = vmatpush1.msra.mxu0 0.0
    %463 = vmatprep.subr.mxu0 0.0
    %464 = vmatpush1.msra.mxu0 0.0
    %465 = vmatprep.subr.mxu0 0.0
    %466 = vmatpush1.msra.mxu0 0.0
    %467 = vmatprep.subr.mxu0 0.0
    %468 = vmatpush1.msra.mxu0 0.0
    %469 = vmatprep.subr.mxu0 0.0
    %470 = vmatpush1.msra.mxu0 0.0
    %471 = vmatprep.subr.mxu0 0.0
    %472 = vmatpush1.msra.mxu0 0.0
    %473 = vmatprep.subr.mxu0 0.0
    %474 = vmatpush1.msra.mxu0 0.0
    %475 = vmatprep.subr.mxu0 0.0
    %476 = vmatpush1.msra.mxu0 0.0
    %477 = vmatprep.subr.mxu0 0.0
    %478 = vmatpush1.msra.mxu0 0.0
    %479 = vmatprep.subr.mxu0 0.0
    %480 = vmatpush1.msra.mxu0 0.0
    %481 = vmatprep.subr.mxu0 0.0
    %482 = vmatpush1.msra.mxu0 0.0
    %483 = vmatprep.subr.mxu0 0.0
    %484 = vmatpush1.msra.mxu0 0.0
    %485 = vmatprep.subr.mxu0 0.0
    %486 = vmatpush1.msra.mxu0 0.0
    %487 = vmatprep.subr.mxu0 0.0
    %488 = vmatpush1.msra.mxu0 0.0
    %489 = vmatprep.subr.mxu0 0.0
    %490 = vmatpush1.msra.mxu0 0.0
    %491 = vmatprep.subr.mxu0 0.0
    %492 = vmatpush1.msra.mxu0 0.0
    %493 = vmatprep.subr.mxu0 0.0
    %494 = vmatpush1.msra.mxu0 0.0
    %495 = vmatprep.subr.mxu0 0.0
    %496 = vmatpush1.msra.mxu0 0.0
    %497 = vmatprep.subr.mxu0 0.0
    %498 = vmatpush1.msra.mxu0 0.0
    %499 = vmatprep.subr.mxu0 0.0
    %500 = vmatpush1.msra.mxu0 0.0
    %501 = vmatprep.subr.mxu0 0.0
    %502 = vmatpush1.msra.mxu0 0.0
    %503 = vmatprep.subr.mxu0 0.0
    %504 = vmatpush1.msra.mxu0 0.0
    %505 = vmatprep.subr.mxu0 0.0
    %506 = vmatpush1.msra.mxu0 0.0
    %507 = vmatprep.mubr.f32.mxu0 0.0
    %508 = vmatmul.mubr.f32.gmra.mrb[0].mxu0 %v267
    %v509 = vpop.f32.mrb[0].mxu0
    %v510 = vadd.f32 %v375, %v509
    %v511 = vpop.f32.mrb[0].mxu0
    %512 = vmatprep.mubr.f32.mxu0 0.0
    %513 = vmatmul.mubr.f32.gmra.mrb[0].mxu0 %v270
    %v514 = vpop.f32.mrb[0].mxu0
    %v515 = vadd.f32 %v380, %v514
    %v516 = vpop.f32.mrb[0].mxu0
    %517 = vmatprep.mubr.f32.mxu0 0.0
    %518 = vmatmul.mubr.f32.gmra.mrb[0].mxu0 %v273
    %v519 = vpop.f32.mrb[0].mxu0
    %v520 = vadd.f32 %v385, %v519
    %v521 = vpop.f32.mrb[0].mxu0
    %522 = vmatprep.mubr.f32.mxu0 0.0
    %523 = vmatmul.mubr.f32.gmra.mrb[0].mxu0 %v276
    %v524 = vpop.f32.mrb[0].mxu0
    %v525 = vadd.f32 %v390, %v524
    %v526 = vpop.f32.mrb[0].mxu0
    %527 = vmatprep.mubr.f32.mxu0 0.0
    %528 = vmatmul.mubr.f32.gmra.mrb[0].mxu0 %v279
    %v529 = vpop.f32.mrb[0].mxu0
    %v530 = vadd.f32 %v395, %v529
    %v531 = vpop.f32.mrb[0].mxu0
    %532 = vmatprep.mubr.f32.mxu0 0.0
    %533 = vmatmul.mubr.f32.gmra.mrb[0].mxu0 %v282
    %v534 = vpop.f32.mrb[0].mxu0
    %v535 = vadd.f32 %v400, %v534
    %v536 = vpop.f32.mrb[0].mxu0
    %537 = vmatprep.mubr.f32.mxu0 0.0
    %538 = vmatmul.mubr.f32.gmra.mrb[0].mxu0 %v285
    %v539 = vpop.f32.mrb[0].mxu0
    %v540 = vadd.f32 %v405, %v539
    %v541 = vpop.f32.mrb[0].mxu0
    %542 = vmatprep.mubr.f32.mxu0 0.0
    %543 = vmatmul.mubr.f32.gmra.mrb[0].mxu0 %v288
    %v544 = vpop.f32.mrb[0].mxu0
    %v545 = vadd.f32 %v410, %v544
    %v546 = vpop.f32.mrb[0].mxu0
    %547 = vmatprep.mubr.f32.mxu0 0.0
    %548 = vmatmul.mubr.f32.gmra.mrb[0].mxu0 %v291
    %v549 = vpop.f32.mrb[0].mxu0
    %v550 = vadd.f32 %v415, %v549
    %v551 = vpop.f32.mrb[0].mxu0
    %552 = vmatprep.mubr.f32.mxu0 0.0
    %553 = vmatmul.mubr.f32.gmra.mrb[0].mxu0 %v294
    %v554 = vpop.f32.mrb[0].mxu0
    %v555 = vadd.f32 %v420, %v554
    %v556 = vpop.f32.mrb[0].mxu0
    %557 = vmatprep.mubr.f32.mxu0 0.0
    %558 = vmatmul.mubr.f32.gmra.mrb[0].mxu0 %v297
    %v559 = vpop.f32.mrb[0].mxu0
    %v560 = vadd.f32 %v425, %v559
    %v561 = vpop.f32.mrb[0].mxu0
    %562 = vmatprep.mubr.f32.mxu0 0.0
    %563 = vmatmul.mubr.f32.gmra.mrb[0].mxu0 %v300
    %v564 = vpop.f32.mrb[0].mxu0
    %v565 = vadd.f32 %v430, %v564
    %v566 = vpop.f32.mrb[0].mxu0
    %567 = vmatprep.mubr.f32.mxu0 0.0
    %568 = vmatmul.mubr.f32.gmra.mrb[0].mxu0 %v303
    %v569 = vpop.f32.mrb[0].mxu0
    %v570 = vadd.f32 %v435, %v569
    %v571 = vpop.f32.mrb[0].mxu0
    %572 = vmatprep.mubr.f32.mxu0 0.0
    %573 = vmatmul.mubr.f32.gmra.mrb[0].mxu0 %v306
    %v574 = vpop.f32.mrb[0].mxu0
    %v575 = vadd.f32 %v440, %v574
    %v576 = vpop.f32.mrb[0].mxu0
    %577 = vdwg.mxu0
    %v578 = vld [vmem:[#allocation6] sm:$0xff]
    %v579 = vld [vmem:[#allocation6 + $0x8] sm:$0xff]
    %v580 = vld [vmem:[#allocation6 + $0x10] sm:$0xff]
    %v581 = vld [vmem:[#allocation6 + $0x18] sm:$0xff]
    %v582 = vld [vmem:[#allocation6 + $0x20] sm:$0xff]
    %v583 = vld [vmem:[#allocation6 + $0x28] sm:$0xff]
    %v584 = vld [vmem:[#allocation6 + $0x30] sm:$0xff]
    %v585 = vld [vmem:[#allocation6 + $0x38] sm:$0xff]
    %v586 = vld [vmem:[#allocation6 + $0x40] sm:$0xff]
    %v587 = vld [vmem:[#allocation6 + $0x48] sm:$0xff]
    %v588 = vld [vmem:[#allocation6 + $0x50] sm:$0xff]
    %v589 = vld [vmem:[#allocation6 + $0x58] sm:$0xff]
    %v590 = vld [vmem:[#allocation6 + $0x60] sm:$0xff]
    %v591 = vld [vmem:[#allocation6 + $0x68] sm:$0xff]
    %593 = vset.pattern.permute.xlu0 0
    %594 = vperm.xlu0 %593, %v578
    %v595 = vpop.permute.xlu0 %594
    %598 = vset.pattern.permute.xlu0 0
    %599 = vperm.xlu0 %598, %v579
    %v600 = vpop.permute.xlu0 %599
    %603 = vset.pattern.permute.xlu0 0
    %604 = vperm.xlu0 %603, %v580
    %v605 = vpop.permute.xlu0 %604
    %608 = vset.pattern.permute.xlu0 0
    %609 = vperm.xlu0 %608, %v581
    %v610 = vpop.permute.xlu0 %609
    %613 = vset.pattern.permute.xlu0 0
    %614 = vperm.xlu0 %613, %v582
    %v615 = vpop.permute.xlu0 %614
    %618 = vset.pattern.permute.xlu0 0
    %619 = vperm.xlu0 %618, %v583
    %v620 = vpop.permute.xlu0 %619
    %623 = vset.pattern.permute.xlu0 0
    %624 = vperm.xlu0 %623, %v584
    %v625 = vpop.permute.xlu0 %624
    %628 = vset.pattern.permute.xlu0 0
    %629 = vperm.xlu0 %628, %v585
    %v630 = vpop.permute.xlu0 %629
    %633 = vset.pattern.permute.xlu0 0
    %634 = vperm.xlu0 %633, %v586
    %v635 = vpop.permute.xlu0 %634
    %638 = vset.pattern.permute.xlu0 0
    %639 = vperm.xlu0 %638, %v587
    %v640 = vpop.permute.xlu0 %639
    %643 = vset.pattern.permute.xlu0 0
    %644 = vperm.xlu0 %643, %v588
    %v645 = vpop.permute.xlu0 %644
    %648 = vset.pattern.permute.xlu0 0
    %649 = vperm.xlu0 %648, %v589
    %v650 = vpop.permute.xlu0 %649
    %653 = vset.pattern.permute.xlu0 0
    %654 = vperm.xlu0 %653, %v590
    %v655 = vpop.permute.xlu0 %654
    %658 = vset.pattern.permute.xlu0 0
    %659 = vperm.xlu0 %658, %v591
    %v660 = vpop.permute.xlu0 %659
    %v662 = vmul.f32 %v510, %v595
    %v663 = vmul.f32 %v515, %v600
    %v664 = vmul.f32 %v520, %v605
    %v665 = vmul.f32 %v525, %v610
    %v666 = vmul.f32 %v530, %v615
    %v667 = vmul.f32 %v535, %v620
    %v668 = vmul.f32 %v540, %v625
    %v669 = vmul.f32 %v545, %v630
    %v670 = vmul.f32 %v550, %v635
    %v671 = vmul.f32 %v555, %v640
    %v672 = vmul.f32 %v560, %v645
    %v673 = vmul.f32 %v565, %v650
    %v674 = vmul.f32 %v570, %v655
    %v675 = vmul.f32 %v575, %v660
    %v676 = vadd.f32 %v662, %v663
    %v677 = vadd.f32 %v676, %v664
    %v678 = vadd.f32 %v677, %v665
    %v679 = vadd.f32 %v678, %v666
    %v680 = vadd.f32 %v679, %v667
    %v681 = vadd.f32 %v680, %v668
    %v682 = vadd.f32 %v681, %v669
    %v683 = vadd.f32 %v682, %v670
    %v684 = vadd.f32 %v683, %v671
    %v685 = vadd.f32 %v684, %v672
    %v686 = vadd.f32 %v685, %v673
    %v687 = vadd.f32 %v686, %v674
    %v688 = vadd.f32 %v687, %v675
    %v689 = vrot.slane %v688, 4
    %v690 = vadd.f32 %v688, %v689
    %v691 = vrot.slane %v690, 2
    %v692 = vadd.f32 %v690, %v691
    %v693 = vrot.slane %v692, 1
    %v694 = vadd.f32 %v692, %v693
    %v695 = vmul.f32 %v694, 0.011627907
    %v696 = vsub.f32 %v510, %v695
    %v697 = vsub.f32 %v515, %v695
    %v698 = vsub.f32 %v520, %v695
    %v699 = vsub.f32 %v525, %v695
    %v700 = vsub.f32 %v530, %v695
    %v701 = vsub.f32 %v535, %v695
    %v702 = vsub.f32 %v540, %v695
    %v703 = vsub.f32 %v545, %v695
    %v704 = vsub.f32 %v550, %v695
    %v705 = vsub.f32 %v555, %v695
    %v706 = vsub.f32 %v560, %v695
    %v707 = vsub.f32 %v565, %v695
    %v708 = vsub.f32 %v570, %v695
    %v709 = vsub.f32 %v575, %v695
    %v710 = vmul.f32 %v696, %v595
    %v711 = vmul.f32 %v697, %v600
    %v712 = vmul.f32 %v698, %v605
    %v713 = vmul.f32 %v699, %v610
    %v714 = vmul.f32 %v700, %v615
    %v715 = vmul.f32 %v701, %v620
    %v716 = vmul.f32 %v702, %v625
    %v717 = vmul.f32 %v703, %v630
    %v718 = vmul.f32 %v704, %v635
    %v719 = vmul.f32 %v705, %v640
    %v720 = vmul.f32 %v706, %v645
    %v721 = vmul.f32 %v707, %v650
    %v722 = vmul.f32 %v708, %v655
    %v723 = vmul.f32 %v709, %v660
    %v724 = vmul.f32 %v710, %v710
    %v725 = vmul.f32 %v711, %v711
    %v726 = vmul.f32 %v712, %v712
    %v727 = vmul.f32 %v713, %v713
    %v728 = vmul.f32 %v714, %v714
    %v729 = vmul.f32 %v715, %v715
    %v730 = vmul.f32 %v716, %v716
    %v731 = vmul.f32 %v717, %v717
    %v732 = vmul.f32 %v718, %v718
    %v733 = vmul.f32 %v719, %v719
    %v734 = vmul.f32 %v720, %v720
    %v735 = vmul.f32 %v721, %v721
    %v736 = vmul.f32 %v722, %v722
    %v737 = vmul.f32 %v723, %v723
    %v738 = vadd.f32 %v724, %v725
    %v739 = vadd.f32 %v738, %v726
    %v740 = vadd.f32 %v739, %v727
    %v741 = vadd.f32 %v740, %v728
    %v742 = vadd.f32 %v741, %v729
    %v743 = vadd.f32 %v742, %v730
    %v744 = vadd.f32 %v743, %v731
    %v745 = vadd.f32 %v744, %v732
    %v746 = vadd.f32 %v745, %v733
    %v747 = vadd.f32 %v746, %v734
    %v748 = vadd.f32 %v747, %v735
    %v749 = vadd.f32 %v748, %v736
    %v750 = vadd.f32 %v749, %v737
    %v751 = vrot.slane %v750, 4
    %v752 = vadd.f32 %v750, %v751
    %v753 = vrot.slane %v752, 2
    %v754 = vadd.f32 %v752, %v753
    %v755 = vrot.slane %v754, 1
    %v756 = vadd.f32 %v754, %v755
    %v757 = vmul.f32 %v756, 0.011627907
    %v758 = vadd.f32 %v757, 1e-05
    %v759 = vrsqrt.pop %v758
    %v760 = vmul.f32 %v696, %v759
    %v761 = vmul.f32 %v697, %v759
    %v762 = vmul.f32 %v698, %v759
    %v763 = vmul.f32 %v699, %v759
    %v764 = vmul.f32 %v700, %v759
    %v765 = vmul.f32 %v701, %v759
    %v766 = vmul.f32 %v702, %v759
    %v767 = vmul.f32 %v703, %v759
    %v768 = vmul.f32 %v704, %v759
    %v769 = vmul.f32 %v705, %v759
    %v770 = vmul.f32 %v706, %v759
    %v771 = vmul.f32 %v707, %v759
    %v772 = vmul.f32 %v708, %v759
    %v773 = vmul.f32 %v709, %v759
    %v774 = vld [vmem:[#allocation12] sm:$0x1]
    %v776 = vlaneseq
    %v777 = vshrl.u32 %v776, 7
    %v778 = vsub.s32 0, %v777
    %v779 = vrot.slane %v774, %v778
    %v781 = vmul.f32 %v760, %v779
    %v782 = vmul.f32 %v761, %v779
    %v783 = vmul.f32 %v762, %v779
    %v784 = vmul.f32 %v763, %v779
    %v785 = vmul.f32 %v764, %v779
    %v786 = vmul.f32 %v765, %v779
    %v787 = vmul.f32 %v766, %v779
    %v788 = vmul.f32 %v767, %v779
    %v789 = vmul.f32 %v768, %v779
    %v790 = vmul.f32 %v769, %v779
    %v791 = vmul.f32 %v770, %v779
    %v792 = vmul.f32 %v771, %v779
    %v793 = vmul.f32 %v772, %v779
    %v794 = vmul.f32 %v773, %v779
    %v795 = vld [vmem:[#allocation14] sm:$0x1]
    %v797 = vlaneseq
    %v798 = vshrl.u32 %v797, 7
    %v799 = vsub.s32 0, %v798
    %v800 = vrot.slane %v795, %v799
    %v802 = vadd.f32 %v781, %v800
    %v803 = vadd.f32 %v782, %v800
    %v804 = vadd.f32 %v783, %v800
    %v805 = vadd.f32 %v784, %v800
    %v806 = vadd.f32 %v785, %v800
    %v807 = vadd.f32 %v786, %v800
    %v808 = vadd.f32 %v787, %v800
    %v809 = vadd.f32 %v788, %v800
    %v810 = vadd.f32 %v789, %v800
    %v811 = vadd.f32 %v790, %v800
    %v812 = vadd.f32 %v791, %v800
    %v813 = vadd.f32 %v792, %v800
    %v814 = vadd.f32 %v793, %v800
    %v815 = vadd.f32 %v794, %v800
    %v816 = vmax.f32 %v802, 0.0
    %v817 = vmax.f32 %v803, 0.0
    %v818 = vmax.f32 %v804, 0.0
    %v819 = vmax.f32 %v805, 0.0
    %v820 = vmax.f32 %v806, 0.0
    %v821 = vmax.f32 %v807, 0.0
    %v822 = vmax.f32 %v808, 0.0
    %v823 = vmax.f32 %v809, 0.0
    %v824 = vmax.f32 %v810, 0.0
    %v825 = vmax.f32 %v811, 0.0
    %v826 = vmax.f32 %v812, 0.0
    %v827 = vmax.f32 %v813, 0.0
    %v828 = vmax.f32 %v814, 0.0
    %v829 = vmax.f32 %v815, 0.0
    %v830 = vmul.f32 %v816, %v595
    %v831 = vmul.f32 %v817, %v600
    %v832 = vmul.f32 %v818, %v605
    %v833 = vmul.f32 %v819, %v610
    %v834 = vmul.f32 %v820, %v615
    %v835 = vmul.f32 %v821, %v620
    %v836 = vmul.f32 %v822, %v625
    %v837 = vmul.f32 %v823, %v630
    %v838 = vmul.f32 %v824, %v635
    %v839 = vmul.f32 %v825, %v640
    %v840 = vmul.f32 %v826, %v645
    %v841 = vmul.f32 %v827, %v650
    %v842 = vmul.f32 %v828, %v655
    %v843 = vmul.f32 %v829, %v660
    %844 = vst [vmem:[#allocation2] sm:$0xff] 0.0
    %845 = vst [vmem:[#allocation2 + $0x8] sm:$0xff] %v830
    %846 = vst [vmem:[#allocation2 + $0x10] sm:$0xff] %v831
    %847 = vst [vmem:[#allocation2 + $0x18] sm:$0xff] %v832
    %848 = vst [vmem:[#allocation2 + $0x20] sm:$0xff] %v833
    %849 = vst [vmem:[#allocation2 + $0x28] sm:$0xff] %v834
    %850 = vst [vmem:[#allocation2 + $0x30] sm:$0xff] %v835
    %851 = vst [vmem:[#allocation2 + $0x38] sm:$0xff] %v836
    %852 = vst [vmem:[#allocation2 + $0x40] sm:$0xff] %v837
    %853 = vst [vmem:[#allocation2 + $0x48] sm:$0xff] %v838
    %854 = vst [vmem:[#allocation2 + $0x50] sm:$0xff] %v839
    %855 = vst [vmem:[#allocation2 + $0x58] sm:$0xff] %v840
    %856 = vst [vmem:[#allocation2 + $0x60] sm:$0xff] %v841
    %857 = vst [vmem:[#allocation2 + $0x68] sm:$0xff] %v842
    %858 = vst [vmem:[#allocation2 + $0x70] sm:$0xff] %v843
    %859 = vst [vmem:[#allocation2 + $0x78] sm:$0xff] 0.0
    %860 = vst [vmem:[#allocation2 + $0x80] sm:$0xff] 0.0
    %v861 = vld [vmem:[#allocation2 + $0x3] sm:$0xff]
    %v862 = vld [vmem:[#allocation2 + $0xb] sm:$0xff]
    %v863 = vld [vmem:[#allocation2 + $0x13] sm:$0xff]
    %v864 = vld [vmem:[#allocation2 + $0x1b] sm:$0xff]
    %v865 = vld [vmem:[#allocation2 + $0x23] sm:$0xff]
    %v866 = vld [vmem:[#allocation2 + $0x2b] sm:$0xff]
    %v867 = vld [vmem:[#allocation2 + $0x33] sm:$0xff]
    %v868 = vld [vmem:[#allocation2 + $0x3b] sm:$0xff]
    %v869 = vld [vmem:[#allocation2 + $0x43] sm:$0xff]
    %v870 = vld [vmem:[#allocation2 + $0x4b] sm:$0xff]
    %v871 = vld [vmem:[#allocation2 + $0x53] sm:$0xff]
    %v872 = vld [vmem:[#allocation2 + $0x5b] sm:$0xff]
    %v873 = vld [vmem:[#allocation2 + $0x63] sm:$0xff]
    %v874 = vld [vmem:[#allocation2 + $0x6b] sm:$0xff]
    %v875 = vld [vmem:[#allocation15] sm:$0xff]
    %v876 = vld [vmem:[#allocation15 + $0x8] sm:$0xff]
    %v877 = vld [vmem:[#allocation15 + $0x10] sm:$0xff]
    %v878 = vld [vmem:[#allocation15 + $0x18] sm:$0xff]
    %v879 = vld [vmem:[#allocation15 + $0x20] sm:$0xff]
    %v880 = vld [vmem:[#allocation15 + $0x28] sm:$0xff]
    %v881 = vld [vmem:[#allocation15 + $0x30] sm:$0xff]
    %v882 = vld [vmem:[#allocation15 + $0x38] sm:$0xff]
    %v883 = vld [vmem:[#allocation15 + $0x40] sm:$0xff]
    %v884 = vld [vmem:[#allocation15 + $0x48] sm:$0xff]
    %v885 = vld [vmem:[#allocation15 + $0x50] sm:$0xff]
    %v886 = vld [vmem:[#allocation15 + $0x58] sm:$0xff]
    %v887 = vld [vmem:[#allocation15 + $0x60] sm:$0xff]
    %v888 = vld [vmem:[#allocation15 + $0x68] sm:$0xff]
    %v889 = vld [vmem:[#allocation15 + $0x70] sm:$0xff]
    %v890 = vld [vmem:[#allocation15 + $0x78] sm:$0xff]
    %v891 = vld [vmem:[#allocation2 + $0x4] sm:$0xff]
    %v892 = vld [vmem:[#allocation2 + $0xc] sm:$0xff]
    %v893 = vld [vmem:[#allocation2 + $0x14] sm:$0xff]
    %v894 = vld [vmem:[#allocation2 + $0x1c] sm:$0xff]
    %v895 = vld [vmem:[#allocation2 + $0x24] sm:$0xff]
    %v896 = vld [vmem:[#allocation2 + $0x2c] sm:$0xff]
    %v897 = vld [vmem:[#allocation2 + $0x34] sm:$0xff]
    %v898 = vld [vmem:[#allocation2 + $0x3c] sm:$0xff]
    %v899 = vld [vmem:[#allocation2 + $0x44] sm:$0xff]
    %v900 = vld [vmem:[#allocation2 + $0x4c] sm:$0xff]
    %v901 = vld [vmem:[#allocation2 + $0x54] sm:$0xff]
    %v902 = vld [vmem:[#allocation2 + $0x5c] sm:$0xff]
    %v903 = vld [vmem:[#allocation2 + $0x64] sm:$0xff]
    %v904 = vld [vmem:[#allocation2 + $0x6c] sm:$0xff]
    %v905 = vld [vmem:[#allocation15 + $0x80] sm:$0xff]
    %v906 = vld [vmem:[#allocation15 + $0x88] sm:$0xff]
    %v907 = vld [vmem:[#allocation15 + $0x90] sm:$0xff]
    %v908 = vld [vmem:[#allocation15 + $0x98] sm:$0xff]
    %v909 = vld [vmem:[#allocation15 + $0xa0] sm:$0xff]
    %v910 = vld [vmem:[#allocation15 + $0xa8] sm:$0xff]
    %v911 = vld [vmem:[#allocation15 + $0xb0] sm:$0xff]
    %v912 = vld [vmem:[#allocation15 + $0xb8] sm:$0xff]
    %v913 = vld [vmem:[#allocation15 + $0xc0] sm:$0xff]
    %v914 = vld [vmem:[#allocation15 + $0xc8] sm:$0xff]
    %v915 = vld [vmem:[#allocation15 + $0xd0] sm:$0xff]
    %v916 = vld [vmem:[#allocation15 + $0xd8] sm:$0xff]
    %v917 = vld [vmem:[#allocation15 + $0xe0] sm:$0xff]
    %v918 = vld [vmem:[#allocation15 + $0xe8] sm:$0xff]
    %v919 = vld [vmem:[#allocation15 + $0xf0] sm:$0xff]
    %v920 = vld [vmem:[#allocation15 + $0xf8] sm:$0xff]
    %921 = vmatprep.subr.mxu0 0.0
    %922 = vmatpush1.msra.mxu0 %v905
    %923 = vmatprep.subr.mxu0 0.0
    %924 = vmatpush1.msra.mxu0 %v906
    %925 = vmatprep.subr.mxu0 0.0
    %926 = vmatpush1.msra.mxu0 %v907
    %927 = vmatprep.subr.mxu0 0.0
    %928 = vmatpush1.msra.mxu0 %v908
    %929 = vmatprep.subr.mxu0 0.0
    %930 = vmatpush1.msra.mxu0 %v909
    %931 = vmatprep.subr.mxu0 0.0
    %932 = vmatpush1.msra.mxu0 %v910
    %933 = vmatprep.subr.mxu0 0.0
    %934 = vmatpush1.msra.mxu0 %v911
    %935 = vmatprep.subr.mxu0 0.0
    %936 = vmatpush1.msra.mxu0 %v912
    %937 = vmatprep.subr.mxu0 0.0
    %938 = vmatpush1.msra.mxu0 %v913
    %939 = vmatprep.subr.mxu0 0.0
    %940 = vmatpush1.msra.mxu0 %v914
    %941 = vmatprep.subr.mxu0 0.0
    %942 = vmatpush1.msra.mxu0 %v915
    %943 = vmatprep.subr.mxu0 0.0
    %944 = vmatpush1.msra.mxu0 %v916
    %945 = vmatprep.subr.mxu0 0.0
    %946 = vmatpush1.msra.mxu0 %v917
    %947 = vmatprep.subr.mxu0 0.0
    %948 = vmatpush1.msra.mxu0 %v918
    %949 = vmatprep.subr.mxu0 0.0
    %950 = vmatpush1.msra.mxu0 %v919
    %951 = vmatprep.subr.mxu0 0.0
    %952 = vmatpush1.msra.mxu0 %v920
    %953 = vmatprep.subr.mxu0 0.0
    %954 = vmatpush1.msra.mxu0 0.0
    %955 = vmatprep.subr.mxu0 0.0
    %956 = vmatpush1.msra.mxu0 0.0
    %957 = vmatprep.subr.mxu0 0.0
    %958 = vmatpush1.msra.mxu0 0.0
    %959 = vmatprep.subr.mxu0 0.0
    %960 = vmatpush1.msra.mxu0 0.0
    %961 = vmatprep.subr.mxu0 0.0
    %962 = vmatpush1.msra.mxu0 0.0
    %963 = vmatprep.subr.mxu0 0.0
    %964 = vmatpush1.msra.mxu0 0.0
    %965 = vmatprep.subr.mxu0 0.0
    %966 = vmatpush1.msra.mxu0 0.0
    %967 = vmatprep.subr.mxu0 0.0
    %968 = vmatpush1.msra.mxu0 0.0
    %969 = vmatprep.subr.mxu0 0.0
    %970 = vmatpush1.msra.mxu0 0.0
    %971 = vmatprep.subr.mxu0 0.0
    %972 = vmatpush1.msra.mxu0 0.0
    %973 = vmatprep.subr.mxu0 0.0
    %974 = vmatpush1.msra.mxu0 0.0
    %975 = vmatprep.subr.mxu0 0.0
    %976 = vmatpush1.msra.mxu0 0.0
    %977 = vmatprep.subr.mxu0 0.0
    %978 = vmatpush1.msra.mxu0 0.0
    %979 = vmatprep.subr.mxu0 0.0
    %980 = vmatpush1.msra.mxu0 0.0
    %981 = vmatprep.subr.mxu0 0.0
    %982 = vmatpush1.msra.mxu0 0.0
    %983 = vmatprep.subr.mxu0 0.0
    %984 = vmatpush1.msra.mxu0 0.0
    %985 = vmatprep.mubr.f32.mxu0 0.0
    %986 = vmatmul.mubr.f32.gmra.mrb[0].mxu0 %v891
    %v987 = vpop.f32.mrb[0].mxu0
    %v988 = vadd.f32 0.0, %v987
    %v989 = vpop.f32.mrb[0].mxu0
    %990 = vmatprep.mubr.f32.mxu0 0.0
    %991 = vmatmul.mubr.f32.gmra.mrb[0].mxu0 %v892
    %v992 = vpop.f32.mrb[0].mxu0
    %v993 = vadd.f32 0.0, %v992
    %v994 = vpop.f32.mrb[0].mxu0
    %995 = vmatprep.mubr.f32.mxu0 0.0
    %996 = vmatmul.mubr.f32.gmra.mrb[0].mxu0 %v893
    %v997 = vpop.f32.mrb[0].mxu0
    %v998 = vadd.f32 0.0, %v997
    %v999 = vpop.f32.mrb[0].mxu0
    %1000 = vmatprep.mubr.f32.mxu0 0.0
    %1001 = vmatmul.mubr.f32.gmra.mrb[0].mxu0 %v894
    %v1002 = vpop.f32.mrb[0].mxu0
    %v1003 = vadd.f32 0.0, %v1002
    %v1004 = vpop.f32.mrb[0].mxu0
    %1005 = vmatprep.mubr.f32.mxu0 0.0
    %1006 = vmatmul.mubr.f32.gmra.mrb[0].mxu0 %v895
    %v1007 = vpop.f32.mrb[0].mxu0
    %v1008 = vadd.f32 0.0, %v1007
    %v1009 = vpop.f32.mrb[0].mxu0
    %1010 = vmatprep.mubr.f32.mxu0 0.0
    %1011 = vmatmul.mubr.f32.gmra.mrb[0].mxu0 %v896
    %v1012 = vpop.f32.mrb[0].mxu0
    %v1013 = vadd.f32 0.0, %v1012
    %v1014 = vpop.f32.mrb[0].mxu0
    %1015 = vmatprep.mubr.f32.mxu0 0.0
    %1016 = vmatmul.mubr.f32.gmra.mrb[0].mxu0 %v897
    %v1017 = vpop.f32.mrb[0].mxu0
    %v1018 = vadd.f32 0.0, %v1017
    %v1019 = vpop.f32.mrb[0].mxu0
    %1020 = vmatprep.mubr.f32.mxu0 0.0
    %1021 = vmatmul.mubr.f32.gmra.mrb[0].mxu0 %v898
    %v1022 = vpop.f32.mrb[0].mxu0
    %v1023 = vadd.f32 0.0, %v1022
    %v1024 = vpop.f32.mrb[0].mxu0
    %1025 = vmatprep.mubr.f32.mxu0 0.0
    %1026 = vmatmul.mubr.f32.gmra.mrb[0].mxu0 %v899
    %v1027 = vpop.f32.mrb[0].mxu0
    %v1028 = vadd.f32 0.0, %v1027
    %v1029 = vpop.f32.mrb[0].mxu0
    %1030 = vmatprep.mubr.f32.mxu0 0.0
    %1031 = vmatmul.mubr.f32.gmra.mrb[0].mxu0 %v900
    %v1032 = vpop.f32.mrb[0].mxu0
    %v1033 = vadd.f32 0.0, %v1032
    %v1034 = vpop.f32.mrb[0].mxu0
    %1035 = vmatprep.mubr.f32.mxu0 0.0
    %1036 = vmatmul.mubr.f32.gmra.mrb[0].mxu0 %v901
    %v1037 = vpop.f32.mrb[0].mxu0
    %v1038 = vadd.f32 0.0, %v1037
    %v1039 = vpop.f32.mrb[0].mxu0
    %1040 = vmatprep.mubr.f32.mxu0 0.0
    %1041 = vmatmul.mubr.f32.gmra.mrb[0].mxu0 %v902
    %v1042 = vpop.f32.mrb[0].mxu0
    %v1043 = vadd.f32 0.0, %v1042
    %v1044 = vpop.f32.mrb[0].mxu0
    %1045 = vmatprep.mubr.f32.mxu0 0.0
    %1046 = vmatmul.mubr.f32.gmra.mrb[0].mxu0 %v903
    %v1047 = vpop.f32.mrb[0].mxu0
    %v1048 = vadd.f32 0.0, %v1047
    %v1049 = vpop.f32.mrb[0].mxu0
    %1050 = vmatprep.mubr.f32.mxu0 0.0
    %1051 = vmatmul.mubr.f32.gmra.mrb[0].mxu0 %v904
    %v1052 = vpop.f32.mrb[0].mxu0
    %v1053 = vadd.f32 0.0, %v1052
    %v1054 = vpop.f32.mrb[0].mxu0
    %1055 = vdwg.mxu0
    %1056 = vmatprep.subr.mxu0 0.0
    %1057 = vmatpush1.msra.mxu0 %v875
    %1058 = vmatprep.subr.mxu0 0.0
    %1059 = vmatpush1.msra.mxu0 %v876
    %1060 = vmatprep.subr.mxu0 0.0
    %1061 = vmatpush1.msra.mxu0 %v877
    %1062 = vmatprep.subr.mxu0 0.0
    %1063 = vmatpush1.msra.mxu0 %v878
    %1064 = vmatprep.subr.mxu0 0.0
    %1065 = vmatpush1.msra.mxu0 %v879
    %1066 = vmatprep.subr.mxu0 0.0
    %1067 = vmatpush1.msra.mxu0 %v880
    %1068 = vmatprep.subr.mxu0 0.0
    %1069 = vmatpush1.msra.mxu0 %v881
    %1070 = vmatprep.subr.mxu0 0.0
    %1071 = vmatpush1.msra.mxu0 %v882
    %1072 = vmatprep.subr.mxu0 0.0
    %1073 = vmatpush1.msra.mxu0 %v883
    %1074 = vmatprep.subr.mxu0 0.0
    %1075 = vmatpush1.msra.mxu0 %v884
    %1076 = vmatprep.subr.mxu0 0.0
    %1077 = vmatpush1.msra.mxu0 %v885
    %1078 = vmatprep.subr.mxu0 0.0
    %1079 = vmatpush1.msra.mxu0 %v886
    %1080 = vmatprep.subr.mxu0 0.0
    %1081 = vmatpush1.msra.mxu0 %v887
    %1082 = vmatprep.subr.mxu0 0.0
    %1083 = vmatpush1.msra.mxu0 %v888
    %1084 = vmatprep.subr.mxu0 0.0
    %1085 = vmatpush1.msra.mxu0 %v889
    %1086 = vmatprep.subr.mxu0 0.0
    %1087 = vmatpush1.msra.mxu0 %v890
    %1088 = vmatprep.subr.mxu0 0.0
    %1089 = vmatpush1.msra.mxu0 0.0
    %1090 = vmatprep.subr.mxu0 0.0
    %1091 = vmatpush1.msra.mxu0 0.0
    %1092 = vmatprep.subr.mxu0 0.0
    %1093 = vmatpush1.msra.mxu0 0.0
    %1094 = vmatprep.subr.mxu0 0.0
    %1095 = vmatpush1.msra.mxu0 0.0
    %1096 = vmatprep.subr.mxu0 0.0
    %1097 = vmatpush1.msra.mxu0 0.0
    %1098 = vmatprep.subr.mxu0 0.0
    %1099 = vmatpush1.msra.mxu0 0.0
    %1100 = vmatprep.subr.mxu0 0.0
    %1101 = vmatpush1.msra.mxu0 0.0
    %1102 = vmatprep.subr.mxu0 0.0
    %1103 = vmatpush1.msra.mxu0 0.0
    %1104 = vmatprep.subr.mxu0 0.0
    %1105 = vmatpush1.msra.mxu0 0.0
    %1106 = vmatprep.subr.mxu0 0.0
    %1107 = vmatpush1.msra.mxu0 0.0
    %1108 = vmatprep.subr.mxu0 0.0
    %1109 = vmatpush1.msra.mxu0 0.0
    %1110 = vmatprep.subr.mxu0 0.0
    %1111 = vmatpush1.msra.mxu0 0.0
    %1112 = vmatprep.subr.mxu0 0.0
    %1113 = vmatpush1.msra.mxu0 0.0
    %1114 = vmatprep.subr.mxu0 0.0
    %1115 = vmatpush1.msra.mxu0 0.0
    %1116 = vmatprep.subr.mxu0 0.0
    %1117 = vmatpush1.msra.mxu0 0.0
    %1118 = vmatprep.subr.mxu0 0.0
    %1119 = vmatpush1.msra.mxu0 0.0
    %1120 = vmatprep.mubr.f32.mxu0 0.0
    %1121 = vmatmul.mubr.f32.gmra.mrb[0].mxu0 %v861
    %v1122 = vpop.f32.mrb[0].mxu0
    %v1123 = vadd.f32 %v988, %v1122
    %v1124 = vpop.f32.mrb[0].mxu0
    %1125 = vmatprep.mubr.f32.mxu0 0.0
    %1126 = vmatmul.mubr.f32.gmra.mrb[0].mxu0 %v862
    %v1127 = vpop.f32.mrb[0].mxu0
    %v1128 = vadd.f32 %v993, %v1127
    %v1129 = vpop.f32.mrb[0].mxu0
    %1130 = vmatprep.mubr.f32.mxu0 0.0
    %1131 = vmatmul.mubr.f32.gmra.mrb[0].mxu0 %v863
    %v1132 = vpop.f32.mrb[0].mxu0
    %v1133 = vadd.f32 %v998, %v1132
    %v1134 = vpop.f32.mrb[0].mxu0
    %1135 = vmatprep.mubr.f32.mxu0 0.0
    %1136 = vmatmul.mubr.f32.gmra.mrb[0].mxu0 %v864
    %v1137 = vpop.f32.mrb[0].mxu0
    %v1138 = vadd.f32 %v1003, %v1137
    %v1139 = vpop.f32.mrb[0].mxu0
    %1140 = vmatprep.mubr.f32.mxu0 0.0
    %1141 = vmatmul.mubr.f32.gmra.mrb[0].mxu0 %v865
    %v1142 = vpop.f32.mrb[0].mxu0
    %v1143 = vadd.f32 %v1008, %v1142
    %v1144 = vpop.f32.mrb[0].mxu0
    %1145 = vmatprep.mubr.f32.mxu0 0.0
    %1146 = vmatmul.mubr.f32.gmra.mrb[0].mxu0 %v866
    %v1147 = vpop.f32.mrb[0].mxu0
    %v1148 = vadd.f32 %v1013, %v1147
    %v1149 = vpop.f32.mrb[0].mxu0
    %1150 = vmatprep.mubr.f32.mxu0 0.0
    %1151 = vmatmul.mubr.f32.gmra.mrb[0].mxu0 %v867
    %v1152 = vpop.f32.mrb[0].mxu0
    %v1153 = vadd.f32 %v1018, %v1152
    %v1154 = vpop.f32.mrb[0].mxu0
    %1155 = vmatprep.mubr.f32.mxu0 0.0
    %1156 = vmatmul.mubr.f32.gmra.mrb[0].mxu0 %v868
    %v1157 = vpop.f32.mrb[0].mxu0
    %v1158 = vadd.f32 %v1023, %v1157
    %v1159 = vpop.f32.mrb[0].mxu0
    %1160 = vmatprep.mubr.f32.mxu0 0.0
    %1161 = vmatmul.mubr.f32.gmra.mrb[0].mxu0 %v869
    %v1162 = vpop.f32.mrb[0].mxu0
    %v1163 = vadd.f32 %v1028, %v1162
    %v1164 = vpop.f32.mrb[0].mxu0
    %1165 = vmatprep.mubr.f32.mxu0 0.0
    %1166 = vmatmul.mubr.f32.gmra.mrb[0].mxu0 %v870
    %v1167 = vpop.f32.mrb[0].mxu0
    %v1168 = vadd.f32 %v1033, %v1167
    %v1169 = vpop.f32.mrb[0].mxu0
    %1170 = vmatprep.mubr.f32.mxu0 0.0
    %1171 = vmatmul.mubr.f32.gmra.mrb[0].mxu0 %v871
    %v1172 = vpop.f32.mrb[0].mxu0
    %v1173 = vadd.f32 %v1038, %v1172
    %v1174 = vpop.f32.mrb[0].mxu0
    %1175 = vmatprep.mubr.f32.mxu0 0.0
    %1176 = vmatmul.mubr.f32.gmra.mrb[0].mxu0 %v872
    %v1177 = vpop.f32.mrb[0].mxu0
    %v1178 = vadd.f32 %v1043, %v1177
    %v1179 = vpop.f32.mrb[0].mxu0
    %1180 = vmatprep.mubr.f32.mxu0 0.0
    %1181 = vmatmul.mubr.f32.gmra.mrb[0].mxu0 %v873
    %v1182 = vpop.f32.mrb[0].mxu0
    %v1183 = vadd.f32 %v1048, %v1182
    %v1184 = vpop.f32.mrb[0].mxu0
    %1185 = vmatprep.mubr.f32.mxu0 0.0
    %1186 = vmatmul.mubr.f32.gmra.mrb[0].mxu0 %v874
    %v1187 = vpop.f32.mrb[0].mxu0
    %v1188 = vadd.f32 %v1053, %v1187
    %v1189 = vpop.f32.mrb[0].mxu0
    %1190 = vdwg.mxu0
    %v1191 = vld [vmem:[#allocation2 + $0x5] sm:$0xff]
    %v1192 = vld [vmem:[#allocation2 + $0xd] sm:$0xff]
    %v1193 = vld [vmem:[#allocation2 + $0x15] sm:$0xff]
    %v1194 = vld [vmem:[#allocation2 + $0x1d] sm:$0xff]
    %v1195 = vld [vmem:[#allocation2 + $0x25] sm:$0xff]
    %v1196 = vld [vmem:[#allocation2 + $0x2d] sm:$0xff]
    %v1197 = vld [vmem:[#allocation2 + $0x35] sm:$0xff]
    %v1198 = vld [vmem:[#allocation2 + $0x3d] sm:$0xff]
    %v1199 = vld [vmem:[#allocation2 + $0x45] sm:$0xff]
    %v1200 = vld [vmem:[#allocation2 + $0x4d] sm:$0xff]
    %v1201 = vld [vmem:[#allocation2 + $0x55] sm:$0xff]
    %v1202 = vld [vmem:[#allocation2 + $0x5d] sm:$0xff]
    %v1203 = vld [vmem:[#allocation2 + $0x65] sm:$0xff]
    %v1204 = vld [vmem:[#allocation2 + $0x6d] sm:$0xff]
    %v1205 = vld [vmem:[#allocation15 + $0x100] sm:$0xff]
    %v1206 = vld [vmem:[#allocation15 + $0x108] sm:$0xff]
    %v1207 = vld [vmem:[#allocation15 + $0x110] sm:$0xff]
    %v1208 = vld [vmem:[#allocation15 + $0x118] sm:$0xff]
    %v1209 = vld [vmem:[#allocation15 + $0x120] sm:$0xff]
    %v1210 = vld [vmem:[#allocation15 + $0x128] sm:$0xff]
    %v1211 = vld [vmem:[#allocation15 + $0x130] sm:$0xff]
    %v1212 = vld [vmem:[#allocation15 + $0x138] sm:$0xff]
    %v1213 = vld [vmem:[#allocation15 + $0x140] sm:$0xff]
    %v1214 = vld [vmem:[#allocation15 + $0x148] sm:$0xff]
    %v1215 = vld [vmem:[#allocation15 + $0x150] sm:$0xff]
    %v1216 = vld [vmem:[#allocation15 + $0x158] sm:$0xff]
    %v1217 = vld [vmem:[#allocation15 + $0x160] sm:$0xff]
    %v1218 = vld [vmem:[#allocation15 + $0x168] sm:$0xff]
    %v1219 = vld [vmem:[#allocation15 + $0x170] sm:$0xff]
    %v1220 = vld [vmem:[#allocation15 + $0x178] sm:$0xff]
    %1221 = vmatprep.subr.mxu0 0.0
    %1222 = vmatpush1.msra.mxu0 %v1205
    %1223 = vmatprep.subr.mxu0 0.0
    %1224 = vmatpush1.msra.mxu0 %v1206
    %1225 = vmatprep.subr.mxu0 0.0
    %1226 = vmatpush1.msra.mxu0 %v1207
    %1227 = vmatprep.subr.mxu0 0.0
    %1228 = vmatpush1.msra.mxu0 %v1208
    %1229 = vmatprep.subr.mxu0 0.0
    %1230 = vmatpush1.msra.mxu0 %v1209
    %1231 = vmatprep.subr.mxu0 0.0
    %1232 = vmatpush1.msra.mxu0 %v1210
    %1233 = vmatprep.subr.mxu0 0.0
    %1234 = vmatpush1.msra.mxu0 %v1211
    %1235 = vmatprep.subr.mxu0 0.0
    %1236 = vmatpush1.msra.mxu0 %v1212
    %1237 = vmatprep.subr.mxu0 0.0
    %1238 = vmatpush1.msra.mxu0 %v1213
    %1239 = vmatprep.subr.mxu0 0.0
    %1240 = vmatpush1.msra.mxu0 %v1214
    %1241 = vmatprep.subr.mxu0 0.0
    %1242 = vmatpush1.msra.mxu0 %v1215
    %1243 = vmatprep.subr.mxu0 0.0
    %1244 = vmatpush1.msra.mxu0 %v1216
    %1245 = vmatprep.subr.mxu0 0.0
    %1246 = vmatpush1.msra.mxu0 %v1217
    %1247 = vmatprep.subr.mxu0 0.0
    %1248 = vmatpush1.msra.mxu0 %v1218
    %1249 = vmatprep.subr.mxu0 0.0
    %1250 = vmatpush1.msra.mxu0 %v1219
    %1251 = vmatprep.subr.mxu0 0.0
    %1252 = vmatpush1.msra.mxu0 %v1220
    %1253 = vmatprep.subr.mxu0 0.0
    %1254 = vmatpush1.msra.mxu0 0.0
    %1255 = vmatprep.subr.mxu0 0.0
    %1256 = vmatpush1.msra.mxu0 0.0
    %1257 = vmatprep.subr.mxu0 0.0
    %1258 = vmatpush1.msra.mxu0 0.0
    %1259 = vmatprep.subr.mxu0 0.0
    %1260 = vmatpush1.msra.mxu0 0.0
    %1261 = vmatprep.subr.mxu0 0.0
    %1262 = vmatpush1.msra.mxu0 0.0
    %1263 = vmatprep.subr.mxu0 0.0
    %1264 = vmatpush1.msra.mxu0 0.0
    %1265 = vmatprep.subr.mxu0 0.0
    %1266 = vmatpush1.msra.mxu0 0.0
    %1267 = vmatprep.subr.mxu0 0.0
    %1268 = vmatpush1.msra.mxu0 0.0
    %1269 = vmatprep.subr.mxu0 0.0
    %1270 = vmatpush1.msra.mxu0 0.0
    %1271 = vmatprep.subr.mxu0 0.0
    %1272 = vmatpush1.msra.mxu0 0.0
    %1273 = vmatprep.subr.mxu0 0.0
    %1274 = vmatpush1.msra.mxu0 0.0
    %1275 = vmatprep.subr.mxu0 0.0
    %1276 = vmatpush1.msra.mxu0 0.0
    %1277 = vmatprep.subr.mxu0 0.0
    %1278 = vmatpush1.msra.mxu0 0.0
    %1279 = vmatprep.subr.mxu0 0.0
    %1280 = vmatpush1.msra.mxu0 0.0
    %1281 = vmatprep.subr.mxu0 0.0
    %1282 = vmatpush1.msra.mxu0 0.0
    %1283 = vmatprep.subr.mxu0 0.0
    %1284 = vmatpush1.msra.mxu0 0.0
    %1285 = vmatprep.mubr.f32.mxu0 0.0
    %1286 = vmatmul.mubr.f32.gmra.mrb[0].mxu0 %v1191
    %v1287 = vpop.f32.mrb[0].mxu0
    %v1288 = vadd.f32 0.0, %v1287
    %v1289 = vpop.f32.mrb[0].mxu0
    %1290 = vmatprep.mubr.f32.mxu0 0.0
    %1291 = vmatmul.mubr.f32.gmra.mrb[0].mxu0 %v1192
    %v1292 = vpop.f32.mrb[0].mxu0
    %v1293 = vadd.f32 0.0, %v1292
    %v1294 = vpop.f32.mrb[0].mxu0
    %1295 = vmatprep.mubr.f32.mxu0 0.0
    %1296 = vmatmul.mubr.f32.gmra.mrb[0].mxu0 %v1193
    %v1297 = vpop.f32.mrb[0].mxu0
    %v1298 = vadd.f32 0.0, %v1297
    %v1299 = vpop.f32.mrb[0].mxu0
    %1300 = vmatprep.mubr.f32.mxu0 0.0
    %1301 = vmatmul.mubr.f32.gmra.mrb[0].mxu0 %v1194
    %v1302 = vpop.f32.mrb[0].mxu0
    %v1303 = vadd.f32 0.0, %v1302
    %v1304 = vpop.f32.mrb[0].mxu0
    %1305 = vmatprep.mubr.f32.mxu0 0.0
    %1306 = vmatmul.mubr.f32.gmra.mrb[0].mxu0 %v1195
    %v1307 = vpop.f32.mrb[0].mxu0
    %v1308 = vadd.f32 0.0, %v1307
    %v1309 = vpop.f32.mrb[0].mxu0
    %1310 = vmatprep.mubr.f32.mxu0 0.0
    %1311 = vmatmul.mubr.f32.gmra.mrb[0].mxu0 %v1196
    %v1312 = vpop.f32.mrb[0].mxu0
    %v1313 = vadd.f32 0.0, %v1312
    %v1314 = vpop.f32.mrb[0].mxu0
    %1315 = vmatprep.mubr.f32.mxu0 0.0
    %1316 = vmatmul.mubr.f32.gmra.mrb[0].mxu0 %v1197
    %v1317 = vpop.f32.mrb[0].mxu0
    %v1318 = vadd.f32 0.0, %v1317
    %v1319 = vpop.f32.mrb[0].mxu0
    %1320 = vmatprep.mubr.f32.mxu0 0.0
    %1321 = vmatmul.mubr.f32.gmra.mrb[0].mxu0 %v1198
    %v1322 = vpop.f32.mrb[0].mxu0
    %v1323 = vadd.f32 0.0, %v1322
    %v1324 = vpop.f32.mrb[0].mxu0
    %1325 = vmatprep.mubr.f32.mxu0 0.0
    %1326 = vmatmul.mubr.f32.gmra.mrb[0].mxu0 %v1199
    %v1327 = vpop.f32.mrb[0].mxu0
    %v1328 = vadd.f32 0.0, %v1327
    %v1329 = vpop.f32.mrb[0].mxu0
    %1330 = vmatprep.mubr.f32.mxu0 0.0
    %1331 = vmatmul.mubr.f32.gmra.mrb[0].mxu0 %v1200
    %v1332 = vpop.f32.mrb[0].mxu0
    %v1333 = vadd.f32 0.0, %v1332
    %v1334 = vpop.f32.mrb[0].mxu0
    %1335 = vmatprep.mubr.f32.mxu0 0.0
    %1336 = vmatmul.mubr.f32.gmra.mrb[0].mxu0 %v1201
    %v1337 = vpop.f32.mrb[0].mxu0
    %v1338 = vadd.f32 0.0, %v1337
    %v1339 = vpop.f32.mrb[0].mxu0
    %1340 = vmatprep.mubr.f32.mxu0 0.0
    %1341 = vmatmul.mubr.f32.gmra.mrb[0].mxu0 %v1202
    %v1342 = vpop.f32.mrb[0].mxu0
    %v1343 = vadd.f32 0.0, %v1342
    %v1344 = vpop.f32.mrb[0].mxu0
    %1345 = vmatprep.mubr.f32.mxu0 0.0
    %1346 = vmatmul.mubr.f32.gmra.mrb[0].mxu0 %v1203
    %v1347 = vpop.f32.mrb[0].mxu0
    %v1348 = vadd.f32 0.0, %v1347
    %v1349 = vpop.f32.mrb[0].mxu0
    %1350 = vmatprep.mubr.f32.mxu0 0.0
    %1351 = vmatmul.mubr.f32.gmra.mrb[0].mxu0 %v1204
    %v1352 = vpop.f32.mrb[0].mxu0
    %v1353 = vadd.f32 0.0, %v1352
    %v1354 = vpop.f32.mrb[0].mxu0
    %1355 = vdwg.mxu0
    %v1356 = vadd.f32 %v1123, %v1288
    %v1357 = vadd.f32 %v1128, %v1293
    %v1358 = vadd.f32 %v1133, %v1298
    %v1359 = vadd.f32 %v1138, %v1303
    %v1360 = vadd.f32 %v1143, %v1308
    %v1361 = vadd.f32 %v1148, %v1313
    %v1362 = vadd.f32 %v1153, %v1318
    %v1363 = vadd.f32 %v1158, %v1323
    %v1364 = vadd.f32 %v1163, %v1328
    %v1365 = vadd.f32 %v1168, %v1333
    %v1366 = vadd.f32 %v1173, %v1338
    %v1367 = vadd.f32 %v1178, %v1343
    %v1368 = vadd.f32 %v1183, %v1348
    %v1369 = vadd.f32 %v1188, %v1353
    %v1370 = vld [vmem:[#allocation2 + $0x6] sm:$0xff]
    %v1371 = vld [vmem:[#allocation2 + $0xe] sm:$0xff]
    %v1372 = vld [vmem:[#allocation2 + $0x16] sm:$0xff]
    %v1373 = vld [vmem:[#allocation2 + $0x1e] sm:$0xff]
    %v1374 = vld [vmem:[#allocation2 + $0x26] sm:$0xff]
    %v1375 = vld [vmem:[#allocation2 + $0x2e] sm:$0xff]
    %v1376 = vld [vmem:[#allocation2 + $0x36] sm:$0xff]
    %v1377 = vld [vmem:[#allocation2 + $0x3e] sm:$0xff]
    %v1378 = vld [vmem:[#allocation2 + $0x46] sm:$0xff]
    %v1379 = vld [vmem:[#allocation2 + $0x4e] sm:$0xff]
    %v1380 = vld [vmem:[#allocation2 + $0x56] sm:$0xff]
    %v1381 = vld [vmem:[#allocation2 + $0x5e] sm:$0xff]
    %v1382 = vld [vmem:[#allocation2 + $0x66] sm:$0xff]
    %v1383 = vld [vmem:[#allocation2 + $0x6e] sm:$0xff]
    %v1384 = vld [vmem:[#allocation15 + $0x180] sm:$0xff]
    %v1385 = vld [vmem:[#allocation15 + $0x188] sm:$0xff]
    %v1386 = vld [vmem:[#allocation15 + $0x190] sm:$0xff]
    %v1387 = vld [vmem:[#allocation15 + $0x198] sm:$0xff]
    %v1388 = vld [vmem:[#allocation15 + $0x1a0] sm:$0xff]
    %v1389 = vld [vmem:[#allocation15 + $0x1a8] sm:$0xff]
    %v1390 = vld [vmem:[#allocation15 + $0x1b0] sm:$0xff]
    %v1391 = vld [vmem:[#allocation15 + $0x1b8] sm:$0xff]
    %v1392 = vld [vmem:[#allocation15 + $0x1c0] sm:$0xff]
    %v1393 = vld [vmem:[#allocation15 + $0x1c8] sm:$0xff]
    %v1394 = vld [vmem:[#allocation15 + $0x1d0] sm:$0xff]
    %v1395 = vld [vmem:[#allocation15 + $0x1d8] sm:$0xff]
    %v1396 = vld [vmem:[#allocation15 + $0x1e0] sm:$0xff]
    %v1397 = vld [vmem:[#allocation15 + $0x1e8] sm:$0xff]
    %v1398 = vld [vmem:[#allocation15 + $0x1f0] sm:$0xff]
    %v1399 = vld [vmem:[#allocation15 + $0x1f8] sm:$0xff]
    %1400 = vmatprep.subr.mxu0 0.0
    %1401 = vmatpush1.msra.mxu0 %v1384
    %1402 = vmatprep.subr.mxu0 0.0
    %1403 = vmatpush1.msra.mxu0 %v1385
    %1404 = vmatprep.subr.mxu0 0.0
    %1405 = vmatpush1.msra.mxu0 %v1386
    %1406 = vmatprep.subr.mxu0 0.0
    %1407 = vmatpush1.msra.mxu0 %v1387
    %1408 = vmatprep.subr.mxu0 0.0
    %1409 = vmatpush1.msra.mxu0 %v1388
    %1410 = vmatprep.subr.mxu0 0.0
    %1411 = vmatpush1.msra.mxu0 %v1389
    %1412 = vmatprep.subr.mxu0 0.0
    %1413 = vmatpush1.msra.mxu0 %v1390
    %1414 = vmatprep.subr.mxu0 0.0
    %1415 = vmatpush1.msra.mxu0 %v1391
    %1416 = vmatprep.subr.mxu0 0.0
    %1417 = vmatpush1.msra.mxu0 %v1392
    %1418 = vmatprep.subr.mxu0 0.0
    %1419 = vmatpush1.msra.mxu0 %v1393
    %1420 = vmatprep.subr.mxu0 0.0
    %1421 = vmatpush1.msra.mxu0 %v1394
    %1422 = vmatprep.subr.mxu0 0.0
    %1423 = vmatpush1.msra.mxu0 %v1395
    %1424 = vmatprep.subr.mxu0 0.0
    %1425 = vmatpush1.msra.mxu0 %v1396
    %1426 = vmatprep.subr.mxu0 0.0
    %1427 = vmatpush1.msra.mxu0 %v1397
    %1428 = vmatprep.subr.mxu0 0.0
    %1429 = vmatpush1.msra.mxu0 %v1398
    %1430 = vmatprep.subr.mxu0 0.0
    %1431 = vmatpush1.msra.mxu0 %v1399
    %1432 = vmatprep.subr.mxu0 0.0
    %1433 = vmatpush1.msra.mxu0 0.0
    %1434 = vmatprep.subr.mxu0 0.0
    %1435 = vmatpush1.msra.mxu0 0.0
    %1436 = vmatprep.subr.mxu0 0.0
    %1437 = vmatpush1.msra.mxu0 0.0
    %1438 = vmatprep.subr.mxu0 0.0
    %1439 = vmatpush1.msra.mxu0 0.0
    %1440 = vmatprep.subr.mxu0 0.0
    %1441 = vmatpush1.msra.mxu0 0.0
    %1442 = vmatprep.subr.mxu0 0.0
    %1443 = vmatpush1.msra.mxu0 0.0
    %1444 = vmatprep.subr.mxu0 0.0
    %1445 = vmatpush1.msra.mxu0 0.0
    %1446 = vmatprep.subr.mxu0 0.0
    %1447 = vmatpush1.msra.mxu0 0.0
    %1448 = vmatprep.subr.mxu0 0.0
    %1449 = vmatpush1.msra.mxu0 0.0
    %1450 = vmatprep.subr.mxu0 0.0
    %1451 = vmatpush1.msra.mxu0 0.0
    %1452 = vmatprep.subr.mxu0 0.0
    %1453 = vmatpush1.msra.mxu0 0.0
    %1454 = vmatprep.subr.mxu0 0.0
    %1455 = vmatpush1.msra.mxu0 0.0
    %1456 = vmatprep.subr.mxu0 0.0
    %1457 = vmatpush1.msra.mxu0 0.0
    %1458 = vmatprep.subr.mxu0 0.0
    %1459 = vmatpush1.msra.mxu0 0.0
    %1460 = vmatprep.subr.mxu0 0.0
    %1461 = vmatpush1.msra.mxu0 0.0
    %1462 = vmatprep.subr.mxu0 0.0
    %1463 = vmatpush1.msra.mxu0 0.0
    %1464 = vmatprep.mubr.f32.mxu0 0.0
    %1465 = vmatmul.mubr.f32.gmra.mrb[0].mxu0 %v1370
    %v1466 = vpop.f32.mrb[0].mxu0
    %v1467 = vadd.f32 0.0, %v1466
    %v1468 = vpop.f32.mrb[0].mxu0
    %1469 = vmatprep.mubr.f32.mxu0 0.0
    %1470 = vmatmul.mubr.f32.gmra.mrb[0].mxu0 %v1371
    %v1471 = vpop.f32.mrb[0].mxu0
    %v1472 = vadd.f32 0.0, %v1471
    %v1473 = vpop.f32.mrb[0].mxu0
    %1474 = vmatprep.mubr.f32.mxu0 0.0
    %1475 = vmatmul.mubr.f32.gmra.mrb[0].mxu0 %v1372
    %v1476 = vpop.f32.mrb[0].mxu0
    %v1477 = vadd.f32 0.0, %v1476
    %v1478 = vpop.f32.mrb[0].mxu0
    %1479 = vmatprep.mubr.f32.mxu0 0.0
    %1480 = vmatmul.mubr.f32.gmra.mrb[0].mxu0 %v1373
    %v1481 = vpop.f32.mrb[0].mxu0
    %v1482 = vadd.f32 0.0, %v1481
    %v1483 = vpop.f32.mrb[0].mxu0
    %1484 = vmatprep.mubr.f32.mxu0 0.0
    %1485 = vmatmul.mubr.f32.gmra.mrb[0].mxu0 %v1374
    %v1486 = vpop.f32.mrb[0].mxu0
    %v1487 = vadd.f32 0.0, %v1486
    %v1488 = vpop.f32.mrb[0].mxu0
    %1489 = vmatprep.mubr.f32.mxu0 0.0
    %1490 = vmatmul.mubr.f32.gmra.mrb[0].mxu0 %v1375
    %v1491 = vpop.f32.mrb[0].mxu0
    %v1492 = vadd.f32 0.0, %v1491
    %v1493 = vpop.f32.mrb[0].mxu0
    %1494 = vmatprep.mubr.f32.mxu0 0.0
    %1495 = vmatmul.mubr.f32.gmra.mrb[0].mxu0 %v1376
    %v1496 = vpop.f32.mrb[0].mxu0
    %v1497 = vadd.f32 0.0, %v1496
    %v1498 = vpop.f32.mrb[0].mxu0
    %1499 = vmatprep.mubr.f32.mxu0 0.0
    %1500 = vmatmul.mubr.f32.gmra.mrb[0].mxu0 %v1377
    %v1501 = vpop.f32.mrb[0].mxu0
    %v1502 = vadd.f32 0.0, %v1501
    %v1503 = vpop.f32.mrb[0].mxu0
    %1504 = vmatprep.mubr.f32.mxu0 0.0
    %1505 = vmatmul.mubr.f32.gmra.mrb[0].mxu0 %v1378
    %v1506 = vpop.f32.mrb[0].mxu0
    %v1507 = vadd.f32 0.0, %v1506
    %v1508 = vpop.f32.mrb[0].mxu0
    %1509 = vmatprep.mubr.f32.mxu0 0.0
    %1510 = vmatmul.mubr.f32.gmra.mrb[0].mxu0 %v1379
    %v1511 = vpop.f32.mrb[0].mxu0
    %v1512 = vadd.f32 0.0, %v1511
    %v1513 = vpop.f32.mrb[0].mxu0
    %1514 = vmatprep.mubr.f32.mxu0 0.0
    %1515 = vmatmul.mubr.f32.gmra.mrb[0].mxu0 %v1380
    %v1516 = vpop.f32.mrb[0].mxu0
    %v1517 = vadd.f32 0.0, %v1516
    %v1518 = vpop.f32.mrb[0].mxu0
    %1519 = vmatprep.mubr.f32.mxu0 0.0
    %1520 = vmatmul.mubr.f32.gmra.mrb[0].mxu0 %v1381
    %v1521 = vpop.f32.mrb[0].mxu0
    %v1522 = vadd.f32 0.0, %v1521
    %v1523 = vpop.f32.mrb[0].mxu0
    %1524 = vmatprep.mubr.f32.mxu0 0.0
    %1525 = vmatmul.mubr.f32.gmra.mrb[0].mxu0 %v1382
    %v1526 = vpop.f32.mrb[0].mxu0
    %v1527 = vadd.f32 0.0, %v1526
    %v1528 = vpop.f32.mrb[0].mxu0
    %1529 = vmatprep.mubr.f32.mxu0 0.0
    %1530 = vmatmul.mubr.f32.gmra.mrb[0].mxu0 %v1383
    %v1531 = vpop.f32.mrb[0].mxu0
    %v1532 = vadd.f32 0.0, %v1531
    %v1533 = vpop.f32.mrb[0].mxu0
    %1534 = vdwg.mxu0
    %v1535 = vadd.f32 %v1356, %v1467
    %v1536 = vadd.f32 %v1357, %v1472
    %v1537 = vadd.f32 %v1358, %v1477
    %v1538 = vadd.f32 %v1359, %v1482
    %v1539 = vadd.f32 %v1360, %v1487
    %v1540 = vadd.f32 %v1361, %v1492
    %v1541 = vadd.f32 %v1362, %v1497
    %v1542 = vadd.f32 %v1363, %v1502
    %v1543 = vadd.f32 %v1364, %v1507
    %v1544 = vadd.f32 %v1365, %v1512
    %v1545 = vadd.f32 %v1366, %v1517
    %v1546 = vadd.f32 %v1367, %v1522
    %v1547 = vadd.f32 %v1368, %v1527
    %v1548 = vadd.f32 %v1369, %v1532
    %v1549 = vld [vmem:[#allocation2 + $0x7] sm:$0xff]
    %v1550 = vld [vmem:[#allocation2 + $0xf] sm:$0xff]
    %v1551 = vld [vmem:[#allocation2 + $0x17] sm:$0xff]
    %v1552 = vld [vmem:[#allocation2 + $0x1f] sm:$0xff]
    %v1553 = vld [vmem:[#allocation2 + $0x27] sm:$0xff]
    %v1554 = vld [vmem:[#allocation2 + $0x2f] sm:$0xff]
    %v1555 = vld [vmem:[#allocation2 + $0x37] sm:$0xff]
    %v1556 = vld [vmem:[#allocation2 + $0x3f] sm:$0xff]
    %v1557 = vld [vmem:[#allocation2 + $0x47] sm:$0xff]
    %v1558 = vld [vmem:[#allocation2 + $0x4f] sm:$0xff]
    %v1559 = vld [vmem:[#allocation2 + $0x57] sm:$0xff]
    %v1560 = vld [vmem:[#allocation2 + $0x5f] sm:$0xff]
    %v1561 = vld [vmem:[#allocation2 + $0x67] sm:$0xff]
    %v1562 = vld [vmem:[#allocation2 + $0x6f] sm:$0xff]
    %v1563 = vld [vmem:[#allocation15 + $0x200] sm:$0xff]
    %v1564 = vld [vmem:[#allocation15 + $0x208] sm:$0xff]
    %v1565 = vld [vmem:[#allocation15 + $0x210] sm:$0xff]
    %v1566 = vld [vmem:[#allocation15 + $0x218] sm:$0xff]
    %v1567 = vld [vmem:[#allocation15 + $0x220] sm:$0xff]
    %v1568 = vld [vmem:[#allocation15 + $0x228] sm:$0xff]
    %v1569 = vld [vmem:[#allocation15 + $0x230] sm:$0xff]
    %v1570 = vld [vmem:[#allocation15 + $0x238] sm:$0xff]
    %v1571 = vld [vmem:[#allocation15 + $0x240] sm:$0xff]
    %v1572 = vld [vmem:[#allocation15 + $0x248] sm:$0xff]
    %v1573 = vld [vmem:[#allocation15 + $0x250] sm:$0xff]
    %v1574 = vld [vmem:[#allocation15 + $0x258] sm:$0xff]
    %v1575 = vld [vmem:[#allocation15 + $0x260] sm:$0xff]
    %v1576 = vld [vmem:[#allocation15 + $0x268] sm:$0xff]
    %v1577 = vld [vmem:[#allocation15 + $0x270] sm:$0xff]
    %v1578 = vld [vmem:[#allocation15 + $0x278] sm:$0xff]
    %1579 = vmatprep.subr.mxu0 0.0
    %1580 = vmatpush1.msra.mxu0 %v1563
    %1581 = vmatprep.subr.mxu0 0.0
    %1582 = vmatpush1.msra.mxu0 %v1564
    %1583 = vmatprep.subr.mxu0 0.0
    %1584 = vmatpush1.msra.mxu0 %v1565
    %1585 = vmatprep.subr.mxu0 0.0
    %1586 = vmatpush1.msra.mxu0 %v1566
    %1587 = vmatprep.subr.mxu0 0.0
    %1588 = vmatpush1.msra.mxu0 %v1567
    %1589 = vmatprep.subr.mxu0 0.0
    %1590 = vmatpush1.msra.mxu0 %v1568
    %1591 = vmatprep.subr.mxu0 0.0
    %1592 = vmatpush1.msra.mxu0 %v1569
    %1593 = vmatprep.subr.mxu0 0.0
    %1594 = vmatpush1.msra.mxu0 %v1570
    %1595 = vmatprep.subr.mxu0 0.0
    %1596 = vmatpush1.msra.mxu0 %v1571
    %1597 = vmatprep.subr.mxu0 0.0
    %1598 = vmatpush1.msra.mxu0 %v1572
    %1599 = vmatprep.subr.mxu0 0.0
    %1600 = vmatpush1.msra.mxu0 %v1573
    %1601 = vmatprep.subr.mxu0 0.0
    %1602 = vmatpush1.msra.mxu0 %v1574
    %1603 = vmatprep.subr.mxu0 0.0
    %1604 = vmatpush1.msra.mxu0 %v1575
    %1605 = vmatprep.subr.mxu0 0.0
    %1606 = vmatpush1.msra.mxu0 %v1576
    %1607 = vmatprep.subr.mxu0 0.0
    %1608 = vmatpush1.msra.mxu0 %v1577
    %1609 = vmatprep.subr.mxu0 0.0
    %1610 = vmatpush1.msra.mxu0 %v1578
    %1611 = vmatprep.subr.mxu0 0.0
    %1612 = vmatpush1.msra.mxu0 0.0
    %1613 = vmatprep.subr.mxu0 0.0
    %1614 = vmatpush1.msra.mxu0 0.0
    %1615 = vmatprep.subr.mxu0 0.0
    %1616 = vmatpush1.msra.mxu0 0.0
    %1617 = vmatprep.subr.mxu0 0.0
    %1618 = vmatpush1.msra.mxu0 0.0
    %1619 = vmatprep.subr.mxu0 0.0
    %1620 = vmatpush1.msra.mxu0 0.0
    %1621 = vmatprep.subr.mxu0 0.0
    %1622 = vmatpush1.msra.mxu0 0.0
    %1623 = vmatprep.subr.mxu0 0.0
    %1624 = vmatpush1.msra.mxu0 0.0
    %1625 = vmatprep.subr.mxu0 0.0
    %1626 = vmatpush1.msra.mxu0 0.0
    %1627 = vmatprep.subr.mxu0 0.0
    %1628 = vmatpush1.msra.mxu0 0.0
    %1629 = vmatprep.subr.mxu0 0.0
    %1630 = vmatpush1.msra.mxu0 0.0
    %1631 = vmatprep.subr.mxu0 0.0
    %1632 = vmatpush1.msra.mxu0 0.0
    %1633 = vmatprep.subr.mxu0 0.0
    %1634 = vmatpush1.msra.mxu0 0.0
    %1635 = vmatprep.subr.mxu0 0.0
    %1636 = vmatpush1.msra.mxu0 0.0
    %1637 = vmatprep.subr.mxu0 0.0
    %1638 = vmatpush1.msra.mxu0 0.0
    %1639 = vmatprep.subr.mxu0 0.0
    %1640 = vmatpush1.msra.mxu0 0.0
    %1641 = vmatprep.subr.mxu0 0.0
    %1642 = vmatpush1.msra.mxu0 0.0
    %1643 = vmatprep.mubr.f32.mxu0 0.0
    %1644 = vmatmul.mubr.f32.gmra.mrb[0].mxu0 %v1549
    %v1645 = vpop.f32.mrb[0].mxu0
    %v1646 = vadd.f32 0.0, %v1645
    %v1647 = vpop.f32.mrb[0].mxu0
    %1648 = vmatprep.mubr.f32.mxu0 0.0
    %1649 = vmatmul.mubr.f32.gmra.mrb[0].mxu0 %v1550
    %v1650 = vpop.f32.mrb[0].mxu0
    %v1651 = vadd.f32 0.0, %v1650
    %v1652 = vpop.f32.mrb[0].mxu0
    %1653 = vmatprep.mubr.f32.mxu0 0.0
    %1654 = vmatmul.mubr.f32.gmra.mrb[0].mxu0 %v1551
    %v1655 = vpop.f32.mrb[0].mxu0
    %v1656 = vadd.f32 0.0, %v1655
    %v1657 = vpop.f32.mrb[0].mxu0
    %1658 = vmatprep.mubr.f32.mxu0 0.0
    %1659 = vmatmul.mubr.f32.gmra.mrb[0].mxu0 %v1552
    %v1660 = vpop.f32.mrb[0].mxu0
    %v1661 = vadd.f32 0.0, %v1660
    %v1662 = vpop.f32.mrb[0].mxu0
    %1663 = vmatprep.mubr.f32.mxu0 0.0
    %1664 = vmatmul.mubr.f32.gmra.mrb[0].mxu0 %v1553
    %v1665 = vpop.f32.mrb[0].mxu0
    %v1666 = vadd.f32 0.0, %v1665
    %v1667 = vpop.f32.mrb[0].mxu0
    %1668 = vmatprep.mubr.f32.mxu0 0.0
    %1669 = vmatmul.mubr.f32.gmra.mrb[0].mxu0 %v1554
    %v1670 = vpop.f32.mrb[0].mxu0
    %v1671 = vadd.f32 0.0, %v1670
    %v1672 = vpop.f32.mrb[0].mxu0
    %1673 = vmatprep.mubr.f32.mxu0 0.0
    %1674 = vmatmul.mubr.f32.gmra.mrb[0].mxu0 %v1555
    %v1675 = vpop.f32.mrb[0].mxu0
    %v1676 = vadd.f32 0.0, %v1675
    %v1677 = vpop.f32.mrb[0].mxu0
    %1678 = vmatprep.mubr.f32.mxu0 0.0
    %1679 = vmatmul.mubr.f32.gmra.mrb[0].mxu0 %v1556
    %v1680 = vpop.f32.mrb[0].mxu0
    %v1681 = vadd.f32 0.0, %v1680
    %v1682 = vpop.f32.mrb[0].mxu0
    %1683 = vmatprep.mubr.f32.mxu0 0.0
    %1684 = vmatmul.mubr.f32.gmra.mrb[0].mxu0 %v1557
    %v1685 = vpop.f32.mrb[0].mxu0
    %v1686 = vadd.f32 0.0, %v1685
    %v1687 = vpop.f32.mrb[0].mxu0
    %1688 = vmatprep.mubr.f32.mxu0 0.0
    %1689 = vmatmul.mubr.f32.gmra.mrb[0].mxu0 %v1558
    %v1690 = vpop.f32.mrb[0].mxu0
    %v1691 = vadd.f32 0.0, %v1690
    %v1692 = vpop.f32.mrb[0].mxu0
    %1693 = vmatprep.mubr.f32.mxu0 0.0
    %1694 = vmatmul.mubr.f32.gmra.mrb[0].mxu0 %v1559
    %v1695 = vpop.f32.mrb[0].mxu0
    %v1696 = vadd.f32 0.0, %v1695
    %v1697 = vpop.f32.mrb[0].mxu0
    %1698 = vmatprep.mubr.f32.mxu0 0.0
    %1699 = vmatmul.mubr.f32.gmra.mrb[0].mxu0 %v1560
    %v1700 = vpop.f32.mrb[0].mxu0
    %v1701 = vadd.f32 0.0, %v1700
    %v1702 = vpop.f32.mrb[0].mxu0
    %1703 = vmatprep.mubr.f32.mxu0 0.0
    %1704 = vmatmul.mubr.f32.gmra.mrb[0].mxu0 %v1561
    %v1705 = vpop.f32.mrb[0].mxu0
    %v1706 = vadd.f32 0.0, %v1705
    %v1707 = vpop.f32.mrb[0].mxu0
    %1708 = vmatprep.mubr.f32.mxu0 0.0
    %1709 = vmatmul.mubr.f32.gmra.mrb[0].mxu0 %v1562
    %v1710 = vpop.f32.mrb[0].mxu0
    %v1711 = vadd.f32 0.0, %v1710
    %v1712 = vpop.f32.mrb[0].mxu0
    %1713 = vdwg.mxu0
    %v1714 = vadd.f32 %v1535, %v1646
    %v1715 = vadd.f32 %v1536, %v1651
    %v1716 = vadd.f32 %v1537, %v1656
    %v1717 = vadd.f32 %v1538, %v1661
    %v1718 = vadd.f32 %v1539, %v1666
    %v1719 = vadd.f32 %v1540, %v1671
    %v1720 = vadd.f32 %v1541, %v1676
    %v1721 = vadd.f32 %v1542, %v1681
    %v1722 = vadd.f32 %v1543, %v1686
    %v1723 = vadd.f32 %v1544, %v1691
    %v1724 = vadd.f32 %v1545, %v1696
    %v1725 = vadd.f32 %v1546, %v1701
    %v1726 = vadd.f32 %v1547, %v1706
    %v1727 = vadd.f32 %v1548, %v1711
    %v1728 = vld [vmem:[#allocation2 + $0x8] sm:$0xff]
    %v1729 = vld [vmem:[#allocation2 + $0x10] sm:$0xff]
    %v1730 = vld [vmem:[#allocation2 + $0x18] sm:$0xff]
    %v1731 = vld [vmem:[#allocation2 + $0x20] sm:$0xff]
    %v1732 = vld [vmem:[#allocation2 + $0x28] sm:$0xff]
    %v1733 = vld [vmem:[#allocation2 + $0x30] sm:$0xff]
    %v1734 = vld [vmem:[#allocation2 + $0x38] sm:$0xff]
    %v1735 = vld [vmem:[#allocation2 + $0x40] sm:$0xff]
    %v1736 = vld [vmem:[#allocation2 + $0x48] sm:$0xff]
    %v1737 = vld [vmem:[#allocation2 + $0x50] sm:$0xff]
    %v1738 = vld [vmem:[#allocation2 + $0x58] sm:$0xff]
    %v1739 = vld [vmem:[#allocation2 + $0x60] sm:$0xff]
    %v1740 = vld [vmem:[#allocation2 + $0x68] sm:$0xff]
    %v1741 = vld [vmem:[#allocation2 + $0x70] sm:$0xff]
    %v1742 = vld [vmem:[#allocation15 + $0x280] sm:$0xff]
    %v1743 = vld [vmem:[#allocation15 + $0x288] sm:$0xff]
    %v1744 = vld [vmem:[#allocation15 + $0x290] sm:$0xff]
    %v1745 = vld [vmem:[#allocation15 + $0x298] sm:$0xff]
    %v1746 = vld [vmem:[#allocation15 + $0x2a0] sm:$0xff]
    %v1747 = vld [vmem:[#allocation15 + $0x2a8] sm:$0xff]
    %v1748 = vld [vmem:[#allocation15 + $0x2b0] sm:$0xff]
    %v1749 = vld [vmem:[#allocation15 + $0x2b8] sm:$0xff]
    %v1750 = vld [vmem:[#allocation15 + $0x2c0] sm:$0xff]
    %v1751 = vld [vmem:[#allocation15 + $0x2c8] sm:$0xff]
    %v1752 = vld [vmem:[#allocation15 + $0x2d0] sm:$0xff]
    %v1753 = vld [vmem:[#allocation15 + $0x2d8] sm:$0xff]
    %v1754 = vld [vmem:[#allocation15 + $0x2e0] sm:$0xff]
    %v1755 = vld [vmem:[#allocation15 + $0x2e8] sm:$0xff]
    %v1756 = vld [vmem:[#allocation15 + $0x2f0] sm:$0xff]
    %v1757 = vld [vmem:[#allocation15 + $0x2f8] sm:$0xff]
    %1758 = vmatprep.subr.mxu0 0.0
    %1759 = vmatpush1.msra.mxu0 %v1742
    %1760 = vmatprep.subr.mxu0 0.0
    %1761 = vmatpush1.msra.mxu0 %v1743
    %1762 = vmatprep.subr.mxu0 0.0
    %1763 = vmatpush1.msra.mxu0 %v1744
    %1764 = vmatprep.subr.mxu0 0.0
    %1765 = vmatpush1.msra.mxu0 %v1745
    %1766 = vmatprep.subr.mxu0 0.0
    %1767 = vmatpush1.msra.mxu0 %v1746
    %1768 = vmatprep.subr.mxu0 0.0
    %1769 = vmatpush1.msra.mxu0 %v1747
    %1770 = vmatprep.subr.mxu0 0.0
    %1771 = vmatpush1.msra.mxu0 %v1748
    %1772 = vmatprep.subr.mxu0 0.0
    %1773 = vmatpush1.msra.mxu0 %v1749
    %1774 = vmatprep.subr.mxu0 0.0
    %1775 = vmatpush1.msra.mxu0 %v1750
    %1776 = vmatprep.subr.mxu0 0.0
    %1777 = vmatpush1.msra.mxu0 %v1751
    %1778 = vmatprep.subr.mxu0 0.0
    %1779 = vmatpush1.msra.mxu0 %v1752
    %1780 = vmatprep.subr.mxu0 0.0
    %1781 = vmatpush1.msra.mxu0 %v1753
    %1782 = vmatprep.subr.mxu0 0.0
    %1783 = vmatpush1.msra.mxu0 %v1754
    %1784 = vmatprep.subr.mxu0 0.0
    %1785 = vmatpush1.msra.mxu0 %v1755
    %1786 = vmatprep.subr.mxu0 0.0
    %1787 = vmatpush1.msra.mxu0 %v1756
    %1788 = vmatprep.subr.mxu0 0.0
    %1789 = vmatpush1.msra.mxu0 %v1757
    %1790 = vmatprep.subr.mxu0 0.0
    %1791 = vmatpush1.msra.mxu0 0.0
    %1792 = vmatprep.subr.mxu0 0.0
    %1793 = vmatpush1.msra.mxu0 0.0
    %1794 = vmatprep.subr.mxu0 0.0
    %1795 = vmatpush1.msra.mxu0 0.0
    %1796 = vmatprep.subr.mxu0 0.0
    %1797 = vmatpush1.msra.mxu0 0.0
    %1798 = vmatprep.subr.mxu0 0.0
    %1799 = vmatpush1.msra.mxu0 0.0
    %1800 = vmatprep.subr.mxu0 0.0
    %1801 = vmatpush1.msra.mxu0 0.0
    %1802 = vmatprep.subr.mxu0 0.0
    %1803 = vmatpush1.msra.mxu0 0.0
    %1804 = vmatprep.subr.mxu0 0.0
    %1805 = vmatpush1.msra.mxu0 0.0
    %1806 = vmatprep.subr.mxu0 0.0
    %1807 = vmatpush1.msra.mxu0 0.0
    %1808 = vmatprep.subr.mxu0 0.0
    %1809 = vmatpush1.msra.mxu0 0.0
    %1810 = vmatprep.subr.mxu0 0.0
    %1811 = vmatpush1.msra.mxu0 0.0
    %1812 = vmatprep.subr.mxu0 0.0
    %1813 = vmatpush1.msra.mxu0 0.0
    %1814 = vmatprep.subr.mxu0 0.0
    %1815 = vmatpush1.msra.mxu0 0.0
    %1816 = vmatprep.subr.mxu0 0.0
    %1817 = vmatpush1.msra.mxu0 0.0
    %1818 = vmatprep.subr.mxu0 0.0
    %1819 = vmatpush1.msra.mxu0 0.0
    %1820 = vmatprep.subr.mxu0 0.0
    %1821 = vmatpush1.msra.mxu0 0.0
    %1822 = vmatprep.mubr.f32.mxu0 0.0
    %1823 = vmatmul.mubr.f32.gmra.mrb[0].mxu0 %v1728
    %v1824 = vpop.f32.mrb[0].mxu0
    %v1825 = vadd.f32 0.0, %v1824
    %v1826 = vpop.f32.mrb[0].mxu0
    %1827 = vmatprep.mubr.f32.mxu0 0.0
    %1828 = vmatmul.mubr.f32.gmra.mrb[0].mxu0 %v1729
    %v1829 = vpop.f32.mrb[0].mxu0
    %v1830 = vadd.f32 0.0, %v1829
    %v1831 = vpop.f32.mrb[0].mxu0
    %1832 = vmatprep.mubr.f32.mxu0 0.0
    %1833 = vmatmul.mubr.f32.gmra.mrb[0].mxu0 %v1730
    %v1834 = vpop.f32.mrb[0].mxu0
    %v1835 = vadd.f32 0.0, %v1834
    %v1836 = vpop.f32.mrb[0].mxu0
    %1837 = vmatprep.mubr.f32.mxu0 0.0
    %1838 = vmatmul.mubr.f32.gmra.mrb[0].mxu0 %v1731
    %v1839 = vpop.f32.mrb[0].mxu0
    %v1840 = vadd.f32 0.0, %v1839
    %v1841 = vpop.f32.mrb[0].mxu0
    %1842 = vmatprep.mubr.f32.mxu0 0.0
    %1843 = vmatmul.mubr.f32.gmra.mrb[0].mxu0 %v1732
    %v1844 = vpop.f32.mrb[0].mxu0
    %v1845 = vadd.f32 0.0, %v1844
    %v1846 = vpop.f32.mrb[0].mxu0
    %1847 = vmatprep.mubr.f32.mxu0 0.0
    %1848 = vmatmul.mubr.f32.gmra.mrb[0].mxu0 %v1733
    %v1849 = vpop.f32.mrb[0].mxu0
    %v1850 = vadd.f32 0.0, %v1849
    %v1851 = vpop.f32.mrb[0].mxu0
    %1852 = vmatprep.mubr.f32.mxu0 0.0
    %1853 = vmatmul.mubr.f32.gmra.mrb[0].mxu0 %v1734
    %v1854 = vpop.f32.mrb[0].mxu0
    %v1855 = vadd.f32 0.0, %v1854
    %v1856 = vpop.f32.mrb[0].mxu0
    %1857 = vmatprep.mubr.f32.mxu0 0.0
    %1858 = vmatmul.mubr.f32.gmra.mrb[0].mxu0 %v1735
    %v1859 = vpop.f32.mrb[0].mxu0
    %v1860 = vadd.f32 0.0, %v1859
    %v1861 = vpop.f32.mrb[0].mxu0
    %1862 = vmatprep.mubr.f32.mxu0 0.0
    %1863 = vmatmul.mubr.f32.gmra.mrb[0].mxu0 %v1736
    %v1864 = vpop.f32.mrb[0].mxu0
    %v1865 = vadd.f32 0.0, %v1864
    %v1866 = vpop.f32.mrb[0].mxu0
    %1867 = vmatprep.mubr.f32.mxu0 0.0
    %1868 = vmatmul.mubr.f32.gmra.mrb[0].mxu0 %v1737
    %v1869 = vpop.f32.mrb[0].mxu0
    %v1870 = vadd.f32 0.0, %v1869
    %v1871 = vpop.f32.mrb[0].mxu0
    %1872 = vmatprep.mubr.f32.mxu0 0.0
    %1873 = vmatmul.mubr.f32.gmra.mrb[0].mxu0 %v1738
    %v1874 = vpop.f32.mrb[0].mxu0
    %v1875 = vadd.f32 0.0, %v1874
    %v1876 = vpop.f32.mrb[0].mxu0
    %1877 = vmatprep.mubr.f32.mxu0 0.0
    %1878 = vmatmul.mubr.f32.gmra.mrb[0].mxu0 %v1739
    %v1879 = vpop.f32.mrb[0].mxu0
    %v1880 = vadd.f32 0.0, %v1879
    %v1881 = vpop.f32.mrb[0].mxu0
    %1882 = vmatprep.mubr.f32.mxu0 0.0
    %1883 = vmatmul.mubr.f32.gmra.mrb[0].mxu0 %v1740
    %v1884 = vpop.f32.mrb[0].mxu0
    %v1885 = vadd.f32 0.0, %v1884
    %v1886 = vpop.f32.mrb[0].mxu0
    %1887 = vmatprep.mubr.f32.mxu0 0.0
    %1888 = vmatmul.mubr.f32.gmra.mrb[0].mxu0 %v1741
    %v1889 = vpop.f32.mrb[0].mxu0
    %v1890 = vadd.f32 0.0, %v1889
    %v1891 = vpop.f32.mrb[0].mxu0
    %1892 = vdwg.mxu0
    %v1893 = vadd.f32 %v1714, %v1825
    %v1894 = vadd.f32 %v1715, %v1830
    %v1895 = vadd.f32 %v1716, %v1835
    %v1896 = vadd.f32 %v1717, %v1840
    %v1897 = vadd.f32 %v1718, %v1845
    %v1898 = vadd.f32 %v1719, %v1850
    %v1899 = vadd.f32 %v1720, %v1855
    %v1900 = vadd.f32 %v1721, %v1860
    %v1901 = vadd.f32 %v1722, %v1865
    %v1902 = vadd.f32 %v1723, %v1870
    %v1903 = vadd.f32 %v1724, %v1875
    %v1904 = vadd.f32 %v1725, %v1880
    %v1905 = vadd.f32 %v1726, %v1885
    %v1906 = vadd.f32 %v1727, %v1890
    %v1907 = vld [vmem:[#allocation2 + $0x9] sm:$0xff]
    %v1908 = vld [vmem:[#allocation2 + $0x11] sm:$0xff]
    %v1909 = vld [vmem:[#allocation2 + $0x19] sm:$0xff]
    %v1910 = vld [vmem:[#allocation2 + $0x21] sm:$0xff]
    %v1911 = vld [vmem:[#allocation2 + $0x29] sm:$0xff]
    %v1912 = vld [vmem:[#allocation2 + $0x31] sm:$0xff]
    %v1913 = vld [vmem:[#allocation2 + $0x39] sm:$0xff]
    %v1914 = vld [vmem:[#allocation2 + $0x41] sm:$0xff]
    %v1915 = vld [vmem:[#allocation2 + $0x49] sm:$0xff]
    %v1916 = vld [vmem:[#allocation2 + $0x51] sm:$0xff]
    %v1917 = vld [vmem:[#allocation2 + $0x59] sm:$0xff]
    %v1918 = vld [vmem:[#allocation2 + $0x61] sm:$0xff]
    %v1919 = vld [vmem:[#allocation2 + $0x69] sm:$0xff]
    %v1920 = vld [vmem:[#allocation2 + $0x71] sm:$0xff]
    %v1921 = vld [vmem:[#allocation15 + $0x300] sm:$0xff]
    %v1922 = vld [vmem:[#allocation15 + $0x308] sm:$0xff]
    %v1923 = vld [vmem:[#allocation15 + $0x310] sm:$0xff]
    %v1924 = vld [vmem:[#allocation15 + $0x318] sm:$0xff]
    %v1925 = vld [vmem:[#allocation15 + $0x320] sm:$0xff]
    %v1926 = vld [vmem:[#allocation15 + $0x328] sm:$0xff]
    %v1927 = vld [vmem:[#allocation15 + $0x330] sm:$0xff]
    %v1928 = vld [vmem:[#allocation15 + $0x338] sm:$0xff]
    %v1929 = vld [vmem:[#allocation15 + $0x340] sm:$0xff]
    %v1930 = vld [vmem:[#allocation15 + $0x348] sm:$0xff]
    %v1931 = vld [vmem:[#allocation15 + $0x350] sm:$0xff]
    %v1932 = vld [vmem:[#allocation15 + $0x358] sm:$0xff]
    %v1933 = vld [vmem:[#allocation15 + $0x360] sm:$0xff]
    %v1934 = vld [vmem:[#allocation15 + $0x368] sm:$0xff]
    %v1935 = vld [vmem:[#allocation15 + $0x370] sm:$0xff]
    %v1936 = vld [vmem:[#allocation15 + $0x378] sm:$0xff]
    %1937 = vmatprep.subr.mxu0 0.0
    %1938 = vmatpush1.msra.mxu0 %v1921
    %1939 = vmatprep.subr.mxu0 0.0
    %1940 = vmatpush1.msra.mxu0 %v1922
    %1941 = vmatprep.subr.mxu0 0.0
    %1942 = vmatpush1.msra.mxu0 %v1923
    %1943 = vmatprep.subr.mxu0 0.0
    %1944 = vmatpush1.msra.mxu0 %v1924
    %1945 = vmatprep.subr.mxu0 0.0
    %1946 = vmatpush1.msra.mxu0 %v1925
    %1947 = vmatprep.subr.mxu0 0.0
    %1948 = vmatpush1.msra.mxu0 %v1926
    %1949 = vmatprep.subr.mxu0 0.0
    %1950 = vmatpush1.msra.mxu0 %v1927
    %1951 = vmatprep.subr.mxu0 0.0
    %1952 = vmatpush1.msra.mxu0 %v1928
    %1953 = vmatprep.subr.mxu0 0.0
    %1954 = vmatpush1.msra.mxu0 %v1929
    %1955 = vmatprep.subr.mxu0 0.0
    %1956 = vmatpush1.msra.mxu0 %v1930
    %1957 = vmatprep.subr.mxu0 0.0
    %1958 = vmatpush1.msra.mxu0 %v1931
    %1959 = vmatprep.subr.mxu0 0.0
    %1960 = vmatpush1.msra.mxu0 %v1932
    %1961 = vmatprep.subr.mxu0 0.0
    %1962 = vmatpush1.msra.mxu0 %v1933
    %1963 = vmatprep.subr.mxu0 0.0
    %1964 = vmatpush1.msra.mxu0 %v1934
    %1965 = vmatprep.subr.mxu0 0.0
    %1966 = vmatpush1.msra.mxu0 %v1935
    %1967 = vmatprep.subr.mxu0 0.0
    %1968 = vmatpush1.msra.mxu0 %v1936
    %1969 = vmatprep.subr.mxu0 0.0
    %1970 = vmatpush1.msra.mxu0 0.0
    %1971 = vmatprep.subr.mxu0 0.0
    %1972 = vmatpush1.msra.mxu0 0.0
    %1973 = vmatprep.subr.mxu0 0.0
    %1974 = vmatpush1.msra.mxu0 0.0
    %1975 = vmatprep.subr.mxu0 0.0
    %1976 = vmatpush1.msra.mxu0 0.0
    %1977 = vmatprep.subr.mxu0 0.0
    %1978 = vmatpush1.msra.mxu0 0.0
    %1979 = vmatprep.subr.mxu0 0.0
    %1980 = vmatpush1.msra.mxu0 0.0
    %1981 = vmatprep.subr.mxu0 0.0
    %1982 = vmatpush1.msra.mxu0 0.0
    %1983 = vmatprep.subr.mxu0 0.0
    %1984 = vmatpush1.msra.mxu0 0.0
    %1985 = vmatprep.subr.mxu0 0.0
    %1986 = vmatpush1.msra.mxu0 0.0
    %1987 = vmatprep.subr.mxu0 0.0
    %1988 = vmatpush1.msra.mxu0 0.0
    %1989 = vmatprep.subr.mxu0 0.0
    %1990 = vmatpush1.msra.mxu0 0.0
    %1991 = vmatprep.subr.mxu0 0.0
    %1992 = vmatpush1.msra.mxu0 0.0
    %1993 = vmatprep.subr.mxu0 0.0
    %1994 = vmatpush1.msra.mxu0 0.0
    %1995 = vmatprep.subr.mxu0 0.0
    %1996 = vmatpush1.msra.mxu0 0.0
    %1997 = vmatprep.subr.mxu0 0.0
    %1998 = vmatpush1.msra.mxu0 0.0
    %1999 = vmatprep.subr.mxu0 0.0
    %2000 = vmatpush1.msra.mxu0 0.0
    %2001 = vmatprep.mubr.f32.mxu0 0.0
    %2002 = vmatmul.mubr.f32.gmra.mrb[0].mxu0 %v1907
    %v2003 = vpop.f32.mrb[0].mxu0
    %v2004 = vadd.f32 0.0, %v2003
    %v2005 = vpop.f32.mrb[0].mxu0
    %2006 = vmatprep.mubr.f32.mxu0 0.0
    %2007 = vmatmul.mubr.f32.gmra.mrb[0].mxu0 %v1908
    %v2008 = vpop.f32.mrb[0].mxu0
    %v2009 = vadd.f32 0.0, %v2008
    %v2010 = vpop.f32.mrb[0].mxu0
    %2011 = vmatprep.mubr.f32.mxu0 0.0
    %2012 = vmatmul.mubr.f32.gmra.mrb[0].mxu0 %v1909
    %v2013 = vpop.f32.mrb[0].mxu0
    %v2014 = vadd.f32 0.0, %v2013
    %v2015 = vpop.f32.mrb[0].mxu0
    %2016 = vmatprep.mubr.f32.mxu0 0.0
    %2017 = vmatmul.mubr.f32.gmra.mrb[0].mxu0 %v1910
    %v2018 = vpop.f32.mrb[0].mxu0
    %v2019 = vadd.f32 0.0, %v2018
    %v2020 = vpop.f32.mrb[0].mxu0
    %2021 = vmatprep.mubr.f32.mxu0 0.0
    %2022 = vmatmul.mubr.f32.gmra.mrb[0].mxu0 %v1911
    %v2023 = vpop.f32.mrb[0].mxu0
    %v2024 = vadd.f32 0.0, %v2023
    %v2025 = vpop.f32.mrb[0].mxu0
    %2026 = vmatprep.mubr.f32.mxu0 0.0
    %2027 = vmatmul.mubr.f32.gmra.mrb[0].mxu0 %v1912
    %v2028 = vpop.f32.mrb[0].mxu0
    %v2029 = vadd.f32 0.0, %v2028
    %v2030 = vpop.f32.mrb[0].mxu0
    %2031 = vmatprep.mubr.f32.mxu0 0.0
    %2032 = vmatmul.mubr.f32.gmra.mrb[0].mxu0 %v1913
    %v2033 = vpop.f32.mrb[0].mxu0
    %v2034 = vadd.f32 0.0, %v2033
    %v2035 = vpop.f32.mrb[0].mxu0
    %2036 = vmatprep.mubr.f32.mxu0 0.0
    %2037 = vmatmul.mubr.f32.gmra.mrb[0].mxu0 %v1914
    %v2038 = vpop.f32.mrb[0].mxu0
    %v2039 = vadd.f32 0.0, %v2038
    %v2040 = vpop.f32.mrb[0].mxu0
    %2041 = vmatprep.mubr.f32.mxu0 0.0
    %2042 = vmatmul.mubr.f32.gmra.mrb[0].mxu0 %v1915
    %v2043 = vpop.f32.mrb[0].mxu0
    %v2044 = vadd.f32 0.0, %v2043
    %v2045 = vpop.f32.mrb[0].mxu0
    %2046 = vmatprep.mubr.f32.mxu0 0.0
    %2047 = vmatmul.mubr.f32.gmra.mrb[0].mxu0 %v1916
    %v2048 = vpop.f32.mrb[0].mxu0
    %v2049 = vadd.f32 0.0, %v2048
    %v2050 = vpop.f32.mrb[0].mxu0
    %2051 = vmatprep.mubr.f32.mxu0 0.0
    %2052 = vmatmul.mubr.f32.gmra.mrb[0].mxu0 %v1917
    %v2053 = vpop.f32.mrb[0].mxu0
    %v2054 = vadd.f32 0.0, %v2053
    %v2055 = vpop.f32.mrb[0].mxu0
    %2056 = vmatprep.mubr.f32.mxu0 0.0
    %2057 = vmatmul.mubr.f32.gmra.mrb[0].mxu0 %v1918
    %v2058 = vpop.f32.mrb[0].mxu0
    %v2059 = vadd.f32 0.0, %v2058
    %v2060 = vpop.f32.mrb[0].mxu0
    %2061 = vmatprep.mubr.f32.mxu0 0.0
    %2062 = vmatmul.mubr.f32.gmra.mrb[0].mxu0 %v1919
    %v2063 = vpop.f32.mrb[0].mxu0
    %v2064 = vadd.f32 0.0, %v2063
    %v2065 = vpop.f32.mrb[0].mxu0
    %2066 = vmatprep.mubr.f32.mxu0 0.0
    %2067 = vmatmul.mubr.f32.gmra.mrb[0].mxu0 %v1920
    %v2068 = vpop.f32.mrb[0].mxu0
    %v2069 = vadd.f32 0.0, %v2068
    %v2070 = vpop.f32.mrb[0].mxu0
    %2071 = vdwg.mxu0
    %v2072 = vadd.f32 %v1893, %v2004
    %v2073 = vadd.f32 %v1894, %v2009
    %v2074 = vadd.f32 %v1895, %v2014
    %v2075 = vadd.f32 %v1896, %v2019
    %v2076 = vadd.f32 %v1897, %v2024
    %v2077 = vadd.f32 %v1898, %v2029
    %v2078 = vadd.f32 %v1899, %v2034
    %v2079 = vadd.f32 %v1900, %v2039
    %v2080 = vadd.f32 %v1901, %v2044
    %v2081 = vadd.f32 %v1902, %v2049
    %v2082 = vadd.f32 %v1903, %v2054
    %v2083 = vadd.f32 %v1904, %v2059
    %v2084 = vadd.f32 %v1905, %v2064
    %v2085 = vadd.f32 %v1906, %v2069
    %v2086 = vld [vmem:[#allocation2 + $0xa] sm:$0xff]
    %v2087 = vld [vmem:[#allocation2 + $0x12] sm:$0xff]
    %v2088 = vld [vmem:[#allocation2 + $0x1a] sm:$0xff]
    %v2089 = vld [vmem:[#allocation2 + $0x22] sm:$0xff]
    %v2090 = vld [vmem:[#allocation2 + $0x2a] sm:$0xff]
    %v2091 = vld [vmem:[#allocation2 + $0x32] sm:$0xff]
    %v2092 = vld [vmem:[#allocation2 + $0x3a] sm:$0xff]
    %v2093 = vld [vmem:[#allocation2 + $0x42] sm:$0xff]
    %v2094 = vld [vmem:[#allocation2 + $0x4a] sm:$0xff]
    %v2095 = vld [vmem:[#allocation2 + $0x52] sm:$0xff]
    %v2096 = vld [vmem:[#allocation2 + $0x5a] sm:$0xff]
    %v2097 = vld [vmem:[#allocation2 + $0x62] sm:$0xff]
    %v2098 = vld [vmem:[#allocation2 + $0x6a] sm:$0xff]
    %v2099 = vld [vmem:[#allocation2 + $0x72] sm:$0xff]
    %v2100 = vld [vmem:[#allocation15 + $0x380] sm:$0xff]
    %v2101 = vld [vmem:[#allocation15 + $0x388] sm:$0xff]
    %v2102 = vld [vmem:[#allocation15 + $0x390] sm:$0xff]
    %v2103 = vld [vmem:[#allocation15 + $0x398] sm:$0xff]
    %v2104 = vld [vmem:[#allocation15 + $0x3a0] sm:$0xff]
    %v2105 = vld [vmem:[#allocation15 + $0x3a8] sm:$0xff]
    %v2106 = vld [vmem:[#allocation15 + $0x3b0] sm:$0xff]
    %v2107 = vld [vmem:[#allocation15 + $0x3b8] sm:$0xff]
    %v2108 = vld [vmem:[#allocation15 + $0x3c0] sm:$0xff]
    %v2109 = vld [vmem:[#allocation15 + $0x3c8] sm:$0xff]
    %v2110 = vld [vmem:[#allocation15 + $0x3d0] sm:$0xff]
    %v2111 = vld [vmem:[#allocation15 + $0x3d8] sm:$0xff]
    %v2112 = vld [vmem:[#allocation15 + $0x3e0] sm:$0xff]
    %v2113 = vld [vmem:[#allocation15 + $0x3e8] sm:$0xff]
    %v2114 = vld [vmem:[#allocation15 + $0x3f0] sm:$0xff]
    %v2115 = vld [vmem:[#allocation15 + $0x3f8] sm:$0xff]
    %2116 = vmatprep.subr.mxu0 0.0
    %2117 = vmatpush1.msra.mxu0 %v2100
    %2118 = vmatprep.subr.mxu0 0.0
    %2119 = vmatpush1.msra.mxu0 %v2101
    %2120 = vmatprep.subr.mxu0 0.0
    %2121 = vmatpush1.msra.mxu0 %v2102
    %2122 = vmatprep.subr.mxu0 0.0
    %2123 = vmatpush1.msra.mxu0 %v2103
    %2124 = vmatprep.subr.mxu0 0.0
    %2125 = vmatpush1.msra.mxu0 %v2104
    %2126 = vmatprep.subr.mxu0 0.0
    %2127 = vmatpush1.msra.mxu0 %v2105
    %2128 = vmatprep.subr.mxu0 0.0
    %2129 = vmatpush1.msra.mxu0 %v2106
    %2130 = vmatprep.subr.mxu0 0.0
    %2131 = vmatpush1.msra.mxu0 %v2107
    %2132 = vmatprep.subr.mxu0 0.0
    %2133 = vmatpush1.msra.mxu0 %v2108
    %2134 = vmatprep.subr.mxu0 0.0
    %2135 = vmatpush1.msra.mxu0 %v2109
    %2136 = vmatprep.subr.mxu0 0.0
    %2137 = vmatpush1.msra.mxu0 %v2110
    %2138 = vmatprep.subr.mxu0 0.0
    %2139 = vmatpush1.msra.mxu0 %v2111
    %2140 = vmatprep.subr.mxu0 0.0
    %2141 = vmatpush1.msra.mxu0 %v2112
    %2142 = vmatprep.subr.mxu0 0.0
    %2143 = vmatpush1.msra.mxu0 %v2113
    %2144 = vmatprep.subr.mxu0 0.0
    %2145 = vmatpush1.msra.mxu0 %v2114
    %2146 = vmatprep.subr.mxu0 0.0
    %2147 = vmatpush1.msra.mxu0 %v2115
    %2148 = vmatprep.subr.mxu0 0.0
    %2149 = vmatpush1.msra.mxu0 0.0
    %2150 = vmatprep.subr.mxu0 0.0
    %2151 = vmatpush1.msra.mxu0 0.0
    %2152 = vmatprep.subr.mxu0 0.0
    %2153 = vmatpush1.msra.mxu0 0.0
    %2154 = vmatprep.subr.mxu0 0.0
    %2155 = vmatpush1.msra.mxu0 0.0
    %2156 = vmatprep.subr.mxu0 0.0
    %2157 = vmatpush1.msra.mxu0 0.0
    %2158 = vmatprep.subr.mxu0 0.0
    %2159 = vmatpush1.msra.mxu0 0.0
    %2160 = vmatprep.subr.mxu0 0.0
    %2161 = vmatpush1.msra.mxu0 0.0
    %2162 = vmatprep.subr.mxu0 0.0
    %2163 = vmatpush1.msra.mxu0 0.0
    %2164 = vmatprep.subr.mxu0 0.0
    %2165 = vmatpush1.msra.mxu0 0.0
    %2166 = vmatprep.subr.mxu0 0.0
    %2167 = vmatpush1.msra.mxu0 0.0
    %2168 = vmatprep.subr.mxu0 0.0
    %2169 = vmatpush1.msra.mxu0 0.0
    %2170 = vmatprep.subr.mxu0 0.0
    %2171 = vmatpush1.msra.mxu0 0.0
    %2172 = vmatprep.subr.mxu0 0.0
    %2173 = vmatpush1.msra.mxu0 0.0
    %2174 = vmatprep.subr.mxu0 0.0
    %2175 = vmatpush1.msra.mxu0 0.0
    %2176 = vmatprep.subr.mxu0 0.0
    %2177 = vmatpush1.msra.mxu0 0.0
    %2178 = vmatprep.subr.mxu0 0.0
    %2179 = vmatpush1.msra.mxu0 0.0
    %2180 = vmatprep.mubr.f32.mxu0 0.0
    %2181 = vmatmul.mubr.f32.gmra.mrb[0].mxu0 %v2086
    %v2182 = vpop.f32.mrb[0].mxu0
    %v2183 = vadd.f32 0.0, %v2182
    %v2184 = vpop.f32.mrb[0].mxu0
    %2185 = vmatprep.mubr.f32.mxu0 0.0
    %2186 = vmatmul.mubr.f32.gmra.mrb[0].mxu0 %v2087
    %v2187 = vpop.f32.mrb[0].mxu0
    %v2188 = vadd.f32 0.0, %v2187
    %v2189 = vpop.f32.mrb[0].mxu0
    %2190 = vmatprep.mubr.f32.mxu0 0.0
    %2191 = vmatmul.mubr.f32.gmra.mrb[0].mxu0 %v2088
    %v2192 = vpop.f32.mrb[0].mxu0
    %v2193 = vadd.f32 0.0, %v2192
    %v2194 = vpop.f32.mrb[0].mxu0
    %2195 = vmatprep.mubr.f32.mxu0 0.0
    %2196 = vmatmul.mubr.f32.gmra.mrb[0].mxu0 %v2089
    %v2197 = vpop.f32.mrb[0].mxu0
    %v2198 = vadd.f32 0.0, %v2197
    %v2199 = vpop.f32.mrb[0].mxu0
    %2200 = vmatprep.mubr.f32.mxu0 0.0
    %2201 = vmatmul.mubr.f32.gmra.mrb[0].mxu0 %v2090
    %v2202 = vpop.f32.mrb[0].mxu0
    %v2203 = vadd.f32 0.0, %v2202
    %v2204 = vpop.f32.mrb[0].mxu0
    %2205 = vmatprep.mubr.f32.mxu0 0.0
    %2206 = vmatmul.mubr.f32.gmra.mrb[0].mxu0 %v2091
    %v2207 = vpop.f32.mrb[0].mxu0
    %v2208 = vadd.f32 0.0, %v2207
    %v2209 = vpop.f32.mrb[0].mxu0
    %2210 = vmatprep.mubr.f32.mxu0 0.0
    %2211 = vmatmul.mubr.f32.gmra.mrb[0].mxu0 %v2092
    %v2212 = vpop.f32.mrb[0].mxu0
    %v2213 = vadd.f32 0.0, %v2212
    %v2214 = vpop.f32.mrb[0].mxu0
    %2215 = vmatprep.mubr.f32.mxu0 0.0
    %2216 = vmatmul.mubr.f32.gmra.mrb[0].mxu0 %v2093
    %v2217 = vpop.f32.mrb[0].mxu0
    %v2218 = vadd.f32 0.0, %v2217
    %v2219 = vpop.f32.mrb[0].mxu0
    %2220 = vmatprep.mubr.f32.mxu0 0.0
    %2221 = vmatmul.mubr.f32.gmra.mrb[0].mxu0 %v2094
    %v2222 = vpop.f32.mrb[0].mxu0
    %v2223 = vadd.f32 0.0, %v2222
    %v2224 = vpop.f32.mrb[0].mxu0
    %2225 = vmatprep.mubr.f32.mxu0 0.0
    %2226 = vmatmul.mubr.f32.gmra.mrb[0].mxu0 %v2095
    %v2227 = vpop.f32.mrb[0].mxu0
    %v2228 = vadd.f32 0.0, %v2227
    %v2229 = vpop.f32.mrb[0].mxu0
    %2230 = vmatprep.mubr.f32.mxu0 0.0
    %2231 = vmatmul.mubr.f32.gmra.mrb[0].mxu0 %v2096
    %v2232 = vpop.f32.mrb[0].mxu0
    %v2233 = vadd.f32 0.0, %v2232
    %v2234 = vpop.f32.mrb[0].mxu0
    %2235 = vmatprep.mubr.f32.mxu0 0.0
    %2236 = vmatmul.mubr.f32.gmra.mrb[0].mxu0 %v2097
    %v2237 = vpop.f32.mrb[0].mxu0
    %v2238 = vadd.f32 0.0, %v2237
    %v2239 = vpop.f32.mrb[0].mxu0
    %2240 = vmatprep.mubr.f32.mxu0 0.0
    %2241 = vmatmul.mubr.f32.gmra.mrb[0].mxu0 %v2098
    %v2242 = vpop.f32.mrb[0].mxu0
    %v2243 = vadd.f32 0.0, %v2242
    %v2244 = vpop.f32.mrb[0].mxu0
    %2245 = vmatprep.mubr.f32.mxu0 0.0
    %2246 = vmatmul.mubr.f32.gmra.mrb[0].mxu0 %v2099
    %v2247 = vpop.f32.mrb[0].mxu0
    %v2248 = vadd.f32 0.0, %v2247
    %v2249 = vpop.f32.mrb[0].mxu0
    %2250 = vdwg.mxu0
    %v2251 = vadd.f32 %v2072, %v2183
    %v2252 = vadd.f32 %v2073, %v2188
    %v2253 = vadd.f32 %v2074, %v2193
    %v2254 = vadd.f32 %v2075, %v2198
    %v2255 = vadd.f32 %v2076, %v2203
    %v2256 = vadd.f32 %v2077, %v2208
    %v2257 = vadd.f32 %v2078, %v2213
    %v2258 = vadd.f32 %v2079, %v2218
    %v2259 = vadd.f32 %v2080, %v2223
    %v2260 = vadd.f32 %v2081, %v2228
    %v2261 = vadd.f32 %v2082, %v2233
    %v2262 = vadd.f32 %v2083, %v2238
    %v2263 = vadd.f32 %v2084, %v2243
    %v2264 = vadd.f32 %v2085, %v2248
    %v2265 = vld [vmem:[#allocation2 + $0xb] sm:$0xff]
    %v2266 = vld [vmem:[#allocation2 + $0x13] sm:$0xff]
    %v2267 = vld [vmem:[#allocation2 + $0x1b] sm:$0xff]
    %v2268 = vld [vmem:[#allocation2 + $0x23] sm:$0xff]
    %v2269 = vld [vmem:[#allocation2 + $0x2b] sm:$0xff]
    %v2270 = vld [vmem:[#allocation2 + $0x33] sm:$0xff]
    %v2271 = vld [vmem:[#allocation2 + $0x3b] sm:$0xff]
    %v2272 = vld [vmem:[#allocation2 + $0x43] sm:$0xff]
    %v2273 = vld [vmem:[#allocation2 + $0x4b] sm:$0xff]
    %v2274 = vld [vmem:[#allocation2 + $0x53] sm:$0xff]
    %v2275 = vld [vmem:[#allocation2 + $0x5b] sm:$0xff]
    %v2276 = vld [vmem:[#allocation2 + $0x63] sm:$0xff]
    %v2277 = vld [vmem:[#allocation2 + $0x6b] sm:$0xff]
    %v2278 = vld [vmem:[#allocation2 + $0x73] sm:$0xff]
    %v2279 = vld [vmem:[#allocation15 + $0x400] sm:$0xff]
    %v2280 = vld [vmem:[#allocation15 + $0x408] sm:$0xff]
    %v2281 = vld [vmem:[#allocation15 + $0x410] sm:$0xff]
    %v2282 = vld [vmem:[#allocation15 + $0x418] sm:$0xff]
    %v2283 = vld [vmem:[#allocation15 + $0x420] sm:$0xff]
    %v2284 = vld [vmem:[#allocation15 + $0x428] sm:$0xff]
    %v2285 = vld [vmem:[#allocation15 + $0x430] sm:$0xff]
    %v2286 = vld [vmem:[#allocation15 + $0x438] sm:$0xff]
    %v2287 = vld [vmem:[#allocation15 + $0x440] sm:$0xff]
    %v2288 = vld [vmem:[#allocation15 + $0x448] sm:$0xff]
    %v2289 = vld [vmem:[#allocation15 + $0x450] sm:$0xff]
    %v2290 = vld [vmem:[#allocation15 + $0x458] sm:$0xff]
    %v2291 = vld [vmem:[#allocation15 + $0x460] sm:$0xff]
    %v2292 = vld [vmem:[#allocation15 + $0x468] sm:$0xff]
    %v2293 = vld [vmem:[#allocation15 + $0x470] sm:$0xff]
    %v2294 = vld [vmem:[#allocation15 + $0x478] sm:$0xff]
    %2295 = vmatprep.subr.mxu0 0.0
    %2296 = vmatpush1.msra.mxu0 %v2279
    %2297 = vmatprep.subr.mxu0 0.0
    %2298 = vmatpush1.msra.mxu0 %v2280
    %2299 = vmatprep.subr.mxu0 0.0
    %2300 = vmatpush1.msra.mxu0 %v2281
    %2301 = vmatprep.subr.mxu0 0.0
    %2302 = vmatpush1.msra.mxu0 %v2282
    %2303 = vmatprep.subr.mxu0 0.0
    %2304 = vmatpush1.msra.mxu0 %v2283
    %2305 = vmatprep.subr.mxu0 0.0
    %2306 = vmatpush1.msra.mxu0 %v2284
    %2307 = vmatprep.subr.mxu0 0.0
    %2308 = vmatpush1.msra.mxu0 %v2285
    %2309 = vmatprep.subr.mxu0 0.0
    %2310 = vmatpush1.msra.mxu0 %v2286
    %2311 = vmatprep.subr.mxu0 0.0
    %2312 = vmatpush1.msra.mxu0 %v2287
    %2313 = vmatprep.subr.mxu0 0.0
    %2314 = vmatpush1.msra.mxu0 %v2288
    %2315 = vmatprep.subr.mxu0 0.0
    %2316 = vmatpush1.msra.mxu0 %v2289
    %2317 = vmatprep.subr.mxu0 0.0
    %2318 = vmatpush1.msra.mxu0 %v2290
    %2319 = vmatprep.subr.mxu0 0.0
    %2320 = vmatpush1.msra.mxu0 %v2291
    %2321 = vmatprep.subr.mxu0 0.0
    %2322 = vmatpush1.msra.mxu0 %v2292
    %2323 = vmatprep.subr.mxu0 0.0
    %2324 = vmatpush1.msra.mxu0 %v2293
    %2325 = vmatprep.subr.mxu0 0.0
    %2326 = vmatpush1.msra.mxu0 %v2294
    %2327 = vmatprep.subr.mxu0 0.0
    %2328 = vmatpush1.msra.mxu0 0.0
    %2329 = vmatprep.subr.mxu0 0.0
    %2330 = vmatpush1.msra.mxu0 0.0
    %2331 = vmatprep.subr.mxu0 0.0
    %2332 = vmatpush1.msra.mxu0 0.0
    %2333 = vmatprep.subr.mxu0 0.0
    %2334 = vmatpush1.msra.mxu0 0.0
    %2335 = vmatprep.subr.mxu0 0.0
    %2336 = vmatpush1.msra.mxu0 0.0
    %2337 = vmatprep.subr.mxu0 0.0
    %2338 = vmatpush1.msra.mxu0 0.0
    %2339 = vmatprep.subr.mxu0 0.0
    %2340 = vmatpush1.msra.mxu0 0.0
    %2341 = vmatprep.subr.mxu0 0.0
    %2342 = vmatpush1.msra.mxu0 0.0
    %2343 = vmatprep.subr.mxu0 0.0
    %2344 = vmatpush1.msra.mxu0 0.0
    %2345 = vmatprep.subr.mxu0 0.0
    %2346 = vmatpush1.msra.mxu0 0.0
    %2347 = vmatprep.subr.mxu0 0.0
    %2348 = vmatpush1.msra.mxu0 0.0
    %2349 = vmatprep.subr.mxu0 0.0
    %2350 = vmatpush1.msra.mxu0 0.0
    %2351 = vmatprep.subr.mxu0 0.0
    %2352 = vmatpush1.msra.mxu0 0.0
    %2353 = vmatprep.subr.mxu0 0.0
    %2354 = vmatpush1.msra.mxu0 0.0
    %2355 = vmatprep.subr.mxu0 0.0
    %2356 = vmatpush1.msra.mxu0 0.0
    %2357 = vmatprep.subr.mxu0 0.0
    %2358 = vmatpush1.msra.mxu0 0.0
    %2359 = vmatprep.mubr.f32.mxu0 0.0
    %2360 = vmatmul.mubr.f32.gmra.mrb[0].mxu0 %v2265
    %v2361 = vpop.f32.mrb[0].mxu0
    %v2362 = vadd.f32 0.0, %v2361
    %v2363 = vpop.f32.mrb[0].mxu0
    %2364 = vmatprep.mubr.f32.mxu0 0.0
    %2365 = vmatmul.mubr.f32.gmra.mrb[0].mxu0 %v2266
    %v2366 = vpop.f32.mrb[0].mxu0
    %v2367 = vadd.f32 0.0, %v2366
    %v2368 = vpop.f32.mrb[0].mxu0
    %2369 = vmatprep.mubr.f32.mxu0 0.0
    %2370 = vmatmul.mubr.f32.gmra.mrb[0].mxu0 %v2267
    %v2371 = vpop.f32.mrb[0].mxu0
    %v2372 = vadd.f32 0.0, %v2371
    %v2373 = vpop.f32.mrb[0].mxu0
    %2374 = vmatprep.mubr.f32.mxu0 0.0
    %2375 = vmatmul.mubr.f32.gmra.mrb[0].mxu0 %v2268
    %v2376 = vpop.f32.mrb[0].mxu0
    %v2377 = vadd.f32 0.0, %v2376
    %v2378 = vpop.f32.mrb[0].mxu0
    %2379 = vmatprep.mubr.f32.mxu0 0.0
    %2380 = vmatmul.mubr.f32.gmra.mrb[0].mxu0 %v2269
    %v2381 = vpop.f32.mrb[0].mxu0
    %v2382 = vadd.f32 0.0, %v2381
    %v2383 = vpop.f32.mrb[0].mxu0
    %2384 = vmatprep.mubr.f32.mxu0 0.0
    %2385 = vmatmul.mubr.f32.gmra.mrb[0].mxu0 %v2270
    %v2386 = vpop.f32.mrb[0].mxu0
    %v2387 = vadd.f32 0.0, %v2386
    %v2388 = vpop.f32.mrb[0].mxu0
    %2389 = vmatprep.mubr.f32.mxu0 0.0
    %2390 = vmatmul.mubr.f32.gmra.mrb[0].mxu0 %v2271
    %v2391 = vpop.f32.mrb[0].mxu0
    %v2392 = vadd.f32 0.0, %v2391
    %v2393 = vpop.f32.mrb[0].mxu0
    %2394 = vmatprep.mubr.f32.mxu0 0.0
    %2395 = vmatmul.mubr.f32.gmra.mrb[0].mxu0 %v2272
    %v2396 = vpop.f32.mrb[0].mxu0
    %v2397 = vadd.f32 0.0, %v2396
    %v2398 = vpop.f32.mrb[0].mxu0
    %2399 = vmatprep.mubr.f32.mxu0 0.0
    %2400 = vmatmul.mubr.f32.gmra.mrb[0].mxu0 %v2273
    %v2401 = vpop.f32.mrb[0].mxu0
    %v2402 = vadd.f32 0.0, %v2401
    %v2403 = vpop.f32.mrb[0].mxu0
    %2404 = vmatprep.mubr.f32.mxu0 0.0
    %2405 = vmatmul.mubr.f32.gmra.mrb[0].mxu0 %v2274
    %v2406 = vpop.f32.mrb[0].mxu0
    %v2407 = vadd.f32 0.0, %v2406
    %v2408 = vpop.f32.mrb[0].mxu0
    %2409 = vmatprep.mubr.f32.mxu0 0.0
    %2410 = vmatmul.mubr.f32.gmra.mrb[0].mxu0 %v2275
    %v2411 = vpop.f32.mrb[0].mxu0
    %v2412 = vadd.f32 0.0, %v2411
    %v2413 = vpop.f32.mrb[0].mxu0
    %2414 = vmatprep.mubr.f32.mxu0 0.0
    %2415 = vmatmul.mubr.f32.gmra.mrb[0].mxu0 %v2276
    %v2416 = vpop.f32.mrb[0].mxu0
    %v2417 = vadd.f32 0.0, %v2416
    %v2418 = vpop.f32.mrb[0].mxu0
    %2419 = vmatprep.mubr.f32.mxu0 0.0
    %2420 = vmatmul.mubr.f32.gmra.mrb[0].mxu0 %v2277
    %v2421 = vpop.f32.mrb[0].mxu0
    %v2422 = vadd.f32 0.0, %v2421
    %v2423 = vpop.f32.mrb[0].mxu0
    %2424 = vmatprep.mubr.f32.mxu0 0.0
    %2425 = vmatmul.mubr.f32.gmra.mrb[0].mxu0 %v2278
    %v2426 = vpop.f32.mrb[0].mxu0
    %v2427 = vadd.f32 0.0, %v2426
    %v2428 = vpop.f32.mrb[0].mxu0
    %2429 = vdwg.mxu0
    %v2430 = vadd.f32 %v2251, %v2362
    %v2431 = vadd.f32 %v2252, %v2367
    %v2432 = vadd.f32 %v2253, %v2372
    %v2433 = vadd.f32 %v2254, %v2377
    %v2434 = vadd.f32 %v2255, %v2382
    %v2435 = vadd.f32 %v2256, %v2387
    %v2436 = vadd.f32 %v2257, %v2392
    %v2437 = vadd.f32 %v2258, %v2397
    %v2438 = vadd.f32 %v2259, %v2402
    %v2439 = vadd.f32 %v2260, %v2407
    %v2440 = vadd.f32 %v2261, %v2412
    %v2441 = vadd.f32 %v2262, %v2417
    %v2442 = vadd.f32 %v2263, %v2422
    %v2443 = vadd.f32 %v2264, %v2427
    %v2444 = vld [vmem:[#allocation2 + $0xc] sm:$0xff]
    %v2445 = vld [vmem:[#allocation2 + $0x14] sm:$0xff]
    %v2446 = vld [vmem:[#allocation2 + $0x1c] sm:$0xff]
    %v2447 = vld [vmem:[#allocation2 + $0x24] sm:$0xff]
    %v2448 = vld [vmem:[#allocation2 + $0x2c] sm:$0xff]
    %v2449 = vld [vmem:[#allocation2 + $0x34] sm:$0xff]
    %v2450 = vld [vmem:[#allocation2 + $0x3c] sm:$0xff]
    %v2451 = vld [vmem:[#allocation2 + $0x44] sm:$0xff]
    %v2452 = vld [vmem:[#allocation2 + $0x4c] sm:$0xff]
    %v2453 = vld [vmem:[#allocation2 + $0x54] sm:$0xff]
    %v2454 = vld [vmem:[#allocation2 + $0x5c] sm:$0xff]
    %v2455 = vld [vmem:[#allocation2 + $0x64] sm:$0xff]
    %v2456 = vld [vmem:[#allocation2 + $0x6c] sm:$0xff]
    %v2457 = vld [vmem:[#allocation2 + $0x74] sm:$0xff]
    %v2458 = vld [vmem:[#allocation15 + $0x480] sm:$0xff]
    %v2459 = vld [vmem:[#allocation15 + $0x488] sm:$0xff]
    %v2460 = vld [vmem:[#allocation15 + $0x490] sm:$0xff]
    %v2461 = vld [vmem:[#allocation15 + $0x498] sm:$0xff]
    %v2462 = vld [vmem:[#allocation15 + $0x4a0] sm:$0xff]
    %v2463 = vld [vmem:[#allocation15 + $0x4a8] sm:$0xff]
    %v2464 = vld [vmem:[#allocation15 + $0x4b0] sm:$0xff]
    %v2465 = vld [vmem:[#allocation15 + $0x4b8] sm:$0xff]
    %v2466 = vld [vmem:[#allocation15 + $0x4c0] sm:$0xff]
    %v2467 = vld [vmem:[#allocation15 + $0x4c8] sm:$0xff]
    %v2468 = vld [vmem:[#allocation15 + $0x4d0] sm:$0xff]
    %v2469 = vld [vmem:[#allocation15 + $0x4d8] sm:$0xff]
    %v2470 = vld [vmem:[#allocation15 + $0x4e0] sm:$0xff]
    %v2471 = vld [vmem:[#allocation15 + $0x4e8] sm:$0xff]
    %v2472 = vld [vmem:[#allocation15 + $0x4f0] sm:$0xff]
    %v2473 = vld [vmem:[#allocation15 + $0x4f8] sm:$0xff]
    %2474 = vmatprep.subr.mxu0 0.0
    %2475 = vmatpush1.msra.mxu0 %v2458
    %2476 = vmatprep.subr.mxu0 0.0
    %2477 = vmatpush1.msra.mxu0 %v2459
    %2478 = vmatprep.subr.mxu0 0.0
    %2479 = vmatpush1.msra.mxu0 %v2460
    %2480 = vmatprep.subr.mxu0 0.0
    %2481 = vmatpush1.msra.mxu0 %v2461
    %2482 = vmatprep.subr.mxu0 0.0
    %2483 = vmatpush1.msra.mxu0 %v2462
    %2484 = vmatprep.subr.mxu0 0.0
    %2485 = vmatpush1.msra.mxu0 %v2463
    %2486 = vmatprep.subr.mxu0 0.0
    %2487 = vmatpush1.msra.mxu0 %v2464
    %2488 = vmatprep.subr.mxu0 0.0
    %2489 = vmatpush1.msra.mxu0 %v2465
    %2490 = vmatprep.subr.mxu0 0.0
    %2491 = vmatpush1.msra.mxu0 %v2466
    %2492 = vmatprep.subr.mxu0 0.0
    %2493 = vmatpush1.msra.mxu0 %v2467
    %2494 = vmatprep.subr.mxu0 0.0
    %2495 = vmatpush1.msra.mxu0 %v2468
    %2496 = vmatprep.subr.mxu0 0.0
    %2497 = vmatpush1.msra.mxu0 %v2469
    %2498 = vmatprep.subr.mxu0 0.0
    %2499 = vmatpush1.msra.mxu0 %v2470
    %2500 = vmatprep.subr.mxu0 0.0
    %2501 = vmatpush1.msra.mxu0 %v2471
    %2502 = vmatprep.subr.mxu0 0.0
    %2503 = vmatpush1.msra.mxu0 %v2472
    %2504 = vmatprep.subr.mxu0 0.0
    %2505 = vmatpush1.msra.mxu0 %v2473
    %2506 = vmatprep.subr.mxu0 0.0
    %2507 = vmatpush1.msra.mxu0 0.0
    %2508 = vmatprep.subr.mxu0 0.0
    %2509 = vmatpush1.msra.mxu0 0.0
    %2510 = vmatprep.subr.mxu0 0.0
    %2511 = vmatpush1.msra.mxu0 0.0
    %2512 = vmatprep.subr.mxu0 0.0
    %2513 = vmatpush1.msra.mxu0 0.0
    %2514 = vmatprep.subr.mxu0 0.0
    %2515 = vmatpush1.msra.mxu0 0.0
    %2516 = vmatprep.subr.mxu0 0.0
    %2517 = vmatpush1.msra.mxu0 0.0
    %2518 = vmatprep.subr.mxu0 0.0
    %2519 = vmatpush1.msra.mxu0 0.0
    %2520 = vmatprep.subr.mxu0 0.0
    %2521 = vmatpush1.msra.mxu0 0.0
    %2522 = vmatprep.subr.mxu0 0.0
    %2523 = vmatpush1.msra.mxu0 0.0
    %2524 = vmatprep.subr.mxu0 0.0
    %2525 = vmatpush1.msra.mxu0 0.0
    %2526 = vmatprep.subr.mxu0 0.0
    %2527 = vmatpush1.msra.mxu0 0.0
    %2528 = vmatprep.subr.mxu0 0.0
    %2529 = vmatpush1.msra.mxu0 0.0
    %2530 = vmatprep.subr.mxu0 0.0
    %2531 = vmatpush1.msra.mxu0 0.0
    %2532 = vmatprep.subr.mxu0 0.0
    %2533 = vmatpush1.msra.mxu0 0.0
    %2534 = vmatprep.subr.mxu0 0.0
    %2535 = vmatpush1.msra.mxu0 0.0
    %2536 = vmatprep.subr.mxu0 0.0
    %2537 = vmatpush1.msra.mxu0 0.0
    %2538 = vmatprep.mubr.f32.mxu0 0.0
    %2539 = vmatmul.mubr.f32.gmra.mrb[0].mxu0 %v2444
    %v2540 = vpop.f32.mrb[0].mxu0
    %v2541 = vadd.f32 0.0, %v2540
    %v2542 = vpop.f32.mrb[0].mxu0
    %2543 = vmatprep.mubr.f32.mxu0 0.0
    %2544 = vmatmul.mubr.f32.gmra.mrb[0].mxu0 %v2445
    %v2545 = vpop.f32.mrb[0].mxu0
    %v2546 = vadd.f32 0.0, %v2545
    %v2547 = vpop.f32.mrb[0].mxu0
    %2548 = vmatprep.mubr.f32.mxu0 0.0
    %2549 = vmatmul.mubr.f32.gmra.mrb[0].mxu0 %v2446
    %v2550 = vpop.f32.mrb[0].mxu0
    %v2551 = vadd.f32 0.0, %v2550
    %v2552 = vpop.f32.mrb[0].mxu0
    %2553 = vmatprep.mubr.f32.mxu0 0.0
    %2554 = vmatmul.mubr.f32.gmra.mrb[0].mxu0 %v2447
    %v2555 = vpop.f32.mrb[0].mxu0
    %v2556 = vadd.f32 0.0, %v2555
    %v2557 = vpop.f32.mrb[0].mxu0
    %2558 = vmatprep.mubr.f32.mxu0 0.0
    %2559 = vmatmul.mubr.f32.gmra.mrb[0].mxu0 %v2448
    %v2560 = vpop.f32.mrb[0].mxu0
    %v2561 = vadd.f32 0.0, %v2560
    %v2562 = vpop.f32.mrb[0].mxu0
    %2563 = vmatprep.mubr.f32.mxu0 0.0
    %2564 = vmatmul.mubr.f32.gmra.mrb[0].mxu0 %v2449
    %v2565 = vpop.f32.mrb[0].mxu0
    %v2566 = vadd.f32 0.0, %v2565
    %v2567 = vpop.f32.mrb[0].mxu0
    %2568 = vmatprep.mubr.f32.mxu0 0.0
    %2569 = vmatmul.mubr.f32.gmra.mrb[0].mxu0 %v2450
    %v2570 = vpop.f32.mrb[0].mxu0
    %v2571 = vadd.f32 0.0, %v2570
    %v2572 = vpop.f32.mrb[0].mxu0
    %2573 = vmatprep.mubr.f32.mxu0 0.0
    %2574 = vmatmul.mubr.f32.gmra.mrb[0].mxu0 %v2451
    %v2575 = vpop.f32.mrb[0].mxu0
    %v2576 = vadd.f32 0.0, %v2575
    %v2577 = vpop.f32.mrb[0].mxu0
    %2578 = vmatprep.mubr.f32.mxu0 0.0
    %2579 = vmatmul.mubr.f32.gmra.mrb[0].mxu0 %v2452
    %v2580 = vpop.f32.mrb[0].mxu0
    %v2581 = vadd.f32 0.0, %v2580
    %v2582 = vpop.f32.mrb[0].mxu0
    %2583 = vmatprep.mubr.f32.mxu0 0.0
    %2584 = vmatmul.mubr.f32.gmra.mrb[0].mxu0 %v2453
    %v2585 = vpop.f32.mrb[0].mxu0
    %v2586 = vadd.f32 0.0, %v2585
    %v2587 = vpop.f32.mrb[0].mxu0
    %2588 = vmatprep.mubr.f32.mxu0 0.0
    %2589 = vmatmul.mubr.f32.gmra.mrb[0].mxu0 %v2454
    %v2590 = vpop.f32.mrb[0].mxu0
    %v2591 = vadd.f32 0.0, %v2590
    %v2592 = vpop.f32.mrb[0].mxu0
    %2593 = vmatprep.mubr.f32.mxu0 0.0
    %2594 = vmatmul.mubr.f32.gmra.mrb[0].mxu0 %v2455
    %v2595 = vpop.f32.mrb[0].mxu0
    %v2596 = vadd.f32 0.0, %v2595
    %v2597 = vpop.f32.mrb[0].mxu0
    %2598 = vmatprep.mubr.f32.mxu0 0.0
    %2599 = vmatmul.mubr.f32.gmra.mrb[0].mxu0 %v2456
    %v2600 = vpop.f32.mrb[0].mxu0
    %v2601 = vadd.f32 0.0, %v2600
    %v2602 = vpop.f32.mrb[0].mxu0
    %2603 = vmatprep.mubr.f32.mxu0 0.0
    %2604 = vmatmul.mubr.f32.gmra.mrb[0].mxu0 %v2457
    %v2605 = vpop.f32.mrb[0].mxu0
    %v2606 = vadd.f32 0.0, %v2605
    %v2607 = vpop.f32.mrb[0].mxu0
    %2608 = vdwg.mxu0
    %v2609 = vadd.f32 %v2430, %v2541
    %v2610 = vadd.f32 %v2431, %v2546
    %v2611 = vadd.f32 %v2432, %v2551
    %v2612 = vadd.f32 %v2433, %v2556
    %v2613 = vadd.f32 %v2434, %v2561
    %v2614 = vadd.f32 %v2435, %v2566
    %v2615 = vadd.f32 %v2436, %v2571
    %v2616 = vadd.f32 %v2437, %v2576
    %v2617 = vadd.f32 %v2438, %v2581
    %v2618 = vadd.f32 %v2439, %v2586
    %v2619 = vadd.f32 %v2440, %v2591
    %v2620 = vadd.f32 %v2441, %v2596
    %v2621 = vadd.f32 %v2442, %v2601
    %v2622 = vadd.f32 %v2443, %v2606
    %v2623 = vld [vmem:[#allocation17] sm:$0x1]
    %v2625 = vlaneseq
    %v2626 = vshrl.u32 %v2625, 7
    %v2627 = vsub.s32 0, %v2626
    %v2628 = vrot.slane %v2623, %v2627
    %v2630 = vadd.f32 %v2609, %v2628
    %v2631 = vadd.f32 %v2610, %v2628
    %v2632 = vadd.f32 %v2611, %v2628
    %v2633 = vadd.f32 %v2612, %v2628
    %v2634 = vadd.f32 %v2613, %v2628
    %v2635 = vadd.f32 %v2614, %v2628
    %v2636 = vadd.f32 %v2615, %v2628
    %v2637 = vadd.f32 %v2616, %v2628
    %v2638 = vadd.f32 %v2617, %v2628
    %v2639 = vadd.f32 %v2618, %v2628
    %v2640 = vadd.f32 %v2619, %v2628
    %v2641 = vadd.f32 %v2620, %v2628
    %v2642 = vadd.f32 %v2621, %v2628
    %v2643 = vadd.f32 %v2622, %v2628
    %v2644 = vld [vmem:[#allocation8] sm:$0xff]
    %v2645 = vld [vmem:[#allocation8 + $0x8] sm:$0xff]
    %v2646 = vld [vmem:[#allocation8 + $0x10] sm:$0xff]
    %v2647 = vld [vmem:[#allocation8 + $0x18] sm:$0xff]
    %v2648 = vld [vmem:[#allocation8 + $0x20] sm:$0xff]
    %v2649 = vld [vmem:[#allocation8 + $0x28] sm:$0xff]
    %v2650 = vld [vmem:[#allocation8 + $0x30] sm:$0xff]
    %v2651 = vld [vmem:[#allocation8 + $0x38] sm:$0xff]
    %v2652 = vld [vmem:[#allocation8 + $0x40] sm:$0xff]
    %v2653 = vld [vmem:[#allocation8 + $0x48] sm:$0xff]
    %v2654 = vld [vmem:[#allocation8 + $0x50] sm:$0xff]
    %v2655 = vld [vmem:[#allocation8 + $0x58] sm:$0xff]
    %v2656 = vld [vmem:[#allocation8 + $0x60] sm:$0xff]
    %v2657 = vld [vmem:[#allocation8 + $0x68] sm:$0xff]
    %2659 = vset.pattern.permute.xlu0 0
    %2660 = vperm.xlu0 %2659, %v2644
    %v2661 = vpop.permute.xlu0 %2660
    %2664 = vset.pattern.permute.xlu0 0
    %2665 = vperm.xlu0 %2664, %v2645
    %v2666 = vpop.permute.xlu0 %2665
    %2669 = vset.pattern.permute.xlu0 0
    %2670 = vperm.xlu0 %2669, %v2646
    %v2671 = vpop.permute.xlu0 %2670
    %2674 = vset.pattern.permute.xlu0 0
    %2675 = vperm.xlu0 %2674, %v2647
    %v2676 = vpop.permute.xlu0 %2675
    %2679 = vset.pattern.permute.xlu0 0
    %2680 = vperm.xlu0 %2679, %v2648
    %v2681 = vpop.permute.xlu0 %2680
    %2684 = vset.pattern.permute.xlu0 0
    %2685 = vperm.xlu0 %2684, %v2649
    %v2686 = vpop.permute.xlu0 %2685
    %2689 = vset.pattern.permute.xlu0 0
    %2690 = vperm.xlu0 %2689, %v2650
    %v2691 = vpop.permute.xlu0 %2690
    %2694 = vset.pattern.permute.xlu0 0
    %2695 = vperm.xlu0 %2694, %v2651
    %v2696 = vpop.permute.xlu0 %2695
    %2699 = vset.pattern.permute.xlu0 0
    %2700 = vperm.xlu0 %2699, %v2652
    %v2701 = vpop.permute.xlu0 %2700
    %2704 = vset.pattern.permute.xlu0 0
    %2705 = vperm.xlu0 %2704, %v2653
    %v2706 = vpop.permute.xlu0 %2705
    %2709 = vset.pattern.permute.xlu0 0
    %2710 = vperm.xlu0 %2709, %v2654
    %v2711 = vpop.permute.xlu0 %2710
    %2714 = vset.pattern.permute.xlu0 0
    %2715 = vperm.xlu0 %2714, %v2655
    %v2716 = vpop.permute.xlu0 %2715
    %2719 = vset.pattern.permute.xlu0 0
    %2720 = vperm.xlu0 %2719, %v2656
    %v2721 = vpop.permute.xlu0 %2720
    %2724 = vset.pattern.permute.xlu0 0
    %2725 = vperm.xlu0 %2724, %v2657
    %v2726 = vpop.permute.xlu0 %2725
    %v2728 = vmul.f32 %v2630, %v2661
    %v2729 = vmul.f32 %v2631, %v2666
    %v2730 = vmul.f32 %v2632, %v2671
    %v2731 = vmul.f32 %v2633, %v2676
    %v2732 = vmul.f32 %v2634, %v2681
    %v2733 = vmul.f32 %v2635, %v2686
    %v2734 = vmul.f32 %v2636, %v2691
    %v2735 = vmul.f32 %v2637, %v2696
    %v2736 = vmul.f32 %v2638, %v2701
    %v2737 = vmul.f32 %v2639, %v2706
    %v2738 = vmul.f32 %v2640, %v2711
    %v2739 = vmul.f32 %v2641, %v2716
    %v2740 = vmul.f32 %v2642, %v2721
    %v2741 = vmul.f32 %v2643, %v2726
    %v2742 = vadd.f32 %v2728, %v2729
    %v2743 = vadd.f32 %v2742, %v2730
    %v2744 = vadd.f32 %v2743, %v2731
    %v2745 = vadd.f32 %v2744, %v2732
    %v2746 = vadd.f32 %v2745, %v2733
    %v2747 = vadd.f32 %v2746, %v2734
    %v2748 = vadd.f32 %v2747, %v2735
    %v2749 = vadd.f32 %v2748, %v2736
    %v2750 = vadd.f32 %v2749, %v2737
    %v2751 = vadd.f32 %v2750, %v2738
    %v2752 = vadd.f32 %v2751, %v2739
    %v2753 = vadd.f32 %v2752, %v2740
    %v2754 = vadd.f32 %v2753, %v2741
    %v2755 = vrot.slane %v2754, 4
    %v2756 = vadd.f32 %v2754, %v2755
    %v2757 = vrot.slane %v2756, 2
    %v2758 = vadd.f32 %v2756, %v2757
    %v2759 = vrot.slane %v2758, 1
    %v2760 = vadd.f32 %v2758, %v2759
    %v2761 = vmul.f32 %v2760, 0.011363637
    %v2762 = vsub.f32 %v2630, %v2761
    %v2763 = vsub.f32 %v2631, %v2761
    %v2764 = vsub.f32 %v2632, %v2761
    %v2765 = vsub.f32 %v2633, %v2761
    %v2766 = vsub.f32 %v2634, %v2761
    %v2767 = vsub.f32 %v2635, %v2761
    %v2768 = vsub.f32 %v2636, %v2761
    %v2769 = vsub.f32 %v2637, %v2761
    %v2770 = vsub.f32 %v2638, %v2761
    %v2771 = vsub.f32 %v2639, %v2761
    %v2772 = vsub.f32 %v2640, %v2761
    %v2773 = vsub.f32 %v2641, %v2761
    %v2774 = vsub.f32 %v2642, %v2761
    %v2775 = vsub.f32 %v2643, %v2761
    %v2776 = vmul.f32 %v2762, %v2661
    %v2777 = vmul.f32 %v2763, %v2666
    %v2778 = vmul.f32 %v2764, %v2671
    %v2779 = vmul.f32 %v2765, %v2676
    %v2780 = vmul.f32 %v2766, %v2681
    %v2781 = vmul.f32 %v2767, %v2686
    %v2782 = vmul.f32 %v2768, %v2691
    %v2783 = vmul.f32 %v2769, %v2696
    %v2784 = vmul.f32 %v2770, %v2701
    %v2785 = vmul.f32 %v2771, %v2706
    %v2786 = vmul.f32 %v2772, %v2711
    %v2787 = vmul.f32 %v2773, %v2716
    %v2788 = vmul.f32 %v2774, %v2721
    %v2789 = vmul.f32 %v2775, %v2726
    %v2790 = vmul.f32 %v2776, %v2776
    %v2791 = vmul.f32 %v2777, %v2777
    %v2792 = vmul.f32 %v2778, %v2778
    %v2793 = vmul.f32 %v2779, %v2779
    %v2794 = vmul.f32 %v2780, %v2780
    %v2795 = vmul.f32 %v2781, %v2781
    %v2796 = vmul.f32 %v2782, %v2782
    %v2797 = vmul.f32 %v2783, %v2783
    %v2798 = vmul.f32 %v2784, %v2784
    %v2799 = vmul.f32 %v2785, %v2785
    %v2800 = vmul.f32 %v2786, %v2786
    %v2801 = vmul.f32 %v2787, %v2787
    %v2802 = vmul.f32 %v2788, %v2788
    %v2803 = vmul.f32 %v2789, %v2789
    %v2804 = vadd.f32 %v2790, %v2791
    %v2805 = vadd.f32 %v2804, %v2792
    %v2806 = vadd.f32 %v2805, %v2793
    %v2807 = vadd.f32 %v2806, %v2794
    %v2808 = vadd.f32 %v2807, %v2795
    %v2809 = vadd.f32 %v2808, %v2796
    %v2810 = vadd.f32 %v2809, %v2797
    %v2811 = vadd.f32 %v2810, %v2798
    %v2812 = vadd.f32 %v2811, %v2799
    %v2813 = vadd.f32 %v2812, %v2800
    %v2814 = vadd.f32 %v2813, %v2801
    %v2815 = vadd.f32 %v2814, %v2802
    %v2816 = vadd.f32 %v2815, %v2803
    %v2817 = vrot.slane %v2816, 4
    %v2818 = vadd.f32 %v2816, %v2817
    %v2819 = vrot.slane %v2818, 2
    %v2820 = vadd.f32 %v2818, %v2819
    %v2821 = vrot.slane %v2820, 1
    %v2822 = vadd.f32 %v2820, %v2821
    %v2823 = vmul.f32 %v2822, 0.011363637
    %v2824 = vadd.f32 %v2823, 1e-05
    %v2825 = vrsqrt.pop %v2824
    %v2826 = vmul.f32 %v2762, %v2825
    %v2827 = vmul.f32 %v2763, %v2825
    %v2828 = vmul.f32 %v2764, %v2825
    %v2829 = vmul.f32 %v2765, %v2825
    %v2830 = vmul.f32 %v2766, %v2825
    %v2831 = vmul.f32 %v2767, %v2825
    %v2832 = vmul.f32 %v2768, %v2825
    %v2833 = vmul.f32 %v2769, %v2825
    %v2834 = vmul.f32 %v2770, %v2825
    %v2835 = vmul.f32 %v2771, %v2825
    %v2836 = vmul.f32 %v2772, %v2825
    %v2837 = vmul.f32 %v2773, %v2825
    %v2838 = vmul.f32 %v2774, %v2825
    %v2839 = vmul.f32 %v2775, %v2825
    %v2840 = vld [vmem:[#allocation18] sm:$0x1]
    %v2842 = vlaneseq
    %v2843 = vshrl.u32 %v2842, 7
    %v2844 = vsub.s32 0, %v2843
    %v2845 = vrot.slane %v2840, %v2844
    %v2847 = vmul.f32 %v2826, %v2845
    %v2848 = vmul.f32 %v2827, %v2845
    %v2849 = vmul.f32 %v2828, %v2845
    %v2850 = vmul.f32 %v2829, %v2845
    %v2851 = vmul.f32 %v2830, %v2845
    %v2852 = vmul.f32 %v2831, %v2845
    %v2853 = vmul.f32 %v2832, %v2845
    %v2854 = vmul.f32 %v2833, %v2845
    %v2855 = vmul.f32 %v2834, %v2845
    %v2856 = vmul.f32 %v2835, %v2845
    %v2857 = vmul.f32 %v2836, %v2845
    %v2858 = vmul.f32 %v2837, %v2845
    %v2859 = vmul.f32 %v2838, %v2845
    %v2860 = vmul.f32 %v2839, %v2845
    %v2861 = vld [vmem:[#allocation20] sm:$0x1]
    %v2863 = vlaneseq
    %v2864 = vshrl.u32 %v2863, 7
    %v2865 = vsub.s32 0, %v2864
    %v2866 = vrot.slane %v2861, %v2865
    %v2868 = vadd.f32 %v2847, %v2866
    %v2869 = vadd.f32 %v2848, %v2866
    %v2870 = vadd.f32 %v2849, %v2866
    %v2871 = vadd.f32 %v2850, %v2866
    %v2872 = vadd.f32 %v2851, %v2866
    %v2873 = vadd.f32 %v2852, %v2866
    %v2874 = vadd.f32 %v2853, %v2866
    %v2875 = vadd.f32 %v2854, %v2866
    %v2876 = vadd.f32 %v2855, %v2866
    %v2877 = vadd.f32 %v2856, %v2866
    %v2878 = vadd.f32 %v2857, %v2866
    %v2879 = vadd.f32 %v2858, %v2866
    %v2880 = vadd.f32 %v2859, %v2866
    %v2881 = vadd.f32 %v2860, %v2866
    %v2882 = vmax.f32 %v2868, 0.0
    %v2883 = vmax.f32 %v2869, 0.0
    %v2884 = vmax.f32 %v2870, 0.0
    %v2885 = vmax.f32 %v2871, 0.0
    %v2886 = vmax.f32 %v2872, 0.0
    %v2887 = vmax.f32 %v2873, 0.0
    %v2888 = vmax.f32 %v2874, 0.0
    %v2889 = vmax.f32 %v2875, 0.0
    %v2890 = vmax.f32 %v2876, 0.0
    %v2891 = vmax.f32 %v2877, 0.0
    %v2892 = vmax.f32 %v2878, 0.0
    %v2893 = vmax.f32 %v2879, 0.0
    %v2894 = vmax.f32 %v2880, 0.0
    %v2895 = vmax.f32 %v2881, 0.0
    %v2896 = vmul.f32 %v2882, %v2661
    %v2897 = vmul.f32 %v2883, %v2666
    %v2898 = vmul.f32 %v2884, %v2671
    %v2899 = vmul.f32 %v2885, %v2676
    %v2900 = vmul.f32 %v2886, %v2681
    %v2901 = vmul.f32 %v2887, %v2686
    %v2902 = vmul.f32 %v2888, %v2691
    %v2903 = vmul.f32 %v2889, %v2696
    %v2904 = vmul.f32 %v2890, %v2701
    %v2905 = vmul.f32 %v2891, %v2706
    %v2906 = vmul.f32 %v2892, %v2711
    %v2907 = vmul.f32 %v2893, %v2716
    %v2908 = vmul.f32 %v2894, %v2721
    %v2909 = vmul.f32 %v2895, %v2726
    %2910 = vst [vmem:[#allocation21] sm:$0xff] %v2896
    %2911 = vst [vmem:[#allocation21 + $0x8] sm:$0xff] %v2897
    %2912 = vst [vmem:[#allocation21 + $0x10] sm:$0xff] %v2898
    %2913 = vst [vmem:[#allocation21 + $0x18] sm:$0xff] %v2899
    %2914 = vst [vmem:[#allocation21 + $0x20] sm:$0xff] %v2900
    %2915 = vst [vmem:[#allocation21 + $0x28] sm:$0xff] %v2901
    %2916 = vst [vmem:[#allocation21 + $0x30] sm:$0xff] %v2902
    %2917 = vst [vmem:[#allocation21 + $0x38] sm:$0xff] %v2903
    %2918 = vst [vmem:[#allocation21 + $0x40] sm:$0xff] %v2904
    %2919 = vst [vmem:[#allocation21 + $0x48] sm:$0xff] %v2905
    %2920 = vst [vmem:[#allocation21 + $0x50] sm:$0xff] %v2906
    %2921 = vst [vmem:[#allocation21 + $0x58] sm:$0xff] %v2907
    %2922 = vst [vmem:[#allocation21 + $0x60] sm:$0xff] %v2908
    %2923 = vst [vmem:[#allocation21 + $0x68] sm:$0xff] %v2909
    // Predicated region
    $region90: #{tpu_custom_call.1} parent=1 // pred_check
      _
    $region91: #{tpu_custom_call.1} parent=1 // pred_check_branch
      %2925 = sbr.rel (0) target = $region93
    $region92: #{tpu_custom_call.1} parent=1 // pred_region
      %s2927 = ssub.s32 1792, 1792
      %2928 = vsyncadd [#allocation5], %s2927
      %s2929 = sshll.u32 [#allocation21], 4
      %s2930 = int_to_ptr.vmem [resolvable:$true] %s2929
      %2935 = dma.vmem_to_hbm [thread:$0]  %s2930, 1792, %s11, [#allocation5], 128, 128, 8
    $region93: #{tpu_custom_call.1} parent=1 // pred_fallthru
      _
    // Predicated region
    $region94: #{tpu_custom_call.1} parent=1 // pred_check
      _
    $region95: #{tpu_custom_call.1} parent=1 // pred_check_branch
      %2937 = sbr.rel (0) target = $region97
    $region96: #{tpu_custom_call.1} parent=1 // pred_region
      %2938 = dma.done [#allocation5], 1792
    $region97: #{tpu_custom_call.1} parent=1 // pred_fallthru
      _
    %2939 = vsyncpa [#allocation4], 1
    %2940 = vsyncpa [#allocation7], 1
    %2941 = vsyncpa [#allocation10], 1
    %2942 = vsyncpa [#allocation13], 1
    %2943 = vsyncpa [#allocation16], 1
    %2944 = vsyncpa [#allocation19], 1
    %2945 = vsyncpa [#allocation5], 1

</llo_original>
